<compile_context>
chip_gen: v7x
topology: tpu7x:2x2x1
jax: 0.10.0
libtpu: 0.0.40
codegen_flags: <defaults>
</compile_context>

<pallas_src>
import jax
import jax.numpy as jnp
from jax import lax
from jax.experimental import pallas as pl
from jax.experimental.pallas import tpu as pltpu

PAD = 8  # zero-pad rows on each side of the length axis (>= 2 needed; 8 keeps slices aligned)


def _basicblock_kernel(xp_ref, w1_ref, b1_ref, w2_ref, b2_ref, o_ref):
    # xp_ref: (1, L + 2*PAD, C) f32  zero-padded full-length slab (resident across the t axis)
    # w1_ref: (3C, P) bf16  im2col conv1 weights (BN1 scale folded), taps ordered (l-1, l, l+1)
    # w2_ref: (3P, P) bf16  im2col conv2 weights (BN2 scale folded)
    # b1/b2:  (1, P)  f32   folded BN shifts
    # o_ref:  (1, TL, C) f32 output tile
    t = pl.program_id(1)
    TL = o_ref.shape[1]
    L = xp_ref.shape[1] - 2 * PAD

    r0 = t * TL                                    # first output row of this tile
    base = pl.multiple_of(r0 + PAD, 8)             # padded-slab index of x[r0] (8-row aligned)
    bf16 = jnp.bfloat16

    # ---- conv1 (k=3, pad=1) + bn1 + relu --------------------------------------------------
    # One fused im2col matmul over K = 3C (feeds the 256-deep MXUs on v6e/v7x well; v5e is
    # simply two full 128-deep passes).  The im2col slab is built directly in bf16 from three
    # shifted slices of the resident padded slab -- no f32 3x-wide temporaries, no "win" copy.
    # Row i corresponds to conv1 output position gh = r0 - 1 + i (TL + 2 rows: one halo row
    # each side so conv2 never needs data from neighbouring tiles).  The wrapper's zero pad
    # provides x[-2], x[-1], x[L], x[L+1] == 0, so no edge masking is needed here.
    x3 = jnp.concatenate(
        [xp_ref[0, pl.ds(base - 2, TL + 2), :].astype(bf16),   # x[gh-1]
         xp_ref[0, pl.ds(base - 1, TL + 2), :].astype(bf16),   # x[gh]
         xp_ref[0, pl.ds(base,     TL + 2), :].astype(bf16)],  # x[gh+1]
        axis=1)                                                 # (TL+2, 3C) bf16
    h = jnp.dot(x3, w1_ref[...], preferred_element_type=jnp.float32) + b1_ref[...]
    h = jnp.maximum(h, 0.0)                                     # (TL+2, P) f32

    # conv2's zero padding: rows gh = -1 and gh = L must be literal zeros, not conv1 outputs
    # evaluated over padding.  Cast to bf16 once; h3 is then assembled directly in bf16.
    gh = (r0 - 1) + lax.broadcasted_iota(jnp.int32, (TL + 2, 1), 0)
    h = jnp.where((gh >= 0) & (gh < L), h, 0.0).astype(bf16)

    # ---- conv2 (k=3, pad=1) + bn2 + residual + relu ---------------------------------------
    h3 = jnp.concatenate([h[0:TL], h[1:TL + 1], h[2:TL + 2]], axis=1)   # (TL, 3P) bf16
    out = jnp.dot(h3, w2_ref[...], preferred_element_type=jnp.float32) + b2_ref[...]

    # Residual read kept late (it lives in the resident slab anyway) so its (TL, C) f32 value
    # is not live across both matmuls; its start is 8-row aligned.
    x_tile = xp_ref[0, pl.ds(base, TL), :]                              # (TL, C) f32
    o_ref[0] = jnp.maximum(out + x_tile, 0.0).astype(o_ref.dtype)


def _pick_tile(L, target):
    """Largest multiple-of-8 divisor of L that is <= target; falls back to L."""
    best = None
    d = 8
    while d <= min(L, target):
        if L % d == 0:
            best = d
        d += 8
    return best if best is not None else L


def _vmem_limit_bytes():
    """Generation-dependent scoped-VMEM cap: ~96 MiB on v5e/v6e (128 MiB physical),
    ~48 MiB on v7x (64 MiB physical per TensorCore); conservative fallback if unknown."""
    try:
        cap = int(pltpu.get_tpu_info().vmem_capacity_bytes)
    except Exception:
        cap = 64 * 1024 * 1024
    return min((cap * 3) // 4, 96 * 1024 * 1024)


def basicblock1d_pallas(x_nlc, params, tile_l=1024):
    """x_nlc: (N, L, C) float32 channels-last activations. Returns (N, L, C) float32."""
    w1c, b1, w2c, b2 = params
    N, L, C = x_nlc.shape
    P = w1c.shape[1]
    # Residual add with downsample=None requires out channels == in channels (expansion=1).
    assert C == P, "BasicBlock1d with downsample=None requires inplanes == planes"
    assert w1c.shape[0] == 3 * C and w2c.shape[0] == 3 * P

    TL = _pick_tile(L, tile_l)
    NT = L // TL

    # One-time zero pad of the length axis: provides the convs' zero padding and keeps every
    # in-kernel slice trivially in-bounds.  One extra HBM copy of x, amortized over all NT
    # tiles and both convolutions (and removes all per-tile halo plumbing from the kernel).
    xp = jnp.pad(x_nlc, ((0, 0), (PAD, PAD), (0, 0)))
    Lp = L + 2 * PAD

    vmem_limit = _vmem_limit_bytes()

    # The padded slab's block index only changes on the slow batch axis; if double-buffering it
    # would eat a large slice of VMEM (the binding constraint on v7x's 64 MiB/TC), drop it to a
    # single buffer and accept one exposed DMA per batch transition.
    slab_kwargs = {}
    if 2 * (Lp * C * 4) > vmem_limit // 3:
        slab_kwargs["pipeline_mode"] = pl.Buffered(1)

    flops = int(2 * N * L * 3 * P * (C + P))
    bytes_accessed = int(4 * N * Lp * C + 4 * N * L * P
                         + 2 * (3 * C * P + 3 * P * P) + 4 * 2 * P)

    return pl.pallas_call(
        _basicblock_kernel,
        out_shape=jax.ShapeDtypeStruct((N, L, C), jnp.float32),
        grid=(N, NT),
        in_specs=[
            # Full-length padded slab per batch; block index is constant in t -> VMEM-resident.
            pl.BlockSpec((1, Lp, C), lambda b, t: (b, 0, 0), **slab_kwargs),
            pl.BlockSpec((3 * C, P), lambda b, t: (0, 0)),
            pl.BlockSpec((1, P), lambda b, t: (0, 0)),
            pl.BlockSpec((3 * P, P), lambda b, t: (0, 0)),
            pl.BlockSpec((1, P), lambda b, t: (0, 0)),
        ],
        out_specs=pl.BlockSpec((1, TL, C), lambda b, t: (b, t, 0)),
        compiler_params=pltpu.CompilerParams(
            # Shard across TensorCores on the batch axis only: splitting the t axis on v7x
            # would duplicate the resident x slab in both cores' VMEM and double its HBM reads.
            dimension_semantics=("parallel", "arbitrary"),
            vmem_limit_bytes=vmem_limit,
        ),
        cost_estimate=pl.CostEstimate(flops=flops, transcendentals=0,
                                      bytes_accessed=bytes_accessed),
    )(xp, w1c, b1, w2c, b2)


def basicblock1d_pallas_ncl(x_ncl, params, tile_l=1024):
    """PyTorch-layout adapter ((N, C, L) in/out). Prefer the NLC entry point above:
    these two transposes cost a full HBM round trip each."""
    out = basicblock1d_pallas(jnp.transpose(x_ncl, (0, 2, 1)), params, tile_l)
    return jnp.transpose(out, (0, 2, 1))


def make_params(key, inplanes, planes, eps=1e-5):
    """Deterministic synthetic weights; eval-mode BN folded into conv weight + bias.

    Returns im2col-layout weights for the NLC kernel:
      w1c: (3*inplanes, planes) bf16, row index = tap*inplanes + in_channel (taps: l-1, l, l+1)
      w2c: (3*planes,  planes) bf16
      b1, b2: (1, planes) f32 folded BN shifts
    """
    ks = jax.random.split(key, 10)
    conv1_w = 0.1 * jax.random.normal(ks[0], (planes, inplanes, 3), jnp.float32)
    conv2_w = 0.1 * jax.random.normal(ks[1], (planes, planes, 3), jnp.float32)

    def bn(kg, kb, km, kv, c):
        gamma = 1.0 + 0.1 * jax.random.normal(kg, (c,), jnp.float32)
        beta = 0.1 * jax.random.normal(kb, (c,), jnp.float32)
        mean = 0.1 * jax.random.normal(km, (c,), jnp.float32)
        var = jnp.abs(jax.random.normal(kv, (c,), jnp.float32)) + 0.5
        scale = gamma / jnp.sqrt(var + eps)
        shift = beta - scale * mean
        return scale, shift

    s1, sh1 = bn(ks[2], ks[3], ks[4], ks[5], planes)
    s2, sh2 = bn(ks[6], ks[7], ks[8], ks[9], planes)

    # Fold BN scale into conv output channels; reshape (Cout, Cin, K) -> (K*Cin, Cout).
    w1c = jnp.transpose(conv1_w * s1[:, None, None], (2, 1, 0)).reshape(3 * inplanes, planes)
    w2c = jnp.transpose(conv2_w * s2[:, None, None], (2, 1, 0)).reshape(3 * planes, planes)
    return (w1c.astype(jnp.bfloat16), sh1.reshape(1, planes).astype(jnp.float32),
            w2c.astype(jnp.bfloat16), sh2.reshape(1, planes).astype(jnp.float32))


def reference_nlc(x, params):
    """Pure-JAX reference with identical math (bf16 matmul inputs, f32 accumulation)."""
    w1c, b1, w2c, b2 = params
    N, L, C = x.shape
    P = w1c.shape[1]
    z = jnp.zeros((N, 1, C), x.dtype)
    xp = jnp.concatenate([z, x[:, :-1]], axis=1)     # x[l-1]
    xn = jnp.concatenate([x[:, 1:], z], axis=1)      # x[l+1]
    x3 = jnp.concatenate([xp, x, xn], axis=-1).astype(jnp.bfloat16)
    h = jnp.maximum(jnp.einsum('nlk,kp->nlp', x3, w1c,
                               preferred_element_type=jnp.float32) + b1, 0.0)
    zp = jnp.zeros((N, 1, P), h.dtype)
    hp = jnp.concatenate([zp, h[:, :-1]], axis=1)
    hn = jnp.concatenate([h[:, 1:], zp], axis=1)
    h3 = jnp.concatenate([hp, h, hn], axis=-1).astype(jnp.bfloat16)
    out = jnp.einsum('nlk,kp->nlp', h3, w2c, preferred_element_type=jnp.float32) + b2
    return jnp.maximum(out + x, 0.0)


if __name__ == "__main__":
    # BasicBlock1d(inplanes=128, planes=128, stride=1, kernel_size=[3,3], downsample=None).
    # Channels are a multiple of 128 (lane-dense stores); L chosen so the default TL=1024
    # tiling gives 3 tiles per batch (left-edge, interior, right-edge tiles all exercised).
    N, C, L = 2, 128, 3072

    key = jax.random.PRNGKey(0)
    kx, kp = jax.random.split(key)
    # Channels-last (N, L, C) activations: the network stays in NLC, so the kernel never pays
    # for NCL<->NLC transposes ((N, C, L) from PyTorch is just the transposed view).
    x = jax.random.normal(kx, (N, L, C), jnp.float32)
    params = make_params(kp, inplanes=C, planes=C)

    out = basicblock1d_pallas(x, params)
    out = jax.block_until_ready(out)

    ref = reference_nlc(x, params)
    assert out.shape == (N, L, C)
    assert jnp.allclose(out, ref, atol=2e-2, rtol=2e-2), (
        f"mismatch vs JAX reference, max abs err {jnp.max(jnp.abs(out - ref))}")

    print("KERNEL_OK")
</pallas_src>

<mosaic_0001>
module attributes {stable_mosaic.version = 11 : i64} {
  func.func @_basicblock_kernel(%arg0: i32, %arg1: i32, %arg2: memref<1x3088x128xf32, #tpu.memory_space<vmem>>, %arg3: memref<384x128xbf16, #tpu.memory_space<vmem>>, %arg4: memref<1x128xf32, #tpu.memory_space<vmem>>, %arg5: memref<384x128xbf16, #tpu.memory_space<vmem>>, %arg6: memref<1x128xf32, #tpu.memory_space<vmem>>, %arg7: memref<1x1024x128xf32, #tpu.memory_space<vmem>>) attributes {dimension_semantics = [#tpu.dimension_semantics<parallel>, #tpu.dimension_semantics<arbitrary>], iteration_bounds = array<i64: 2, 3>, scalar_prefetch = 0 : i64, scratch_operands = 0 : i64, tpu.core_type = #tpu.core_type<tc>, window_params = [{transform_indices = @transform_0, window_bounds = array<i64: 1, 3088, 128>}, {pipeline_mode = #tpu.pipeline_mode<synchronous>, transform_indices = @transform_1, window_bounds = array<i64: 384, 128>}, {pipeline_mode = #tpu.pipeline_mode<synchronous>, transform_indices = @transform_2, window_bounds = array<i64: 1, 128>}, {pipeline_mode = #tpu.pipeline_mode<synchronous>, transform_indices = @transform_3, window_bounds = array<i64: 384, 128>}, {pipeline_mode = #tpu.pipeline_mode<synchronous>, transform_indices = @transform_4, window_bounds = array<i64: 1, 128>}, {transform_indices = @transform_5, window_bounds = array<i64: 1, 1024, 128>}]} {
    %c1024_i32 = arith.constant 1024 : i32
    %0 = arith.muli %arg1, %c1024_i32 : i32
    %c8_i32 = arith.constant 8 : i32
    %1 = arith.addi %0, %c8_i32 : i32
    %2 = tpu.assume_multiple %1, 8 : i32
    %c2_i32 = arith.constant 2 : i32
    %3 = arith.subi %2, %c2_i32 : i32
    %c0 = arith.constant 0 : index
    %4 = arith.index_cast %3 : i32 to index
    %c0_0 = arith.constant 0 : index
    %5 = vector.load %arg2[%c0, %4, %c0_0] : memref<1x3088x128xf32, #tpu.memory_space<vmem>>, vector<1x1026x128xf32>
    %6 = vector.shape_cast %5 : vector<1x1026x128xf32> to vector<1026x128xf32>
    %7 = arith.truncf %6 : vector<1026x128xf32> to vector<1026x128xbf16>
    %c1_i32 = arith.constant 1 : i32
    %8 = arith.subi %2, %c1_i32 : i32
    %c0_1 = arith.constant 0 : index
    %9 = arith.index_cast %8 : i32 to index
    %c0_2 = arith.constant 0 : index
    %10 = vector.load %arg2[%c0_1, %9, %c0_2] : memref<1x3088x128xf32, #tpu.memory_space<vmem>>, vector<1x1026x128xf32>
    %11 = vector.shape_cast %10 : vector<1x1026x128xf32> to vector<1026x128xf32>
    %12 = arith.truncf %11 : vector<1026x128xf32> to vector<1026x128xbf16>
    %c0_3 = arith.constant 0 : index
    %13 = arith.index_cast %2 : i32 to index
    %c0_4 = arith.constant 0 : index
    %14 = vector.load %arg2[%c0_3, %13, %c0_4] : memref<1x3088x128xf32, #tpu.memory_space<vmem>>, vector<1x1026x128xf32>
    %15 = vector.shape_cast %14 : vector<1x1026x128xf32> to vector<1026x128xf32>
    %16 = arith.truncf %15 : vector<1026x128xf32> to vector<1026x128xbf16>
    %17 = tpu.concatenate %7, %12, %16 in 1 : vector<1026x128xbf16>, vector<1026x128xbf16>, vector<1026x128xbf16> -> vector<1026x384xbf16>
    %c0_5 = arith.constant 0 : index
    %c0_6 = arith.constant 0 : index
    %18 = vector.load %arg3[%c0_5, %c0_6] : memref<384x128xbf16, #tpu.memory_space<vmem>>, vector<384x128xbf16>
    %cst = arith.constant dense<0.000000e+00> : vector<1026x128xf32>
    %19 = tpu.matmul %17, %18, %cst {dimension_numbers = #tpu.dot_dimension_numbers<[1], [0], [0], [1], [0, 0, 1, 1], [], []>} : vector<1026x384xbf16>, vector<384x128xbf16>, vector<1026x128xf32> -> vector<1026x128xf32>
    %c0_7 = arith.constant 0 : index
    %c0_8 = arith.constant 0 : index
    %20 = vector.load %arg4[%c0_7, %c0_8] : memref<1x128xf32, #tpu.memory_space<vmem>>, vector<1x128xf32>
    %21 = vector.broadcast %20 : vector<1x128xf32> to vector<1026x128xf32>
    %22 = arith.addf %19, %21 : vector<1026x128xf32>
    %cst_9 = arith.constant 0.000000e+00 : f32
    %23 = vector.broadcast %cst_9 : f32 to vector<1026x128xf32>
    %24 = arith.maximumf %22, %23 : vector<1026x128xf32>
    %c1_i32_10 = arith.constant 1 : i32
    %25 = arith.subi %0, %c1_i32_10 : i32
    %26 = tpu.iota {dimensions = array<i32: 0>} : vector<1026x1xi32>
    %27 = vector.broadcast %25 : i32 to vector<1026x1xi32>
    %28 = arith.addi %27, %26 : vector<1026x1xi32>
    %c0_i32 = arith.constant 0 : i32
    %29 = vector.broadcast %c0_i32 : i32 to vector<1026x1xi32>
    %30 = arith.cmpi sge, %28, %29 : vector<1026x1xi32>
    %c3072_i32 = arith.constant 3072 : i32
    %31 = vector.broadcast %c3072_i32 : i32 to vector<1026x1xi32>
    %32 = arith.cmpi slt, %28, %31 : vector<1026x1xi32>
    %33 = arith.andi %30, %32 : vector<1026x1xi1>
    %cst_11 = arith.constant 0.000000e+00 : f32
    %34 = vector.shape_cast %33 : vector<1026x1xi1> to vector<1026x1xi1>
    %35 = vector.broadcast %34 : vector<1026x1xi1> to vector<1026x128xi1>
    %36 = vector.broadcast %cst_11 : f32 to vector<1026x128xf32>
    %37 = arith.select %35, %24, %36 : vector<1026x128xi1>, vector<1026x128xf32>
    %38 = arith.truncf %37 : vector<1026x128xf32> to vector<1026x128xbf16>
    %39 = vector.extract_strided_slice %38 {offsets = [0, 0], sizes = [1024, 128], strides = [1, 1]} : vector<1026x128xbf16> to vector<1024x128xbf16>
    %40 = vector.extract_strided_slice %38 {offsets = [1, 0], sizes = [1024, 128], strides = [1, 1]} : vector<1026x128xbf16> to vector<1024x128xbf16>
    %41 = vector.extract_strided_slice %38 {offsets = [2, 0], sizes = [1024, 128], strides = [1, 1]} : vector<1026x128xbf16> to vector<1024x128xbf16>
    %42 = tpu.concatenate %39, %40, %41 in 1 : vector<1024x128xbf16>, vector<1024x128xbf16>, vector<1024x128xbf16> -> vector<1024x384xbf16>
    %c0_12 = arith.constant 0 : index
    %c0_13 = arith.constant 0 : index
    %43 = vector.load %arg5[%c0_12, %c0_13] : memref<384x128xbf16, #tpu.memory_space<vmem>>, vector<384x128xbf16>
    %cst_14 = arith.constant dense<0.000000e+00> : vector<1024x128xf32>
    %44 = tpu.matmul %42, %43, %cst_14 {dimension_numbers = #tpu.dot_dimension_numbers<[1], [0], [0], [1], [0, 0, 1, 1], [], []>} : vector<1024x384xbf16>, vector<384x128xbf16>, vector<1024x128xf32> -> vector<1024x128xf32>
    %c0_15 = arith.constant 0 : index
    %c0_16 = arith.constant 0 : index
    %45 = vector.load %arg6[%c0_15, %c0_16] : memref<1x128xf32, #tpu.memory_space<vmem>>, vector<1x128xf32>
    %46 = vector.broadcast %45 : vector<1x128xf32> to vector<1024x128xf32>
    %47 = arith.addf %44, %46 : vector<1024x128xf32>
    %c0_17 = arith.constant 0 : index
    %48 = arith.index_cast %2 : i32 to index
    %c0_18 = arith.constant 0 : index
    %49 = vector.load %arg2[%c0_17, %48, %c0_18] : memref<1x3088x128xf32, #tpu.memory_space<vmem>>, vector<1x1024x128xf32>
    %50 = vector.shape_cast %49 : vector<1x1024x128xf32> to vector<1024x128xf32>
    %51 = arith.addf %47, %50 : vector<1024x128xf32>
    %cst_19 = arith.constant 0.000000e+00 : f32
    %52 = vector.broadcast %cst_19 : f32 to vector<1024x128xf32>
    %53 = arith.maximumf %51, %52 : vector<1024x128xf32>
    %c0_20 = arith.constant 0 : index
    %c0_21 = arith.constant 0 : index
    %c0_22 = arith.constant 0 : index
    %54 = vector.load %arg7[%c0_20, %c0_21, %c0_22] : memref<1x1024x128xf32, #tpu.memory_space<vmem>>, vector<1x1024x128xf32>
    %55 = vector.shape_cast %54 : vector<1x1024x128xf32> to vector<1024x128xf32>
    %56 = vector.shape_cast %53 : vector<1024x128xf32> to vector<1x1024x128xf32>
    tpu.vector_store %arg7[%c0_20, %c0_21, %c0_22], %56 {strides = array<i32>} : memref<1x1024x128xf32, #tpu.memory_space<vmem>>, vector<1x1024x128xf32>,
    return
  }
  func.func @transform_0(%arg0: i32, %arg1: i32) -> (i32, i32, i32) {
    %c0_i32 = arith.constant 0 : i32
    %c0_i32_0 = arith.constant 0 : i32
    %c0_i32_1 = arith.constant 0 : i32
    return %arg0, %c0_i32, %c0_i32_0 : i32, i32, i32
  }
  func.func @transform_1(%arg0: i32, %arg1: i32) -> (i32, i32) {
    %c0_i32 = arith.constant 0 : i32
    %c0_i32_0 = arith.constant 0 : i32
    %c0_i32_1 = arith.constant 0 : i32
    return %c0_i32, %c0_i32_0 : i32, i32
  }
  func.func @transform_2(%arg0: i32, %arg1: i32) -> (i32, i32) {
    %c0_i32 = arith.constant 0 : i32
    %c0_i32_0 = arith.constant 0 : i32
    %c0_i32_1 = arith.constant 0 : i32
    return %c0_i32, %c0_i32_0 : i32, i32
  }
  func.func @transform_3(%arg0: i32, %arg1: i32) -> (i32, i32) {
    %c0_i32 = arith.constant 0 : i32
    %c0_i32_0 = arith.constant 0 : i32
    %c0_i32_1 = arith.constant 0 : i32
    return %c0_i32, %c0_i32_0 : i32, i32
  }
  func.func @transform_4(%arg0: i32, %arg1: i32) -> (i32, i32) {
    %c0_i32 = arith.constant 0 : i32
    %c0_i32_0 = arith.constant 0 : i32
    %c0_i32_1 = arith.constant 0 : i32
    return %c0_i32, %c0_i32_0 : i32, i32
  }
  func.func @transform_5(%arg0: i32, %arg1: i32) -> (i32, i32, i32) {
    %c0_i32 = arith.constant 0 : i32
    %c0_i32_0 = arith.constant 0 : i32
    return %arg0, %arg1, %c0_i32 : i32, i32, i32
  }
}

</mosaic_0001>

<llo_original>
// kernel: tpu_custom_call.1
$region0: #{tpu_custom_call.1}
  #allocation0 [shape = 'u32[]', space=smem, size = 0x4, offset = 0x4, fixed_abs, tag = 'smem constant byte address 0x4 - core index']
  #allocation1 [shape = 'u32[144,128]{1,0:T(1,128)}', space=vmem, size = 0x12000, scoped, tag = 'internal scratch']
  %s0 = inlined_call_operand.hbm [shape: f32[2,3088,128], index: 0, kind: input, shape index: {}]
  %s1 = inlined_call_operand.hbm [shape: bf16[384,128], index: 1, kind: input, shape index: {}]
  %s2 = inlined_call_operand.hbm [shape: f32[1,128], index: 2, kind: input, shape index: {}]
  %s3 = inlined_call_operand.hbm [shape: bf16[384,128], index: 3, kind: input, shape index: {}]
  %s4 = inlined_call_operand.hbm [shape: f32[1,128], index: 4, kind: input, shape index: {}]
  %s5 = inlined_call_operand.hbm [shape: f32[2,3072,128], index: 5, kind: output, shape index: {}]
  %s6 = sld [smem:[#allocation0]]
  $region73: #{tpu_custom_call.1} parent=0
    _
  %s8 = ssub.s32 1, %s6
  %s9 = scalar_select 0, %s8, %s6
  $region1: #{tpu_custom_call.1} parent=0
    #allocation2 [shape = 'u8[3162112]{0}', space=vmem, size = 0x304000, scoped, tag = 'input window, operand 0']
    #allocation3 [shape = 's32[2]{0}', space=sflag, size = 0x8, scoped, tag = 'scoped memory for tpu_custom_call.1']
    #allocation4 [shape = 's32[2]{0}', space=sflag, size = 0x8, scoped, tag = 'scoped memory for tpu_custom_call.1']
    #allocation5 [shape = 'u8[98304]{0}', space=vmem, size = 0x18000, scoped, tag = 'input window, operand 1, single buffered']
    #allocation6 [shape = 's32[1]{0}', space=sflag, size = 0x4, scoped, tag = 'scoped memory for tpu_custom_call.1']
    #allocation7 [shape = 'u8[512]{0}', space=vmem, size = 0x400, scoped, tag = 'input window, operand 2, single buffered']
    #allocation8 [shape = 'u8[98304]{0}', space=vmem, size = 0x18000, scoped, tag = 'input window, operand 3, single buffered']
    #allocation9 [shape = 's32[1]{0}', space=sflag, size = 0x4, scoped, tag = 'scoped memory for tpu_custom_call.1']
    #allocation10 [shape = 'u8[512]{0}', space=vmem, size = 0x400, scoped, tag = 'input window, operand 4, single buffered']
    #allocation11 [shape = 'u8[1048576]{0}', space=vmem, size = 0x100000, scoped, tag = 'output window, operand 0']
    %10 = vsyncpa [#allocation3], 0
    %s11 = scalar_lea.sflag [#allocation3], 1
    %12 = vsyncpa %s11, 0
    %13 = vsyncpa [#allocation6], 0
    %14 = vsyncpa [#allocation9], 0
    %15 = vsyncpa [#allocation4], 0
    %s16 = scalar_lea.sflag [#allocation4], 1
    %17 = vsyncpa %s16, 0
    loop: start=0, step=1, limit=8
    $region2: #{tpu_custom_call.1} parent=1 // loop_pre_header
      _
    $region3: #{tpu_custom_call.1} parent=1 // loop_header
      %s19 = sphi 0, %s23
      %p20 = scmp.ge.s32.totalorder %s19, 8
      %s26 = sphi 0, %s38
      %s27 = sphi 0, %s34
      %s28 = sphi 0, %s26
      %s29 = sphi 0, %s27
      %s30 = sphi 0, %s28
      %s31 = sphi 0, %s29
      %s41 = sphi 0, %s43
      %s44 = sphi 0, %s41
      %s45 = sphi 0, %s44
      %s61 = sphi 0, %s45
      %s65 = sphi 0, %s65
      %s67 = sphi 0, %s65
      %s68 = sphi 0, %s67
      %s82 = sphi 0, %s68
      %s86 = sphi 0, %s86
      %s88 = sphi 0, %s86
      %s89 = sphi 0, %s88
      %s103 = sphi 0, %s89
      %s107 = sphi 0, %s107
      %s109 = sphi 0, %s107
      %s110 = sphi 0, %s109
      %s124 = sphi 0, %s110
      %s128 = sphi 0, %s128
      %s130 = sphi 0, %s128
      %s131 = sphi 0, %s130
      %s145 = sphi 0, %s131
      %s153 = sphi 0, %s155
      %s156 = sphi 0, %s153
      %s157 = sphi 0, %s156
      %s173 = sphi 0, %s157
    $region4: #{tpu_custom_call.1} parent=1 // loop_header_branch
      %22 = sbr.rel (%p20) target = $region8
    $region5: #{tpu_custom_call.1} parent=1 // loop_body
      %s24 = ssub.s32 %s19, 1
      %s25 = ssub.s32 %s19, 2
      %s32 = sadd.s32 1, %s27
      %p33 = scmp.ge.s32.totalorder %s32, 3
      %s34 = scalar_select %p33, 0, %s32
      %s35 = sadd.s32 1, %s26
      %s36 = scalar_select %p33, %s35, %s26
      %p37 = scmp.ge.s32.totalorder %s36, 2
      %s38 = scalar_select %p37, 0, %s36
      %s39 = ssub.s32 %s26, %s38
      %p40 = scmp.eq.s32.totalorder %s39, 0
      %s42 = sadd.s32 %s41, 1
      %s43 = scalar_select %p40, %s41, %s42
      %p46 = pneg %p40
      %p47 = scmp.eq.s32.totalorder %s19, 5
      %p48 = por %p46, %p47
      %p49 = scmp.ne.s32.totalorder %s41, %s44
      %p50 = scmp.eq.s32.totalorder %s19, 0
      %p51 = por %p49, %p50
      %p52 = scmp.ne.s32.totalorder %s41, %s44
      %p53 = scmp.eq.s32.totalorder %s24, 5
      %p54 = por %p52, %p53
      %p55 = scmp.ne.s32.totalorder %s44, %s45
      %p56 = scmp.eq.s32.totalorder %s24, 0
      %p57 = por %p55, %p56
      %p58 = scmp.ne.s32.totalorder %s44, %s45
      %p59 = scmp.eq.s32.totalorder %s25, 5
      %p60 = por %p58, %p59
      %p62 = scmp.ne.s32.totalorder %s45, %s61
      %p63 = scmp.eq.s32.totalorder %s25, 0
      %p64 = por %p62, %p63
      %s66 = sadd.s32 %s65, 1
      %p69 = scmp.eq.s32.totalorder %s19, 5
      %p70 = scmp.ne.s32.totalorder %s65, %s67
      %p71 = scmp.eq.s32.totalorder %s19, 0
      %p72 = por %p70, %p71
      %p73 = scmp.ne.s32.totalorder %s65, %s67
      %p74 = scmp.eq.s32.totalorder %s24, 5
      %p75 = por %p73, %p74
      %p76 = scmp.ne.s32.totalorder %s67, %s68
      %p77 = scmp.eq.s32.totalorder %s24, 0
      %p78 = por %p76, %p77
      %p79 = scmp.ne.s32.totalorder %s67, %s68
      %p80 = scmp.eq.s32.totalorder %s25, 5
      %p81 = por %p79, %p80
      %p83 = scmp.ne.s32.totalorder %s68, %s82
      %p84 = scmp.eq.s32.totalorder %s25, 0
      %p85 = por %p83, %p84
      %s87 = sadd.s32 %s86, 1
      %p90 = scmp.eq.s32.totalorder %s19, 5
      %p91 = scmp.ne.s32.totalorder %s86, %s88
      %p92 = scmp.eq.s32.totalorder %s19, 0
      %p93 = por %p91, %p92
      %p94 = scmp.ne.s32.totalorder %s86, %s88
      %p95 = scmp.eq.s32.totalorder %s24, 5
      %p96 = por %p94, %p95
      %p97 = scmp.ne.s32.totalorder %s88, %s89
      %p98 = scmp.eq.s32.totalorder %s24, 0
      %p99 = por %p97, %p98
      %p100 = scmp.ne.s32.totalorder %s88, %s89
      %p101 = scmp.eq.s32.totalorder %s25, 5
      %p102 = por %p100, %p101
      %p104 = scmp.ne.s32.totalorder %s89, %s103
      %p105 = scmp.eq.s32.totalorder %s25, 0
      %p106 = por %p104, %p105
      %s108 = sadd.s32 %s107, 1
      %p111 = scmp.eq.s32.totalorder %s19, 5
      %p112 = scmp.ne.s32.totalorder %s107, %s109
      %p113 = scmp.eq.s32.totalorder %s19, 0
      %p114 = por %p112, %p113
      %p115 = scmp.ne.s32.totalorder %s107, %s109
      %p116 = scmp.eq.s32.totalorder %s24, 5
      %p117 = por %p115, %p116
      %p118 = scmp.ne.s32.totalorder %s109, %s110
      %p119 = scmp.eq.s32.totalorder %s24, 0
      %p120 = por %p118, %p119
      %p121 = scmp.ne.s32.totalorder %s109, %s110
      %p122 = scmp.eq.s32.totalorder %s25, 5
      %p123 = por %p121, %p122
      %p125 = scmp.ne.s32.totalorder %s110, %s124
      %p126 = scmp.eq.s32.totalorder %s25, 0
      %p127 = por %p125, %p126
      %s129 = sadd.s32 %s128, 1
      %p132 = scmp.eq.s32.totalorder %s19, 5
      %p133 = scmp.ne.s32.totalorder %s128, %s130
      %p134 = scmp.eq.s32.totalorder %s19, 0
      %p135 = por %p133, %p134
      %p136 = scmp.ne.s32.totalorder %s128, %s130
      %p137 = scmp.eq.s32.totalorder %s24, 5
      %p138 = por %p136, %p137
      %p139 = scmp.ne.s32.totalorder %s130, %s131
      %p140 = scmp.eq.s32.totalorder %s24, 0
      %p141 = por %p139, %p140
      %p142 = scmp.ne.s32.totalorder %s130, %s131
      %p143 = scmp.eq.s32.totalorder %s25, 5
      %p144 = por %p142, %p143
      %p146 = scmp.ne.s32.totalorder %s131, %s145
      %p147 = scmp.eq.s32.totalorder %s25, 0
      %p148 = por %p146, %p147
      %s149 = ssub.s32 %s26, %s38
      %s150 = ssub.s32 %s27, %s34
      %s151 = sor.u32 %s149, %s150
      %p152 = scmp.eq.s32.totalorder %s151, 0
      %s154 = sadd.s32 %s153, 1
      %s155 = scalar_select %p152, %s153, %s154
      %p158 = pneg %p152
      %p159 = scmp.eq.s32.totalorder %s19, 5
      %p160 = por %p158, %p159
      %p161 = scmp.ne.s32.totalorder %s153, %s156
      %p162 = scmp.eq.s32.totalorder %s19, 0
      %p163 = por %p161, %p162
      %p164 = scmp.ne.s32.totalorder %s153, %s156
      %p165 = scmp.eq.s32.totalorder %s24, 5
      %p166 = por %p164, %p165
      %p167 = scmp.ne.s32.totalorder %s156, %s157
      %p168 = scmp.eq.s32.totalorder %s24, 0
      %p169 = por %p167, %p168
      %p170 = scmp.ne.s32.totalorder %s156, %s157
      %p171 = scmp.eq.s32.totalorder %s25, 5
      %p172 = por %p170, %p171
      %p174 = scmp.ne.s32.totalorder %s157, %s173
      %p175 = scmp.eq.s32.totalorder %s25, 0
      %p176 = por %p174, %p175
      %p177 = scmp.le.s32.totalorder 1, %s19
      %p178 = scmp.lt.s32.totalorder %s19, 7
      %p179 = pnand %p177, %p178
      %p180 = pneg %p179
      // Predicated region
      $region9: #{tpu_custom_call.1} parent=5 // pred_check
        _
      $region10: #{tpu_custom_call.1} parent=5 // pred_check_branch
        %182 = sbr.rel (%p179) target = $region12
      $region11: #{tpu_custom_call.1} parent=5 // pred_region
        %s183 = ssub.s32 %s19, 1
        // Predicated region
        $region13: #{tpu_custom_call.1} parent=11 // pred_check
          %p184 = pneg %p78
        $region14: #{tpu_custom_call.1} parent=11 // pred_check_branch
          %186 = sbr.rel (%p184) target = $region16
        $region15: #{tpu_custom_call.1} parent=11 // pred_region
          %s188 = ssub.s32 3072, 3072
          %189 = vsyncadd [#allocation6], %s188
          %s190 = sshll.u32 [#allocation5], 4
          %s191 = int_to_ptr.vmem [resolvable:$true] %s190
          %196 = dma.hbm_to_vmem [thread:$0]  %s1, 3072, %s191, [#allocation6], 64, 64, 4
        $region16: #{tpu_custom_call.1} parent=11 // pred_fallthru
          _
        // Predicated region
        $region17: #{tpu_custom_call.1} parent=11 // pred_check
          %p197 = pneg %p99
        $region18: #{tpu_custom_call.1} parent=11 // pred_check_branch
          %199 = sbr.rel (%p197) target = $region20
        $region19: #{tpu_custom_call.1} parent=11 // pred_region
          %s201 = ssub.s32 16, 16
          %202 = vsyncadd [#allocation6], %s201
          %s204 = sshll.u32 [#allocation7], 4
          %s205 = int_to_ptr.vmem [resolvable:$true] %s204
          %207 = dma.hbm_to_vmem [thread:$0]  %s2, 16, %s205, [#allocation6]
        $region20: #{tpu_custom_call.1} parent=11 // pred_fallthru
          _
        // Predicated region
        $region21: #{tpu_custom_call.1} parent=11 // pred_check
          %p208 = pneg %p120
        $region22: #{tpu_custom_call.1} parent=11 // pred_check_branch
          %210 = sbr.rel (%p208) target = $region24
        $region23: #{tpu_custom_call.1} parent=11 // pred_region
          %s212 = ssub.s32 3072, 3072
          %213 = vsyncadd [#allocation9], %s212
          %s214 = sshll.u32 [#allocation8], 4
          %s215 = int_to_ptr.vmem [resolvable:$true] %s214
          %220 = dma.hbm_to_vmem [thread:$0]  %s3, 3072, %s215, [#allocation9], 64, 64, 4
        $region24: #{tpu_custom_call.1} parent=11 // pred_fallthru
          _
        // Predicated region
        $region25: #{tpu_custom_call.1} parent=11 // pred_check
          %p221 = pneg %p141
        $region26: #{tpu_custom_call.1} parent=11 // pred_check_branch
          %223 = sbr.rel (%p221) target = $region28
        $region27: #{tpu_custom_call.1} parent=11 // pred_region
          %s225 = ssub.s32 16, 16
          %226 = vsyncadd [#allocation9], %s225
          %s228 = sshll.u32 [#allocation10], 4
          %s229 = int_to_ptr.vmem [resolvable:$true] %s228
          %231 = dma.hbm_to_vmem [thread:$0]  %s4, 16, %s229, [#allocation9]
        $region28: #{tpu_custom_call.1} parent=11 // pred_fallthru
          _
      $region12: #{tpu_custom_call.1} parent=5 // pred_fallthru
        _
      %p232 = scmp.lt.s32.totalorder %s19, 6
      // Predicated region
      $region29: #{tpu_custom_call.1} parent=5 // pred_check
        %p233 = pneg %p232
      $region30: #{tpu_custom_call.1} parent=5 // pred_check_branch
        %235 = sbr.rel (%p233) target = $region32
      $region31: #{tpu_custom_call.1} parent=5 // pred_region
        // Predicated region
        $region33: #{tpu_custom_call.1} parent=31 // pred_check
          %p236 = pneg %p51
        $region34: #{tpu_custom_call.1} parent=31 // pred_check_branch
          %238 = sbr.rel (%p236) target = $region36
        $region35: #{tpu_custom_call.1} parent=31 // pred_region
          %s239 = sand.u32 %s41, 1
          %s240 = scalar_lea.sflag [#allocation3], %s239
          %s241 = sand.u32 %s41, 1
          %s242 = smul.addr %s241, 3088
          %s243 = scalar_lea.vmem [#allocation2], %s242
          %s245 = ssub.s32 49408, 49408
          %246 = vsyncadd %s240, %s245
          %s247 = smul.addr %s26, 386
          %s248 = smul.addr %s247, 128
          %s249 = scalar_lea.hbm %s0, %s248
          %s250 = sshll.u32 %s243, 4
          %s251 = int_to_ptr.vmem [resolvable:$true] %s250
          %256 = dma.hbm_to_vmem [thread:$0]  %s249, 49408, %s251, %s240, 128, 128, 8
        $region36: #{tpu_custom_call.1} parent=31 // pred_fallthru
          _
      $region32: #{tpu_custom_call.1} parent=5 // pred_fallthru
        _
      %p257 = scmp.le.s32.totalorder 1, %s19
      %p258 = scmp.lt.s32.totalorder %s19, 7
      %p259 = pnand %p257, %p258
      %p260 = pneg %p259
      // Predicated region
      $region37: #{tpu_custom_call.1} parent=5 // pred_check
        _
      $region38: #{tpu_custom_call.1} parent=5 // pred_check_branch
        %262 = sbr.rel (%p259) target = $region40
      $region39: #{tpu_custom_call.1} parent=5 // pred_region
        %s263 = ssub.s32 %s19, 1
        %s264 = sand.u32 %s44, 1
        %s265 = scalar_lea.sflag [#allocation3], %s264
        %s266 = sand.u32 %s44, 1
        %s267 = smul.addr %s266, 3088
        %s268 = scalar_lea.vmem [#allocation2], %s267
        // Predicated region
        $region41: #{tpu_custom_call.1} parent=39 // pred_check
          %p269 = pneg %p57
        $region42: #{tpu_custom_call.1} parent=39 // pred_check_branch
          %271 = sbr.rel (%p269) target = $region44
        $region43: #{tpu_custom_call.1} parent=39 // pred_region
          %272 = dma.done %s265, 49408
        $region44: #{tpu_custom_call.1} parent=39 // pred_fallthru
          _
        // Predicated region
        $region45: #{tpu_custom_call.1} parent=39 // pred_check
          %p273 = pneg %p78
        $region46: #{tpu_custom_call.1} parent=39 // pred_check_branch
          %275 = sbr.rel (%p273) target = $region48
        $region47: #{tpu_custom_call.1} parent=39 // pred_region
          %276 = dma.done [#allocation6], 3072
        $region48: #{tpu_custom_call.1} parent=39 // pred_fallthru
          _
        // Predicated region
        $region49: #{tpu_custom_call.1} parent=39 // pred_check
          %p277 = pneg %p99
        $region50: #{tpu_custom_call.1} parent=39 // pred_check_branch
          %279 = sbr.rel (%p277) target = $region52
        $region51: #{tpu_custom_call.1} parent=39 // pred_region
          %280 = dma.done [#allocation6], 16
        $region52: #{tpu_custom_call.1} parent=39 // pred_fallthru
          _
        // Predicated region
        $region53: #{tpu_custom_call.1} parent=39 // pred_check
          %p281 = pneg %p120
        $region54: #{tpu_custom_call.1} parent=39 // pred_check_branch
          %283 = sbr.rel (%p281) target = $region56
        $region55: #{tpu_custom_call.1} parent=39 // pred_region
          %284 = dma.done [#allocation9], 3072
        $region56: #{tpu_custom_call.1} parent=39 // pred_fallthru
          _
        // Predicated region
        $region57: #{tpu_custom_call.1} parent=39 // pred_check
          %p285 = pneg %p141
        $region58: #{tpu_custom_call.1} parent=39 // pred_check_branch
          %287 = sbr.rel (%p285) target = $region60
        $region59: #{tpu_custom_call.1} parent=39 // pred_region
          %288 = dma.done [#allocation9], 16
        $region60: #{tpu_custom_call.1} parent=39 // pred_fallthru
          _
        %s289 = sand.u32 %s44, 1
        %s290 = scalar_lea.sflag [#allocation3], %s289
        %s291 = sand.u32 %s44, 1
        %s292 = smul.addr %s291, 3088
        %s293 = scalar_lea.vmem [#allocation2], %s292
        %p294 = pneg %p57
        %p295 = pneg %p54
        %p296 = pneg %p78
        %p297 = pneg %p75
        %p298 = pneg %p99
        %p299 = pneg %p96
        %p300 = pneg %p120
        %p301 = pneg %p117
        %p302 = pneg %p141
        %p303 = pneg %p138
        %p304 = pneg %p169
        %p305 = pneg %p166
        %s306 = sand.u32 %s156, 1
        %s307 = scalar_lea.sflag [#allocation4], %s306
        %s308 = sand.u32 %s156, 1
        %s309 = smul.addr %s308, 1024
        %s310 = scalar_lea.vmem [#allocation11], %s309
        %s311 = smul.u32 128, %s29
        %s313 = smul.u32 %s29, 1024
        %s314 = sadd.s32 %s313, 8
        %s315 = ssub.s32 %s314, 2
        %s316 = scalar_lea.vmem %s268, %s315 [#allocation2]
        %v317 = vld [vmem:[%s316] sm:$0xff]
        %v318 = vld [vmem:[%s316 + $0x8] sm:$0xff]
        %v319 = vld [vmem:[%s316 + $0x10] sm:$0xff]
        %v320 = vld [vmem:[%s316 + $0x18] sm:$0xff]
        %v321 = vld [vmem:[%s316 + $0x20] sm:$0xff]
        %v322 = vld [vmem:[%s316 + $0x28] sm:$0xff]
        %v323 = vld [vmem:[%s316 + $0x30] sm:$0xff]
        %v324 = vld [vmem:[%s316 + $0x38] sm:$0xff]
        %v325 = vld [vmem:[%s316 + $0x40] sm:$0xff]
        %v326 = vld [vmem:[%s316 + $0x48] sm:$0xff]
        %v327 = vld [vmem:[%s316 + $0x50] sm:$0xff]
        %v328 = vld [vmem:[%s316 + $0x58] sm:$0xff]
        %v329 = vld [vmem:[%s316 + $0x60] sm:$0xff]
        %v330 = vld [vmem:[%s316 + $0x68] sm:$0xff]
        %v331 = vld [vmem:[%s316 + $0x70] sm:$0xff]
        %v332 = vld [vmem:[%s316 + $0x78] sm:$0xff]
        %v333 = vld [vmem:[%s316 + $0x80] sm:$0xff]
        %v334 = vld [vmem:[%s316 + $0x88] sm:$0xff]
        %v335 = vld [vmem:[%s316 + $0x90] sm:$0xff]
        %v336 = vld [vmem:[%s316 + $0x98] sm:$0xff]
        %v337 = vld [vmem:[%s316 + $0xa0] sm:$0xff]
        %v338 = vld [vmem:[%s316 + $0xa8] sm:$0xff]
        %v339 = vld [vmem:[%s316 + $0xb0] sm:$0xff]
        %v340 = vld [vmem:[%s316 + $0xb8] sm:$0xff]
        %v341 = vld [vmem:[%s316 + $0xc0] sm:$0xff]
        %v342 = vld [vmem:[%s316 + $0xc8] sm:$0xff]
        %v343 = vld [vmem:[%s316 + $0xd0] sm:$0xff]
        %v344 = vld [vmem:[%s316 + $0xd8] sm:$0xff]
        %v345 = vld [vmem:[%s316 + $0xe0] sm:$0xff]
        %v346 = vld [vmem:[%s316 + $0xe8] sm:$0xff]
        %v347 = vld [vmem:[%s316 + $0xf0] sm:$0xff]
        %v348 = vld [vmem:[%s316 + $0xf8] sm:$0xff]
        %v349 = vld [vmem:[%s316 + $0x100] sm:$0xff]
        %v350 = vld [vmem:[%s316 + $0x108] sm:$0xff]
        %v351 = vld [vmem:[%s316 + $0x110] sm:$0xff]
        %v352 = vld [vmem:[%s316 + $0x118] sm:$0xff]
        %v353 = vld [vmem:[%s316 + $0x120] sm:$0xff]
        %v354 = vld [vmem:[%s316 + $0x128] sm:$0xff]
        %v355 = vld [vmem:[%s316 + $0x130] sm:$0xff]
        %v356 = vld [vmem:[%s316 + $0x138] sm:$0xff]
        %v357 = vld [vmem:[%s316 + $0x140] sm:$0xff]
        %v358 = vld [vmem:[%s316 + $0x148] sm:$0xff]
        %v359 = vld [vmem:[%s316 + $0x150] sm:$0xff]
        %v360 = vld [vmem:[%s316 + $0x158] sm:$0xff]
        %v361 = vld [vmem:[%s316 + $0x160] sm:$0xff]
        %v362 = vld [vmem:[%s316 + $0x168] sm:$0xff]
        %v363 = vld [vmem:[%s316 + $0x170] sm:$0xff]
        %v364 = vld [vmem:[%s316 + $0x178] sm:$0xff]
        %v365 = vld [vmem:[%s316 + $0x180] sm:$0xff]
        %v366 = vld [vmem:[%s316 + $0x188] sm:$0xff]
        %v367 = vld [vmem:[%s316 + $0x190] sm:$0xff]
        %v368 = vld [vmem:[%s316 + $0x198] sm:$0xff]
        %v369 = vld [vmem:[%s316 + $0x1a0] sm:$0xff]
        %v370 = vld [vmem:[%s316 + $0x1a8] sm:$0xff]
        %v371 = vld [vmem:[%s316 + $0x1b0] sm:$0xff]
        %v372 = vld [vmem:[%s316 + $0x1b8] sm:$0xff]
        %v373 = vld [vmem:[%s316 + $0x1c0] sm:$0xff]
        %v374 = vld [vmem:[%s316 + $0x1c8] sm:$0xff]
        %v375 = vld [vmem:[%s316 + $0x1d0] sm:$0xff]
        %v376 = vld [vmem:[%s316 + $0x1d8] sm:$0xff]
        %v377 = vld [vmem:[%s316 + $0x1e0] sm:$0xff]
        %v378 = vld [vmem:[%s316 + $0x1e8] sm:$0xff]
        %v379 = vld [vmem:[%s316 + $0x1f0] sm:$0xff]
        %v380 = vld [vmem:[%s316 + $0x1f8] sm:$0xff]
        %v381 = vld [vmem:[%s316 + $0x200] sm:$0xff]
        %v382 = vld [vmem:[%s316 + $0x208] sm:$0xff]
        %v383 = vld [vmem:[%s316 + $0x210] sm:$0xff]
        %v384 = vld [vmem:[%s316 + $0x218] sm:$0xff]
        %v385 = vld [vmem:[%s316 + $0x220] sm:$0xff]
        %v386 = vld [vmem:[%s316 + $0x228] sm:$0xff]
        %v387 = vld [vmem:[%s316 + $0x230] sm:$0xff]
        %v388 = vld [vmem:[%s316 + $0x238] sm:$0xff]
        %v389 = vld [vmem:[%s316 + $0x240] sm:$0xff]
        %v390 = vld [vmem:[%s316 + $0x248] sm:$0xff]
        %v391 = vld [vmem:[%s316 + $0x250] sm:$0xff]
        %v392 = vld [vmem:[%s316 + $0x258] sm:$0xff]
        %v393 = vld [vmem:[%s316 + $0x260] sm:$0xff]
        %v394 = vld [vmem:[%s316 + $0x268] sm:$0xff]
        %v395 = vld [vmem:[%s316 + $0x270] sm:$0xff]
        %v396 = vld [vmem:[%s316 + $0x278] sm:$0xff]
        %v397 = vld [vmem:[%s316 + $0x280] sm:$0xff]
        %v398 = vld [vmem:[%s316 + $0x288] sm:$0xff]
        %v399 = vld [vmem:[%s316 + $0x290] sm:$0xff]
        %v400 = vld [vmem:[%s316 + $0x298] sm:$0xff]
        %v401 = vld [vmem:[%s316 + $0x2a0] sm:$0xff]
        %v402 = vld [vmem:[%s316 + $0x2a8] sm:$0xff]
        %v403 = vld [vmem:[%s316 + $0x2b0] sm:$0xff]
        %v404 = vld [vmem:[%s316 + $0x2b8] sm:$0xff]
        %v405 = vld [vmem:[%s316 + $0x2c0] sm:$0xff]
        %v406 = vld [vmem:[%s316 + $0x2c8] sm:$0xff]
        %v407 = vld [vmem:[%s316 + $0x2d0] sm:$0xff]
        %v408 = vld [vmem:[%s316 + $0x2d8] sm:$0xff]
        %v409 = vld [vmem:[%s316 + $0x2e0] sm:$0xff]
        %v410 = vld [vmem:[%s316 + $0x2e8] sm:$0xff]
        %v411 = vld [vmem:[%s316 + $0x2f0] sm:$0xff]
        %v412 = vld [vmem:[%s316 + $0x2f8] sm:$0xff]
        %v413 = vld [vmem:[%s316 + $0x300] sm:$0xff]
        %v414 = vld [vmem:[%s316 + $0x308] sm:$0xff]
        %v415 = vld [vmem:[%s316 + $0x310] sm:$0xff]
        %v416 = vld [vmem:[%s316 + $0x318] sm:$0xff]
        %v417 = vld [vmem:[%s316 + $0x320] sm:$0xff]
        %v418 = vld [vmem:[%s316 + $0x328] sm:$0xff]
        %v419 = vld [vmem:[%s316 + $0x330] sm:$0xff]
        %v420 = vld [vmem:[%s316 + $0x338] sm:$0xff]
        %v421 = vld [vmem:[%s316 + $0x340] sm:$0xff]
        %v422 = vld [vmem:[%s316 + $0x348] sm:$0xff]
        %v423 = vld [vmem:[%s316 + $0x350] sm:$0xff]
        %v424 = vld [vmem:[%s316 + $0x358] sm:$0xff]
        %v425 = vld [vmem:[%s316 + $0x360] sm:$0xff]
        %v426 = vld [vmem:[%s316 + $0x368] sm:$0xff]
        %v427 = vld [vmem:[%s316 + $0x370] sm:$0xff]
        %v428 = vld [vmem:[%s316 + $0x378] sm:$0xff]
        %v429 = vld [vmem:[%s316 + $0x380] sm:$0xff]
        %v430 = vld [vmem:[%s316 + $0x388] sm:$0xff]
        %v431 = vld [vmem:[%s316 + $0x390] sm:$0xff]
        %v432 = vld [vmem:[%s316 + $0x398] sm:$0xff]
        %v433 = vld [vmem:[%s316 + $0x3a0] sm:$0xff]
        %v434 = vld [vmem:[%s316 + $0x3a8] sm:$0xff]
        %v435 = vld [vmem:[%s316 + $0x3b0] sm:$0xff]
        %v436 = vld [vmem:[%s316 + $0x3b8] sm:$0xff]
        %v437 = vld [vmem:[%s316 + $0x3c0] sm:$0xff]
        %v438 = vld [vmem:[%s316 + $0x3c8] sm:$0xff]
        %v439 = vld [vmem:[%s316 + $0x3d0] sm:$0xff]
        %v440 = vld [vmem:[%s316 + $0x3d8] sm:$0xff]
        %v441 = vld [vmem:[%s316 + $0x3e0] sm:$0xff]
        %v442 = vld [vmem:[%s316 + $0x3e8] sm:$0xff]
        %v443 = vld [vmem:[%s316 + $0x3f0] sm:$0xff]
        %v444 = vld [vmem:[%s316 + $0x3f8] sm:$0xff]
        %v445 = vld [vmem:[%s316 + $0x400] sm:$0x3]
        %v446 = vpack.c.bf16 %v318, %v317
        %v447 = vpack.c.bf16 %v320, %v319
        %v448 = vpack.c.bf16 %v322, %v321
        %v449 = vpack.c.bf16 %v324, %v323
        %v450 = vpack.c.bf16 %v326, %v325
        %v451 = vpack.c.bf16 %v328, %v327
        %v452 = vpack.c.bf16 %v330, %v329
        %v453 = vpack.c.bf16 %v332, %v331
        %v454 = vpack.c.bf16 %v334, %v333
        %v455 = vpack.c.bf16 %v336, %v335
        %v456 = vpack.c.bf16 %v338, %v337
        %v457 = vpack.c.bf16 %v340, %v339
        %v458 = vpack.c.bf16 %v342, %v341
        %v459 = vpack.c.bf16 %v344, %v343
        %v460 = vpack.c.bf16 %v346, %v345
        %v461 = vpack.c.bf16 %v348, %v347
        %v462 = vpack.c.bf16 %v350, %v349
        %v463 = vpack.c.bf16 %v352, %v351
        %v464 = vpack.c.bf16 %v354, %v353
        %v465 = vpack.c.bf16 %v356, %v355
        %v466 = vpack.c.bf16 %v358, %v357
        %v467 = vpack.c.bf16 %v360, %v359
        %v468 = vpack.c.bf16 %v362, %v361
        %v469 = vpack.c.bf16 %v364, %v363
        %v470 = vpack.c.bf16 %v366, %v365
        %v471 = vpack.c.bf16 %v368, %v367
        %v472 = vpack.c.bf16 %v370, %v369
        %v473 = vpack.c.bf16 %v372, %v371
        %v474 = vpack.c.bf16 %v374, %v373
        %v475 = vpack.c.bf16 %v376, %v375
        %v476 = vpack.c.bf16 %v378, %v377
        %v477 = vpack.c.bf16 %v380, %v379
        %v478 = vpack.c.bf16 %v382, %v381
        %v479 = vpack.c.bf16 %v384, %v383
        %v480 = vpack.c.bf16 %v386, %v385
        %v481 = vpack.c.bf16 %v388, %v387
        %v482 = vpack.c.bf16 %v390, %v389
        %v483 = vpack.c.bf16 %v392, %v391
        %v484 = vpack.c.bf16 %v394, %v393
        %v485 = vpack.c.bf16 %v396, %v395
        %v486 = vpack.c.bf16 %v398, %v397
        %v487 = vpack.c.bf16 %v400, %v399
        %v488 = vpack.c.bf16 %v402, %v401
        %v489 = vpack.c.bf16 %v404, %v403
        %v490 = vpack.c.bf16 %v406, %v405
        %v491 = vpack.c.bf16 %v408, %v407
        %v492 = vpack.c.bf16 %v410, %v409
        %v493 = vpack.c.bf16 %v412, %v411
        %v494 = vpack.c.bf16 %v414, %v413
        %v495 = vpack.c.bf16 %v416, %v415
        %v496 = vpack.c.bf16 %v418, %v417
        %v497 = vpack.c.bf16 %v420, %v419
        %v498 = vpack.c.bf16 %v422, %v421
        %v499 = vpack.c.bf16 %v424, %v423
        %v500 = vpack.c.bf16 %v426, %v425
        %v501 = vpack.c.bf16 %v428, %v427
        %v502 = vpack.c.bf16 %v430, %v429
        %v503 = vpack.c.bf16 %v432, %v431
        %v504 = vpack.c.bf16 %v434, %v433
        %v505 = vpack.c.bf16 %v436, %v435
        %v506 = vpack.c.bf16 %v438, %v437
        %v507 = vpack.c.bf16 %v440, %v439
        %v508 = vpack.c.bf16 %v442, %v441
        %v509 = vpack.c.bf16 %v444, %v443
        %v510 = vpack.c.bf16 %v445, %v445
        %s511 = ssub.s32 %s314, 1
        %s512 = scalar_lea.vmem %s268, %s511 [#allocation2]
        %v513 = vld [vmem:[%s512] sm:$0xff]
        %v514 = vld [vmem:[%s512 + $0x8] sm:$0xff]
        %v515 = vld [vmem:[%s512 + $0x10] sm:$0xff]
        %v516 = vld [vmem:[%s512 + $0x18] sm:$0xff]
        %v517 = vld [vmem:[%s512 + $0x20] sm:$0xff]
        %v518 = vld [vmem:[%s512 + $0x28] sm:$0xff]
        %v519 = vld [vmem:[%s512 + $0x30] sm:$0xff]
        %v520 = vld [vmem:[%s512 + $0x38] sm:$0xff]
        %v521 = vld [vmem:[%s512 + $0x40] sm:$0xff]
        %v522 = vld [vmem:[%s512 + $0x48] sm:$0xff]
        %v523 = vld [vmem:[%s512 + $0x50] sm:$0xff]
        %v524 = vld [vmem:[%s512 + $0x58] sm:$0xff]
        %v525 = vld [vmem:[%s512 + $0x60] sm:$0xff]
        %v526 = vld [vmem:[%s512 + $0x68] sm:$0xff]
        %v527 = vld [vmem:[%s512 + $0x70] sm:$0xff]
        %v528 = vld [vmem:[%s512 + $0x78] sm:$0xff]
        %v529 = vld [vmem:[%s512 + $0x80] sm:$0xff]
        %v530 = vld [vmem:[%s512 + $0x88] sm:$0xff]
        %v531 = vld [vmem:[%s512 + $0x90] sm:$0xff]
        %v532 = vld [vmem:[%s512 + $0x98] sm:$0xff]
        %v533 = vld [vmem:[%s512 + $0xa0] sm:$0xff]
        %v534 = vld [vmem:[%s512 + $0xa8] sm:$0xff]
        %v535 = vld [vmem:[%s512 + $0xb0] sm:$0xff]
        %v536 = vld [vmem:[%s512 + $0xb8] sm:$0xff]
        %v537 = vld [vmem:[%s512 + $0xc0] sm:$0xff]
        %v538 = vld [vmem:[%s512 + $0xc8] sm:$0xff]
        %v539 = vld [vmem:[%s512 + $0xd0] sm:$0xff]
        %v540 = vld [vmem:[%s512 + $0xd8] sm:$0xff]
        %v541 = vld [vmem:[%s512 + $0xe0] sm:$0xff]
        %v542 = vld [vmem:[%s512 + $0xe8] sm:$0xff]
        %v543 = vld [vmem:[%s512 + $0xf0] sm:$0xff]
        %v544 = vld [vmem:[%s512 + $0xf8] sm:$0xff]
        %v545 = vld [vmem:[%s512 + $0x100] sm:$0xff]
        %v546 = vld [vmem:[%s512 + $0x108] sm:$0xff]
        %v547 = vld [vmem:[%s512 + $0x110] sm:$0xff]
        %v548 = vld [vmem:[%s512 + $0x118] sm:$0xff]
        %v549 = vld [vmem:[%s512 + $0x120] sm:$0xff]
        %v550 = vld [vmem:[%s512 + $0x128] sm:$0xff]
        %v551 = vld [vmem:[%s512 + $0x130] sm:$0xff]
        %v552 = vld [vmem:[%s512 + $0x138] sm:$0xff]
        %v553 = vld [vmem:[%s512 + $0x140] sm:$0xff]
        %v554 = vld [vmem:[%s512 + $0x148] sm:$0xff]
        %v555 = vld [vmem:[%s512 + $0x150] sm:$0xff]
        %v556 = vld [vmem:[%s512 + $0x158] sm:$0xff]
        %v557 = vld [vmem:[%s512 + $0x160] sm:$0xff]
        %v558 = vld [vmem:[%s512 + $0x168] sm:$0xff]
        %v559 = vld [vmem:[%s512 + $0x170] sm:$0xff]
        %v560 = vld [vmem:[%s512 + $0x178] sm:$0xff]
        %v561 = vld [vmem:[%s512 + $0x180] sm:$0xff]
        %v562 = vld [vmem:[%s512 + $0x188] sm:$0xff]
        %v563 = vld [vmem:[%s512 + $0x190] sm:$0xff]
        %v564 = vld [vmem:[%s512 + $0x198] sm:$0xff]
        %v565 = vld [vmem:[%s512 + $0x1a0] sm:$0xff]
        %v566 = vld [vmem:[%s512 + $0x1a8] sm:$0xff]
        %v567 = vld [vmem:[%s512 + $0x1b0] sm:$0xff]
        %v568 = vld [vmem:[%s512 + $0x1b8] sm:$0xff]
        %v569 = vld [vmem:[%s512 + $0x1c0] sm:$0xff]
        %v570 = vld [vmem:[%s512 + $0x1c8] sm:$0xff]
        %v571 = vld [vmem:[%s512 + $0x1d0] sm:$0xff]
        %v572 = vld [vmem:[%s512 + $0x1d8] sm:$0xff]
        %v573 = vld [vmem:[%s512 + $0x1e0] sm:$0xff]
        %v574 = vld [vmem:[%s512 + $0x1e8] sm:$0xff]
        %v575 = vld [vmem:[%s512 + $0x1f0] sm:$0xff]
        %v576 = vld [vmem:[%s512 + $0x1f8] sm:$0xff]
        %v577 = vld [vmem:[%s512 + $0x200] sm:$0xff]
        %v578 = vld [vmem:[%s512 + $0x208] sm:$0xff]
        %v579 = vld [vmem:[%s512 + $0x210] sm:$0xff]
        %v580 = vld [vmem:[%s512 + $0x218] sm:$0xff]
        %v581 = vld [vmem:[%s512 + $0x220] sm:$0xff]
        %v582 = vld [vmem:[%s512 + $0x228] sm:$0xff]
        %v583 = vld [vmem:[%s512 + $0x230] sm:$0xff]
        %v584 = vld [vmem:[%s512 + $0x238] sm:$0xff]
        %v585 = vld [vmem:[%s512 + $0x240] sm:$0xff]
        %v586 = vld [vmem:[%s512 + $0x248] sm:$0xff]
        %v587 = vld [vmem:[%s512 + $0x250] sm:$0xff]
        %v588 = vld [vmem:[%s512 + $0x258] sm:$0xff]
        %v589 = vld [vmem:[%s512 + $0x260] sm:$0xff]
        %v590 = vld [vmem:[%s512 + $0x268] sm:$0xff]
        %v591 = vld [vmem:[%s512 + $0x270] sm:$0xff]
        %v592 = vld [vmem:[%s512 + $0x278] sm:$0xff]
        %v593 = vld [vmem:[%s512 + $0x280] sm:$0xff]
        %v594 = vld [vmem:[%s512 + $0x288] sm:$0xff]
        %v595 = vld [vmem:[%s512 + $0x290] sm:$0xff]
        %v596 = vld [vmem:[%s512 + $0x298] sm:$0xff]
        %v597 = vld [vmem:[%s512 + $0x2a0] sm:$0xff]
        %v598 = vld [vmem:[%s512 + $0x2a8] sm:$0xff]
        %v599 = vld [vmem:[%s512 + $0x2b0] sm:$0xff]
        %v600 = vld [vmem:[%s512 + $0x2b8] sm:$0xff]
        %v601 = vld [vmem:[%s512 + $0x2c0] sm:$0xff]
        %v602 = vld [vmem:[%s512 + $0x2c8] sm:$0xff]
        %v603 = vld [vmem:[%s512 + $0x2d0] sm:$0xff]
        %v604 = vld [vmem:[%s512 + $0x2d8] sm:$0xff]
        %v605 = vld [vmem:[%s512 + $0x2e0] sm:$0xff]
        %v606 = vld [vmem:[%s512 + $0x2e8] sm:$0xff]
        %v607 = vld [vmem:[%s512 + $0x2f0] sm:$0xff]
        %v608 = vld [vmem:[%s512 + $0x2f8] sm:$0xff]
        %v609 = vld [vmem:[%s512 + $0x300] sm:$0xff]
        %v610 = vld [vmem:[%s512 + $0x308] sm:$0xff]
        %v611 = vld [vmem:[%s512 + $0x310] sm:$0xff]
        %v612 = vld [vmem:[%s512 + $0x318] sm:$0xff]
        %v613 = vld [vmem:[%s512 + $0x320] sm:$0xff]
        %v614 = vld [vmem:[%s512 + $0x328] sm:$0xff]
        %v615 = vld [vmem:[%s512 + $0x330] sm:$0xff]
        %v616 = vld [vmem:[%s512 + $0x338] sm:$0xff]
        %v617 = vld [vmem:[%s512 + $0x340] sm:$0xff]
        %v618 = vld [vmem:[%s512 + $0x348] sm:$0xff]
        %v619 = vld [vmem:[%s512 + $0x350] sm:$0xff]
        %v620 = vld [vmem:[%s512 + $0x358] sm:$0xff]
        %v621 = vld [vmem:[%s512 + $0x360] sm:$0xff]
        %v622 = vld [vmem:[%s512 + $0x368] sm:$0xff]
        %v623 = vld [vmem:[%s512 + $0x370] sm:$0xff]
        %v624 = vld [vmem:[%s512 + $0x378] sm:$0xff]
        %v625 = vld [vmem:[%s512 + $0x380] sm:$0xff]
        %v626 = vld [vmem:[%s512 + $0x388] sm:$0xff]
        %v627 = vld [vmem:[%s512 + $0x390] sm:$0xff]
        %v628 = vld [vmem:[%s512 + $0x398] sm:$0xff]
        %v629 = vld [vmem:[%s512 + $0x3a0] sm:$0xff]
        %v630 = vld [vmem:[%s512 + $0x3a8] sm:$0xff]
        %v631 = vld [vmem:[%s512 + $0x3b0] sm:$0xff]
        %v632 = vld [vmem:[%s512 + $0x3b8] sm:$0xff]
        %v633 = vld [vmem:[%s512 + $0x3c0] sm:$0xff]
        %v634 = vld [vmem:[%s512 + $0x3c8] sm:$0xff]
        %v635 = vld [vmem:[%s512 + $0x3d0] sm:$0xff]
        %v636 = vld [vmem:[%s512 + $0x3d8] sm:$0xff]
        %v637 = vld [vmem:[%s512 + $0x3e0] sm:$0xff]
        %v638 = vld [vmem:[%s512 + $0x3e8] sm:$0xff]
        %v639 = vld [vmem:[%s512 + $0x3f0] sm:$0xff]
        %v640 = vld [vmem:[%s512 + $0x3f8] sm:$0xff]
        %v641 = vld [vmem:[%s512 + $0x400] sm:$0x3]
        %v642 = vpack.c.bf16 %v514, %v513
        %v643 = vpack.c.bf16 %v516, %v515
        %v644 = vpack.c.bf16 %v518, %v517
        %v645 = vpack.c.bf16 %v520, %v519
        %v646 = vpack.c.bf16 %v522, %v521
        %v647 = vpack.c.bf16 %v524, %v523
        %v648 = vpack.c.bf16 %v526, %v525
        %v649 = vpack.c.bf16 %v528, %v527
        %v650 = vpack.c.bf16 %v530, %v529
        %v651 = vpack.c.bf16 %v532, %v531
        %v652 = vpack.c.bf16 %v534, %v533
        %v653 = vpack.c.bf16 %v536, %v535
        %v654 = vpack.c.bf16 %v538, %v537
        %v655 = vpack.c.bf16 %v540, %v539
        %v656 = vpack.c.bf16 %v542, %v541
        %v657 = vpack.c.bf16 %v544, %v543
        %v658 = vpack.c.bf16 %v546, %v545
        %v659 = vpack.c.bf16 %v548, %v547
        %v660 = vpack.c.bf16 %v550, %v549
        %v661 = vpack.c.bf16 %v552, %v551
        %v662 = vpack.c.bf16 %v554, %v553
        %v663 = vpack.c.bf16 %v556, %v555
        %v664 = vpack.c.bf16 %v558, %v557
        %v665 = vpack.c.bf16 %v560, %v559
        %v666 = vpack.c.bf16 %v562, %v561
        %v667 = vpack.c.bf16 %v564, %v563
        %v668 = vpack.c.bf16 %v566, %v565
        %v669 = vpack.c.bf16 %v568, %v567
        %v670 = vpack.c.bf16 %v570, %v569
        %v671 = vpack.c.bf16 %v572, %v571
        %v672 = vpack.c.bf16 %v574, %v573
        %v673 = vpack.c.bf16 %v576, %v575
        %v674 = vpack.c.bf16 %v578, %v577
        %v675 = vpack.c.bf16 %v580, %v579
        %v676 = vpack.c.bf16 %v582, %v581
        %v677 = vpack.c.bf16 %v584, %v583
        %v678 = vpack.c.bf16 %v586, %v585
        %v679 = vpack.c.bf16 %v588, %v587
        %v680 = vpack.c.bf16 %v590, %v589
        %v681 = vpack.c.bf16 %v592, %v591
        %v682 = vpack.c.bf16 %v594, %v593
        %v683 = vpack.c.bf16 %v596, %v595
        %v684 = vpack.c.bf16 %v598, %v597
        %v685 = vpack.c.bf16 %v600, %v599
        %v686 = vpack.c.bf16 %v602, %v601
        %v687 = vpack.c.bf16 %v604, %v603
        %v688 = vpack.c.bf16 %v606, %v605
        %v689 = vpack.c.bf16 %v608, %v607
        %v690 = vpack.c.bf16 %v610, %v609
        %v691 = vpack.c.bf16 %v612, %v611
        %v692 = vpack.c.bf16 %v614, %v613
        %v693 = vpack.c.bf16 %v616, %v615
        %v694 = vpack.c.bf16 %v618, %v617
        %v695 = vpack.c.bf16 %v620, %v619
        %v696 = vpack.c.bf16 %v622, %v621
        %v697 = vpack.c.bf16 %v624, %v623
        %v698 = vpack.c.bf16 %v626, %v625
        %v699 = vpack.c.bf16 %v628, %v627
        %v700 = vpack.c.bf16 %v630, %v629
        %v701 = vpack.c.bf16 %v632, %v631
        %v702 = vpack.c.bf16 %v634, %v633
        %v703 = vpack.c.bf16 %v636, %v635
        %v704 = vpack.c.bf16 %v638, %v637
        %v705 = vpack.c.bf16 %v640, %v639
        %v706 = vpack.c.bf16 %v641, %v641
        %s707 = scalar_lea.vmem %s268, %s314 [#allocation2]
        %v708 = vld [vmem:[%s707] sm:$0xff]
        %v709 = vld [vmem:[%s707 + $0x8] sm:$0xff]
        %v710 = vld [vmem:[%s707 + $0x10] sm:$0xff]
        %v711 = vld [vmem:[%s707 + $0x18] sm:$0xff]
        %v712 = vld [vmem:[%s707 + $0x20] sm:$0xff]
        %v713 = vld [vmem:[%s707 + $0x28] sm:$0xff]
        %v714 = vld [vmem:[%s707 + $0x30] sm:$0xff]
        %v715 = vld [vmem:[%s707 + $0x38] sm:$0xff]
        %v716 = vld [vmem:[%s707 + $0x40] sm:$0xff]
        %v717 = vld [vmem:[%s707 + $0x48] sm:$0xff]
        %v718 = vld [vmem:[%s707 + $0x50] sm:$0xff]
        %v719 = vld [vmem:[%s707 + $0x58] sm:$0xff]
        %v720 = vld [vmem:[%s707 + $0x60] sm:$0xff]
        %v721 = vld [vmem:[%s707 + $0x68] sm:$0xff]
        %v722 = vld [vmem:[%s707 + $0x70] sm:$0xff]
        %v723 = vld [vmem:[%s707 + $0x78] sm:$0xff]
        %v724 = vld [vmem:[%s707 + $0x80] sm:$0xff]
        %v725 = vld [vmem:[%s707 + $0x88] sm:$0xff]
        %v726 = vld [vmem:[%s707 + $0x90] sm:$0xff]
        %v727 = vld [vmem:[%s707 + $0x98] sm:$0xff]
        %v728 = vld [vmem:[%s707 + $0xa0] sm:$0xff]
        %v729 = vld [vmem:[%s707 + $0xa8] sm:$0xff]
        %v730 = vld [vmem:[%s707 + $0xb0] sm:$0xff]
        %v731 = vld [vmem:[%s707 + $0xb8] sm:$0xff]
        %v732 = vld [vmem:[%s707 + $0xc0] sm:$0xff]
        %v733 = vld [vmem:[%s707 + $0xc8] sm:$0xff]
        %v734 = vld [vmem:[%s707 + $0xd0] sm:$0xff]
        %v735 = vld [vmem:[%s707 + $0xd8] sm:$0xff]
        %v736 = vld [vmem:[%s707 + $0xe0] sm:$0xff]
        %v737 = vld [vmem:[%s707 + $0xe8] sm:$0xff]
        %v738 = vld [vmem:[%s707 + $0xf0] sm:$0xff]
        %v739 = vld [vmem:[%s707 + $0xf8] sm:$0xff]
        %v740 = vld [vmem:[%s707 + $0x100] sm:$0xff]
        %v741 = vld [vmem:[%s707 + $0x108] sm:$0xff]
        %v742 = vld [vmem:[%s707 + $0x110] sm:$0xff]
        %v743 = vld [vmem:[%s707 + $0x118] sm:$0xff]
        %v744 = vld [vmem:[%s707 + $0x120] sm:$0xff]
        %v745 = vld [vmem:[%s707 + $0x128] sm:$0xff]
        %v746 = vld [vmem:[%s707 + $0x130] sm:$0xff]
        %v747 = vld [vmem:[%s707 + $0x138] sm:$0xff]
        %v748 = vld [vmem:[%s707 + $0x140] sm:$0xff]
        %v749 = vld [vmem:[%s707 + $0x148] sm:$0xff]
        %v750 = vld [vmem:[%s707 + $0x150] sm:$0xff]
        %v751 = vld [vmem:[%s707 + $0x158] sm:$0xff]
        %v752 = vld [vmem:[%s707 + $0x160] sm:$0xff]
        %v753 = vld [vmem:[%s707 + $0x168] sm:$0xff]
        %v754 = vld [vmem:[%s707 + $0x170] sm:$0xff]
        %v755 = vld [vmem:[%s707 + $0x178] sm:$0xff]
        %v756 = vld [vmem:[%s707 + $0x180] sm:$0xff]
        %v757 = vld [vmem:[%s707 + $0x188] sm:$0xff]
        %v758 = vld [vmem:[%s707 + $0x190] sm:$0xff]
        %v759 = vld [vmem:[%s707 + $0x198] sm:$0xff]
        %v760 = vld [vmem:[%s707 + $0x1a0] sm:$0xff]
        %v761 = vld [vmem:[%s707 + $0x1a8] sm:$0xff]
        %v762 = vld [vmem:[%s707 + $0x1b0] sm:$0xff]
        %v763 = vld [vmem:[%s707 + $0x1b8] sm:$0xff]
        %v764 = vld [vmem:[%s707 + $0x1c0] sm:$0xff]
        %v765 = vld [vmem:[%s707 + $0x1c8] sm:$0xff]
        %v766 = vld [vmem:[%s707 + $0x1d0] sm:$0xff]
        %v767 = vld [vmem:[%s707 + $0x1d8] sm:$0xff]
        %v768 = vld [vmem:[%s707 + $0x1e0] sm:$0xff]
        %v769 = vld [vmem:[%s707 + $0x1e8] sm:$0xff]
        %v770 = vld [vmem:[%s707 + $0x1f0] sm:$0xff]
        %v771 = vld [vmem:[%s707 + $0x1f8] sm:$0xff]
        %v772 = vld [vmem:[%s707 + $0x200] sm:$0xff]
        %v773 = vld [vmem:[%s707 + $0x208] sm:$0xff]
        %v774 = vld [vmem:[%s707 + $0x210] sm:$0xff]
        %v775 = vld [vmem:[%s707 + $0x218] sm:$0xff]
        %v776 = vld [vmem:[%s707 + $0x220] sm:$0xff]
        %v777 = vld [vmem:[%s707 + $0x228] sm:$0xff]
        %v778 = vld [vmem:[%s707 + $0x230] sm:$0xff]
        %v779 = vld [vmem:[%s707 + $0x238] sm:$0xff]
        %v780 = vld [vmem:[%s707 + $0x240] sm:$0xff]
        %v781 = vld [vmem:[%s707 + $0x248] sm:$0xff]
        %v782 = vld [vmem:[%s707 + $0x250] sm:$0xff]
        %v783 = vld [vmem:[%s707 + $0x258] sm:$0xff]
        %v784 = vld [vmem:[%s707 + $0x260] sm:$0xff]
        %v785 = vld [vmem:[%s707 + $0x268] sm:$0xff]
        %v786 = vld [vmem:[%s707 + $0x270] sm:$0xff]
        %v787 = vld [vmem:[%s707 + $0x278] sm:$0xff]
        %v788 = vld [vmem:[%s707 + $0x280] sm:$0xff]
        %v789 = vld [vmem:[%s707 + $0x288] sm:$0xff]
        %v790 = vld [vmem:[%s707 + $0x290] sm:$0xff]
        %v791 = vld [vmem:[%s707 + $0x298] sm:$0xff]
        %v792 = vld [vmem:[%s707 + $0x2a0] sm:$0xff]
        %v793 = vld [vmem:[%s707 + $0x2a8] sm:$0xff]
        %v794 = vld [vmem:[%s707 + $0x2b0] sm:$0xff]
        %v795 = vld [vmem:[%s707 + $0x2b8] sm:$0xff]
        %v796 = vld [vmem:[%s707 + $0x2c0] sm:$0xff]
        %v797 = vld [vmem:[%s707 + $0x2c8] sm:$0xff]
        %v798 = vld [vmem:[%s707 + $0x2d0] sm:$0xff]
        %v799 = vld [vmem:[%s707 + $0x2d8] sm:$0xff]
        %v800 = vld [vmem:[%s707 + $0x2e0] sm:$0xff]
        %v801 = vld [vmem:[%s707 + $0x2e8] sm:$0xff]
        %v802 = vld [vmem:[%s707 + $0x2f0] sm:$0xff]
        %v803 = vld [vmem:[%s707 + $0x2f8] sm:$0xff]
        %v804 = vld [vmem:[%s707 + $0x300] sm:$0xff]
        %v805 = vld [vmem:[%s707 + $0x308] sm:$0xff]
        %v806 = vld [vmem:[%s707 + $0x310] sm:$0xff]
        %v807 = vld [vmem:[%s707 + $0x318] sm:$0xff]
        %v808 = vld [vmem:[%s707 + $0x320] sm:$0xff]
        %v809 = vld [vmem:[%s707 + $0x328] sm:$0xff]
        %v810 = vld [vmem:[%s707 + $0x330] sm:$0xff]
        %v811 = vld [vmem:[%s707 + $0x338] sm:$0xff]
        %v812 = vld [vmem:[%s707 + $0x340] sm:$0xff]
        %v813 = vld [vmem:[%s707 + $0x348] sm:$0xff]
        %v814 = vld [vmem:[%s707 + $0x350] sm:$0xff]
        %v815 = vld [vmem:[%s707 + $0x358] sm:$0xff]
        %v816 = vld [vmem:[%s707 + $0x360] sm:$0xff]
        %v817 = vld [vmem:[%s707 + $0x368] sm:$0xff]
        %v818 = vld [vmem:[%s707 + $0x370] sm:$0xff]
        %v819 = vld [vmem:[%s707 + $0x378] sm:$0xff]
        %v820 = vld [vmem:[%s707 + $0x380] sm:$0xff]
        %v821 = vld [vmem:[%s707 + $0x388] sm:$0xff]
        %v822 = vld [vmem:[%s707 + $0x390] sm:$0xff]
        %v823 = vld [vmem:[%s707 + $0x398] sm:$0xff]
        %v824 = vld [vmem:[%s707 + $0x3a0] sm:$0xff]
        %v825 = vld [vmem:[%s707 + $0x3a8] sm:$0xff]
        %v826 = vld [vmem:[%s707 + $0x3b0] sm:$0xff]
        %v827 = vld [vmem:[%s707 + $0x3b8] sm:$0xff]
        %v828 = vld [vmem:[%s707 + $0x3c0] sm:$0xff]
        %v829 = vld [vmem:[%s707 + $0x3c8] sm:$0xff]
        %v830 = vld [vmem:[%s707 + $0x3d0] sm:$0xff]
        %v831 = vld [vmem:[%s707 + $0x3d8] sm:$0xff]
        %v832 = vld [vmem:[%s707 + $0x3e0] sm:$0xff]
        %v833 = vld [vmem:[%s707 + $0x3e8] sm:$0xff]
        %v834 = vld [vmem:[%s707 + $0x3f0] sm:$0xff]
        %v835 = vld [vmem:[%s707 + $0x3f8] sm:$0xff]
        %v836 = vld [vmem:[%s707 + $0x400] sm:$0x3]
        %v837 = vpack.c.bf16 %v709, %v708
        %v838 = vpack.c.bf16 %v711, %v710
        %v839 = vpack.c.bf16 %v713, %v712
        %v840 = vpack.c.bf16 %v715, %v714
        %v841 = vpack.c.bf16 %v717, %v716
        %v842 = vpack.c.bf16 %v719, %v718
        %v843 = vpack.c.bf16 %v721, %v720
        %v844 = vpack.c.bf16 %v723, %v722
        %v845 = vpack.c.bf16 %v725, %v724
        %v846 = vpack.c.bf16 %v727, %v726
        %v847 = vpack.c.bf16 %v729, %v728
        %v848 = vpack.c.bf16 %v731, %v730
        %v849 = vpack.c.bf16 %v733, %v732
        %v850 = vpack.c.bf16 %v735, %v734
        %v851 = vpack.c.bf16 %v737, %v736
        %v852 = vpack.c.bf16 %v739, %v738
        %v853 = vpack.c.bf16 %v741, %v740
        %v854 = vpack.c.bf16 %v743, %v742
        %v855 = vpack.c.bf16 %v745, %v744
        %v856 = vpack.c.bf16 %v747, %v746
        %v857 = vpack.c.bf16 %v749, %v748
        %v858 = vpack.c.bf16 %v751, %v750
        %v859 = vpack.c.bf16 %v753, %v752
        %v860 = vpack.c.bf16 %v755, %v754
        %v861 = vpack.c.bf16 %v757, %v756
        %v862 = vpack.c.bf16 %v759, %v758
        %v863 = vpack.c.bf16 %v761, %v760
        %v864 = vpack.c.bf16 %v763, %v762
        %v865 = vpack.c.bf16 %v765, %v764
        %v866 = vpack.c.bf16 %v767, %v766
        %v867 = vpack.c.bf16 %v769, %v768
        %v868 = vpack.c.bf16 %v771, %v770
        %v869 = vpack.c.bf16 %v773, %v772
        %v870 = vpack.c.bf16 %v775, %v774
        %v871 = vpack.c.bf16 %v777, %v776
        %v872 = vpack.c.bf16 %v779, %v778
        %v873 = vpack.c.bf16 %v781, %v780
        %v874 = vpack.c.bf16 %v783, %v782
        %v875 = vpack.c.bf16 %v785, %v784
        %v876 = vpack.c.bf16 %v787, %v786
        %v877 = vpack.c.bf16 %v789, %v788
        %v878 = vpack.c.bf16 %v791, %v790
        %v879 = vpack.c.bf16 %v793, %v792
        %v880 = vpack.c.bf16 %v795, %v794
        %v881 = vpack.c.bf16 %v797, %v796
        %v882 = vpack.c.bf16 %v799, %v798
        %v883 = vpack.c.bf16 %v801, %v800
        %v884 = vpack.c.bf16 %v803, %v802
        %v885 = vpack.c.bf16 %v805, %v804
        %v886 = vpack.c.bf16 %v807, %v806
        %v887 = vpack.c.bf16 %v809, %v808
        %v888 = vpack.c.bf16 %v811, %v810
        %v889 = vpack.c.bf16 %v813, %v812
        %v890 = vpack.c.bf16 %v815, %v814
        %v891 = vpack.c.bf16 %v817, %v816
        %v892 = vpack.c.bf16 %v819, %v818
        %v893 = vpack.c.bf16 %v821, %v820
        %v894 = vpack.c.bf16 %v823, %v822
        %v895 = vpack.c.bf16 %v825, %v824
        %v896 = vpack.c.bf16 %v827, %v826
        %v897 = vpack.c.bf16 %v829, %v828
        %v898 = vpack.c.bf16 %v831, %v830
        %v899 = vpack.c.bf16 %v833, %v832
        %v900 = vpack.c.bf16 %v835, %v834
        %v901 = vpack.c.bf16 %v836, %v836
        %v902 = vld [vmem:[#allocation5] sm:$0xf]
        %v903 = vld [vmem:[#allocation5 + $0x4] sm:$0xf]
        %v904 = vld [vmem:[#allocation5 + $0x8] sm:$0xf]
        %v905 = vld [vmem:[#allocation5 + $0xc] sm:$0xf]
        %v906 = vld [vmem:[#allocation5 + $0x10] sm:$0xf]
        %v907 = vld [vmem:[#allocation5 + $0x14] sm:$0xf]
        %v908 = vld [vmem:[#allocation5 + $0x18] sm:$0xf]
        %v909 = vld [vmem:[#allocation5 + $0x1c] sm:$0xf]
        %v910 = vld [vmem:[#allocation5 + $0x20] sm:$0xf]
        %v911 = vld [vmem:[#allocation5 + $0x24] sm:$0xf]
        %v912 = vld [vmem:[#allocation5 + $0x28] sm:$0xf]
        %v913 = vld [vmem:[#allocation5 + $0x2c] sm:$0xf]
        %v914 = vld [vmem:[#allocation5 + $0x30] sm:$0xf]
        %v915 = vld [vmem:[#allocation5 + $0x34] sm:$0xf]
        %v916 = vld [vmem:[#allocation5 + $0x38] sm:$0xf]
        %v917 = vld [vmem:[#allocation5 + $0x3c] sm:$0xf]
        %v918 = vld [vmem:[#allocation5 + $0x40] sm:$0xf]
        %v919 = vld [vmem:[#allocation5 + $0x44] sm:$0xf]
        %v920 = vld [vmem:[#allocation5 + $0x48] sm:$0xf]
        %v921 = vld [vmem:[#allocation5 + $0x4c] sm:$0xf]
        %v922 = vld [vmem:[#allocation5 + $0x50] sm:$0xf]
        %v923 = vld [vmem:[#allocation5 + $0x54] sm:$0xf]
        %v924 = vld [vmem:[#allocation5 + $0x58] sm:$0xf]
        %v925 = vld [vmem:[#allocation5 + $0x5c] sm:$0xf]
        %v926 = vld [vmem:[#allocation5 + $0x60] sm:$0xf]
        %v927 = vld [vmem:[#allocation5 + $0x64] sm:$0xf]
        %v928 = vld [vmem:[#allocation5 + $0x68] sm:$0xf]
        %v929 = vld [vmem:[#allocation5 + $0x6c] sm:$0xf]
        %v930 = vld [vmem:[#allocation5 + $0x70] sm:$0xf]
        %v931 = vld [vmem:[#allocation5 + $0x74] sm:$0xf]
        %v932 = vld [vmem:[#allocation5 + $0x78] sm:$0xf]
        %v933 = vld [vmem:[#allocation5 + $0x7c] sm:$0xf]
        %v934 = vld [vmem:[#allocation5 + $0x80] sm:$0xf]
        %v935 = vld [vmem:[#allocation5 + $0x84] sm:$0xf]
        %v936 = vld [vmem:[#allocation5 + $0x88] sm:$0xf]
        %v937 = vld [vmem:[#allocation5 + $0x8c] sm:$0xf]
        %v938 = vld [vmem:[#allocation5 + $0x90] sm:$0xf]
        %v939 = vld [vmem:[#allocation5 + $0x94] sm:$0xf]
        %v940 = vld [vmem:[#allocation5 + $0x98] sm:$0xf]
        %v941 = vld [vmem:[#allocation5 + $0x9c] sm:$0xf]
        %v942 = vld [vmem:[#allocation5 + $0xa0] sm:$0xf]
        %v943 = vld [vmem:[#allocation5 + $0xa4] sm:$0xf]
        %v944 = vld [vmem:[#allocation5 + $0xa8] sm:$0xf]
        %v945 = vld [vmem:[#allocation5 + $0xac] sm:$0xf]
        %v946 = vld [vmem:[#allocation5 + $0xb0] sm:$0xf]
        %v947 = vld [vmem:[#allocation5 + $0xb4] sm:$0xf]
        %v948 = vld [vmem:[#allocation5 + $0xb8] sm:$0xf]
        %v949 = vld [vmem:[#allocation5 + $0xbc] sm:$0xf]
        %v950 = vld [vmem:[#allocation7] sm:$0x1]
        %v952 = vlaneseq
        %v953 = vshrl.u32 %v952, 7
        %v954 = vsub.s32 0, %v953
        %v955 = vrot.slane %v950, %v954
        %v1005 = vunpack.c.l.b16 %v902
        %v1006 = vunpack.c.l.b16 %v903
        %v1007 = vunpack.c.l.b16 %v904
        %v1008 = vunpack.c.l.b16 %v905
        %v1009 = vunpack.c.l.b16 %v906
        %v1010 = vunpack.c.l.b16 %v907
        %v1011 = vunpack.c.l.b16 %v908
        %v1012 = vunpack.c.l.b16 %v909
        %v1013 = vunpack.c.l.b16 %v910
        %v1014 = vunpack.c.l.b16 %v911
        %v1015 = vunpack.c.l.b16 %v912
        %v1016 = vunpack.c.l.b16 %v913
        %v1017 = vunpack.c.l.b16 %v914
        %v1018 = vunpack.c.l.b16 %v915
        %v1019 = vunpack.c.l.b16 %v916
        %v1020 = vunpack.c.l.b16 %v917
        %v1021 = vunpack.c.l.b16 %v918
        %v1022 = vunpack.c.l.b16 %v919
        %v1023 = vunpack.c.l.b16 %v920
        %v1024 = vunpack.c.l.b16 %v921
        %v1025 = vunpack.c.l.b16 %v922
        %v1026 = vunpack.c.l.b16 %v923
        %v1027 = vunpack.c.l.b16 %v924
        %v1028 = vunpack.c.l.b16 %v925
        %v1029 = vunpack.c.l.b16 %v926
        %v1030 = vunpack.c.l.b16 %v927
        %v1031 = vunpack.c.l.b16 %v928
        %v1032 = vunpack.c.l.b16 %v929
        %v1033 = vunpack.c.l.b16 %v930
        %v1034 = vunpack.c.l.b16 %v931
        %v1035 = vunpack.c.l.b16 %v932
        %v1036 = vunpack.c.l.b16 %v933
        %v1037 = vunpack.c.l.b16 %v934
        %v1038 = vunpack.c.l.b16 %v935
        %v1039 = vunpack.c.l.b16 %v936
        %v1040 = vunpack.c.l.b16 %v937
        %v1041 = vunpack.c.l.b16 %v938
        %v1042 = vunpack.c.l.b16 %v939
        %v1043 = vunpack.c.l.b16 %v940
        %v1044 = vunpack.c.l.b16 %v941
        %v1045 = vunpack.c.l.b16 %v942
        %v1046 = vunpack.c.l.b16 %v943
        %v1047 = vunpack.c.l.b16 %v944
        %v1048 = vunpack.c.l.b16 %v945
        %v1049 = vunpack.c.l.b16 %v946
        %v1050 = vunpack.c.l.b16 %v947
        %v1051 = vunpack.c.l.b16 %v948
        %v1052 = vunpack.c.l.b16 %v949
        %v1053 = vpack.c.b16 %v1006, %v1005
        %v1054 = vpack.c.b16 %v1008, %v1007
        %v1055 = vpack.c.b16 %v1010, %v1009
        %v1056 = vpack.c.b16 %v1012, %v1011
        %v1057 = vpack.c.b16 %v1014, %v1013
        %v1058 = vpack.c.b16 %v1016, %v1015
        %v1059 = vpack.c.b16 %v1018, %v1017
        %v1060 = vpack.c.b16 %v1020, %v1019
        %v1061 = vpack.c.b16 %v1022, %v1021
        %v1062 = vpack.c.b16 %v1024, %v1023
        %v1063 = vpack.c.b16 %v1026, %v1025
        %v1064 = vpack.c.b16 %v1028, %v1027
        %v1065 = vpack.c.b16 %v1030, %v1029
        %v1066 = vpack.c.b16 %v1032, %v1031
        %v1067 = vpack.c.b16 %v1034, %v1033
        %v1068 = vpack.c.b16 %v1036, %v1035
        %v1069 = vpack.c.b16 %v1038, %v1037
        %v1070 = vpack.c.b16 %v1040, %v1039
        %v1071 = vpack.c.b16 %v1042, %v1041
        %v1072 = vpack.c.b16 %v1044, %v1043
        %v1073 = vpack.c.b16 %v1046, %v1045
        %v1074 = vpack.c.b16 %v1048, %v1047
        %v1075 = vpack.c.b16 %v1050, %v1049
        %v1076 = vpack.c.b16 %v1052, %v1051
        %1101 = vmatprep.subr.bf16.mxu0 0
        %1102 = vmatpush1.bf16.msra.mxu0 %v1053
        %1103 = vmatprep.subr.bf16.mxu0 0
        %1104 = vmatpush1.bf16.msra.mxu0 %v1054
        %1105 = vmatprep.subr.bf16.mxu0 0
        %1106 = vmatpush1.bf16.msra.mxu0 %v1055
        %1107 = vmatprep.subr.bf16.mxu0 0
        %1108 = vmatpush1.bf16.msra.mxu0 %v1056
        %1109 = vmatprep.subr.bf16.mxu0 0
        %1110 = vmatpush1.bf16.msra.mxu0 %v1057
        %1111 = vmatprep.subr.bf16.mxu0 0
        %1112 = vmatpush1.bf16.msra.mxu0 %v1058
        %1113 = vmatprep.subr.bf16.mxu0 0
        %1114 = vmatpush1.bf16.msra.mxu0 %v1059
        %1115 = vmatprep.subr.bf16.mxu0 0
        %1116 = vmatpush1.bf16.msra.mxu0 %v1060
        %1117 = vmatprep.subr.bf16.mxu0 0
        %1118 = vmatpush1.bf16.msra.mxu0 %v1061
        %1119 = vmatprep.subr.bf16.mxu0 0
        %1120 = vmatpush1.bf16.msra.mxu0 %v1062
        %1121 = vmatprep.subr.bf16.mxu0 0
        %1122 = vmatpush1.bf16.msra.mxu0 %v1063
        %1123 = vmatprep.subr.bf16.mxu0 0
        %1124 = vmatpush1.bf16.msra.mxu0 %v1064
        %1125 = vmatprep.subr.bf16.mxu0 0
        %1126 = vmatpush1.bf16.msra.mxu0 %v1065
        %1127 = vmatprep.subr.bf16.mxu0 0
        %1128 = vmatpush1.bf16.msra.mxu0 %v1066
        %1129 = vmatprep.subr.bf16.mxu0 0
        %1130 = vmatpush1.bf16.msra.mxu0 %v1067
        %1131 = vmatprep.subr.bf16.mxu0 0
        %1132 = vmatpush1.bf16.msra.mxu0 %v1068
        %1133 = vmatprep.mubr.bf16.mxu0 %v642
        %1134 = vmatmul.mubr.bf16.gmra.mrb[0].mxu0 %v446
        %v1135 = vpop.f32.mrb[0].mxu0
        %v1136 = vadd.f32 %v955, %v1135
        %v1137 = vpop.f32.mrb[0].mxu0
        %v1138 = vpop.f32.mrb[0].mxu0
        %v1139 = vadd.f32 %v955, %v1138
        %v1140 = vpop.f32.mrb[0].mxu0
        %1141 = vmatprep.mubr.bf16.mxu0 %v643
        %1142 = vmatmul.mubr.bf16.gmra.mrb[0].mxu0 %v447
        %v1143 = vpop.f32.mrb[0].mxu0
        %v1144 = vadd.f32 %v955, %v1143
        %v1145 = vpop.f32.mrb[0].mxu0
        %v1146 = vpop.f32.mrb[0].mxu0
        %v1147 = vadd.f32 %v955, %v1146
        %v1148 = vpop.f32.mrb[0].mxu0
        %1149 = vmatprep.mubr.bf16.mxu0 %v644
        %1150 = vmatmul.mubr.bf16.gmra.mrb[0].mxu0 %v448
        %v1151 = vpop.f32.mrb[0].mxu0
        %v1152 = vadd.f32 %v955, %v1151
        %v1153 = vpop.f32.mrb[0].mxu0
        %v1154 = vpop.f32.mrb[0].mxu0
        %v1155 = vadd.f32 %v955, %v1154
        %v1156 = vpop.f32.mrb[0].mxu0
        %1157 = vmatprep.mubr.bf16.mxu0 %v645
        %1158 = vmatmul.mubr.bf16.gmra.mrb[0].mxu0 %v449
        %v1159 = vpop.f32.mrb[0].mxu0
        %v1160 = vadd.f32 %v955, %v1159
        %v1161 = vpop.f32.mrb[0].mxu0
        %v1162 = vpop.f32.mrb[0].mxu0
        %v1163 = vadd.f32 %v955, %v1162
        %v1164 = vpop.f32.mrb[0].mxu0
        %1165 = vmatprep.mubr.bf16.mxu0 %v646
        %1166 = vmatmul.mubr.bf16.gmra.mrb[0].mxu0 %v450
        %v1167 = vpop.f32.mrb[0].mxu0
        %v1168 = vadd.f32 %v955, %v1167
        %v1169 = vpop.f32.mrb[0].mxu0
        %v1170 = vpop.f32.mrb[0].mxu0
        %v1171 = vadd.f32 %v955, %v1170
        %v1172 = vpop.f32.mrb[0].mxu0
        %1173 = vmatprep.mubr.bf16.mxu0 %v647
        %1174 = vmatmul.mubr.bf16.gmra.mrb[0].mxu0 %v451
        %v1175 = vpop.f32.mrb[0].mxu0
        %v1176 = vadd.f32 %v955, %v1175
        %v1177 = vpop.f32.mrb[0].mxu0
        %v1178 = vpop.f32.mrb[0].mxu0
        %v1179 = vadd.f32 %v955, %v1178
        %v1180 = vpop.f32.mrb[0].mxu0
        %1181 = vmatprep.mubr.bf16.mxu0 %v648
        %1182 = vmatmul.mubr.bf16.gmra.mrb[0].mxu0 %v452
        %v1183 = vpop.f32.mrb[0].mxu0
        %v1184 = vadd.f32 %v955, %v1183
        %v1185 = vpop.f32.mrb[0].mxu0
        %v1186 = vpop.f32.mrb[0].mxu0
        %v1187 = vadd.f32 %v955, %v1186
        %v1188 = vpop.f32.mrb[0].mxu0
        %1189 = vmatprep.mubr.bf16.mxu0 %v649
        %1190 = vmatmul.mubr.bf16.gmra.mrb[0].mxu0 %v453
        %v1191 = vpop.f32.mrb[0].mxu0
        %v1192 = vadd.f32 %v955, %v1191
        %v1193 = vpop.f32.mrb[0].mxu0
        %v1194 = vpop.f32.mrb[0].mxu0
        %v1195 = vadd.f32 %v955, %v1194
        %v1196 = vpop.f32.mrb[0].mxu0
        %1197 = vmatprep.mubr.bf16.mxu0 %v650
        %1198 = vmatmul.mubr.bf16.gmra.mrb[0].mxu0 %v454
        %v1199 = vpop.f32.mrb[0].mxu0
        %v1200 = vadd.f32 %v955, %v1199
        %v1201 = vpop.f32.mrb[0].mxu0
        %v1202 = vpop.f32.mrb[0].mxu0
        %v1203 = vadd.f32 %v955, %v1202
        %v1204 = vpop.f32.mrb[0].mxu0
        %1205 = vmatprep.mubr.bf16.mxu0 %v651
        %1206 = vmatmul.mubr.bf16.gmra.mrb[0].mxu0 %v455
        %v1207 = vpop.f32.mrb[0].mxu0
        %v1208 = vadd.f32 %v955, %v1207
        %v1209 = vpop.f32.mrb[0].mxu0
        %v1210 = vpop.f32.mrb[0].mxu0
        %v1211 = vadd.f32 %v955, %v1210
        %v1212 = vpop.f32.mrb[0].mxu0
        %1213 = vmatprep.mubr.bf16.mxu0 %v652
        %1214 = vmatmul.mubr.bf16.gmra.mrb[0].mxu0 %v456
        %v1215 = vpop.f32.mrb[0].mxu0
        %v1216 = vadd.f32 %v955, %v1215
        %v1217 = vpop.f32.mrb[0].mxu0
        %v1218 = vpop.f32.mrb[0].mxu0
        %v1219 = vadd.f32 %v955, %v1218
        %v1220 = vpop.f32.mrb[0].mxu0
        %1221 = vmatprep.mubr.bf16.mxu0 %v653
        %1222 = vmatmul.mubr.bf16.gmra.mrb[0].mxu0 %v457
        %v1223 = vpop.f32.mrb[0].mxu0
        %v1224 = vadd.f32 %v955, %v1223
        %v1225 = vpop.f32.mrb[0].mxu0
        %v1226 = vpop.f32.mrb[0].mxu0
        %v1227 = vadd.f32 %v955, %v1226
        %v1228 = vpop.f32.mrb[0].mxu0
        %1229 = vmatprep.mubr.bf16.mxu0 %v654
        %1230 = vmatmul.mubr.bf16.gmra.mrb[0].mxu0 %v458
        %v1231 = vpop.f32.mrb[0].mxu0
        %v1232 = vadd.f32 %v955, %v1231
        %v1233 = vpop.f32.mrb[0].mxu0
        %v1234 = vpop.f32.mrb[0].mxu0
        %v1235 = vadd.f32 %v955, %v1234
        %v1236 = vpop.f32.mrb[0].mxu0
        %1237 = vmatprep.mubr.bf16.mxu0 %v655
        %1238 = vmatmul.mubr.bf16.gmra.mrb[0].mxu0 %v459
        %v1239 = vpop.f32.mrb[0].mxu0
        %v1240 = vadd.f32 %v955, %v1239
        %v1241 = vpop.f32.mrb[0].mxu0
        %v1242 = vpop.f32.mrb[0].mxu0
        %v1243 = vadd.f32 %v955, %v1242
        %v1244 = vpop.f32.mrb[0].mxu0
        %1245 = vmatprep.mubr.bf16.mxu0 %v656
        %1246 = vmatmul.mubr.bf16.gmra.mrb[0].mxu0 %v460
        %v1247 = vpop.f32.mrb[0].mxu0
        %v1248 = vadd.f32 %v955, %v1247
        %v1249 = vpop.f32.mrb[0].mxu0
        %v1250 = vpop.f32.mrb[0].mxu0
        %v1251 = vadd.f32 %v955, %v1250
        %v1252 = vpop.f32.mrb[0].mxu0
        %1253 = vmatprep.mubr.bf16.mxu0 %v657
        %1254 = vmatmul.mubr.bf16.gmra.mrb[0].mxu0 %v461
        %v1255 = vpop.f32.mrb[0].mxu0
        %v1256 = vadd.f32 %v955, %v1255
        %v1257 = vpop.f32.mrb[0].mxu0
        %v1258 = vpop.f32.mrb[0].mxu0
        %v1259 = vadd.f32 %v955, %v1258
        %v1260 = vpop.f32.mrb[0].mxu0
        %1261 = vmatprep.mubr.bf16.mxu0 %v658
        %1262 = vmatmul.mubr.bf16.gmra.mrb[0].mxu0 %v462
        %v1263 = vpop.f32.mrb[0].mxu0
        %v1264 = vadd.f32 %v955, %v1263
        %v1265 = vpop.f32.mrb[0].mxu0
        %v1266 = vpop.f32.mrb[0].mxu0
        %v1267 = vadd.f32 %v955, %v1266
        %v1268 = vpop.f32.mrb[0].mxu0
        %1269 = vmatprep.mubr.bf16.mxu0 %v659
        %1270 = vmatmul.mubr.bf16.gmra.mrb[0].mxu0 %v463
        %v1271 = vpop.f32.mrb[0].mxu0
        %v1272 = vadd.f32 %v955, %v1271
        %v1273 = vpop.f32.mrb[0].mxu0
        %v1274 = vpop.f32.mrb[0].mxu0
        %v1275 = vadd.f32 %v955, %v1274
        %v1276 = vpop.f32.mrb[0].mxu0
        %1277 = vmatprep.mubr.bf16.mxu0 %v660
        %1278 = vmatmul.mubr.bf16.gmra.mrb[0].mxu0 %v464
        %v1279 = vpop.f32.mrb[0].mxu0
        %v1280 = vadd.f32 %v955, %v1279
        %v1281 = vpop.f32.mrb[0].mxu0
        %v1282 = vpop.f32.mrb[0].mxu0
        %v1283 = vadd.f32 %v955, %v1282
        %v1284 = vpop.f32.mrb[0].mxu0
        %1285 = vmatprep.mubr.bf16.mxu0 %v661
        %1286 = vmatmul.mubr.bf16.gmra.mrb[0].mxu0 %v465
        %v1287 = vpop.f32.mrb[0].mxu0
        %v1288 = vadd.f32 %v955, %v1287
        %v1289 = vpop.f32.mrb[0].mxu0
        %v1290 = vpop.f32.mrb[0].mxu0
        %v1291 = vadd.f32 %v955, %v1290
        %v1292 = vpop.f32.mrb[0].mxu0
        %1293 = vmatprep.mubr.bf16.mxu0 %v662
        %1294 = vmatmul.mubr.bf16.gmra.mrb[0].mxu0 %v466
        %v1295 = vpop.f32.mrb[0].mxu0
        %v1296 = vadd.f32 %v955, %v1295
        %v1297 = vpop.f32.mrb[0].mxu0
        %v1298 = vpop.f32.mrb[0].mxu0
        %v1299 = vadd.f32 %v955, %v1298
        %v1300 = vpop.f32.mrb[0].mxu0
        %1301 = vmatprep.mubr.bf16.mxu0 %v663
        %1302 = vmatmul.mubr.bf16.gmra.mrb[0].mxu0 %v467
        %v1303 = vpop.f32.mrb[0].mxu0
        %v1304 = vadd.f32 %v955, %v1303
        %v1305 = vpop.f32.mrb[0].mxu0
        %v1306 = vpop.f32.mrb[0].mxu0
        %v1307 = vadd.f32 %v955, %v1306
        %v1308 = vpop.f32.mrb[0].mxu0
        %1309 = vmatprep.mubr.bf16.mxu0 %v664
        %1310 = vmatmul.mubr.bf16.gmra.mrb[0].mxu0 %v468
        %v1311 = vpop.f32.mrb[0].mxu0
        %v1312 = vadd.f32 %v955, %v1311
        %v1313 = vpop.f32.mrb[0].mxu0
        %v1314 = vpop.f32.mrb[0].mxu0
        %v1315 = vadd.f32 %v955, %v1314
        %v1316 = vpop.f32.mrb[0].mxu0
        %1317 = vmatprep.mubr.bf16.mxu0 %v665
        %1318 = vmatmul.mubr.bf16.gmra.mrb[0].mxu0 %v469
        %v1319 = vpop.f32.mrb[0].mxu0
        %v1320 = vadd.f32 %v955, %v1319
        %v1321 = vpop.f32.mrb[0].mxu0
        %v1322 = vpop.f32.mrb[0].mxu0
        %v1323 = vadd.f32 %v955, %v1322
        %v1324 = vpop.f32.mrb[0].mxu0
        %1325 = vmatprep.mubr.bf16.mxu0 %v666
        %1326 = vmatmul.mubr.bf16.gmra.mrb[0].mxu0 %v470
        %v1327 = vpop.f32.mrb[0].mxu0
        %v1328 = vadd.f32 %v955, %v1327
        %v1329 = vpop.f32.mrb[0].mxu0
        %v1330 = vpop.f32.mrb[0].mxu0
        %v1331 = vadd.f32 %v955, %v1330
        %v1332 = vpop.f32.mrb[0].mxu0
        %1333 = vmatprep.mubr.bf16.mxu0 %v667
        %1334 = vmatmul.mubr.bf16.gmra.mrb[0].mxu0 %v471
        %v1335 = vpop.f32.mrb[0].mxu0
        %v1336 = vadd.f32 %v955, %v1335
        %v1337 = vpop.f32.mrb[0].mxu0
        %v1338 = vpop.f32.mrb[0].mxu0
        %v1339 = vadd.f32 %v955, %v1338
        %v1340 = vpop.f32.mrb[0].mxu0
        %1341 = vmatprep.mubr.bf16.mxu0 %v668
        %1342 = vmatmul.mubr.bf16.gmra.mrb[0].mxu0 %v472
        %v1343 = vpop.f32.mrb[0].mxu0
        %v1344 = vadd.f32 %v955, %v1343
        %v1345 = vpop.f32.mrb[0].mxu0
        %v1346 = vpop.f32.mrb[0].mxu0
        %v1347 = vadd.f32 %v955, %v1346
        %v1348 = vpop.f32.mrb[0].mxu0
        %1349 = vmatprep.mubr.bf16.mxu0 %v669
        %1350 = vmatmul.mubr.bf16.gmra.mrb[0].mxu0 %v473
        %v1351 = vpop.f32.mrb[0].mxu0
        %v1352 = vadd.f32 %v955, %v1351
        %v1353 = vpop.f32.mrb[0].mxu0
        %v1354 = vpop.f32.mrb[0].mxu0
        %v1355 = vadd.f32 %v955, %v1354
        %v1356 = vpop.f32.mrb[0].mxu0
        %1357 = vmatprep.mubr.bf16.mxu0 %v670
        %1358 = vmatmul.mubr.bf16.gmra.mrb[0].mxu0 %v474
        %v1359 = vpop.f32.mrb[0].mxu0
        %v1360 = vadd.f32 %v955, %v1359
        %v1361 = vpop.f32.mrb[0].mxu0
        %v1362 = vpop.f32.mrb[0].mxu0
        %v1363 = vadd.f32 %v955, %v1362
        %v1364 = vpop.f32.mrb[0].mxu0
        %1365 = vmatprep.mubr.bf16.mxu0 %v671
        %1366 = vmatmul.mubr.bf16.gmra.mrb[0].mxu0 %v475
        %v1367 = vpop.f32.mrb[0].mxu0
        %v1368 = vadd.f32 %v955, %v1367
        %v1369 = vpop.f32.mrb[0].mxu0
        %v1370 = vpop.f32.mrb[0].mxu0
        %v1371 = vadd.f32 %v955, %v1370
        %v1372 = vpop.f32.mrb[0].mxu0
        %1373 = vmatprep.mubr.bf16.mxu0 %v672
        %1374 = vmatmul.mubr.bf16.gmra.mrb[0].mxu0 %v476
        %v1375 = vpop.f32.mrb[0].mxu0
        %v1376 = vadd.f32 %v955, %v1375
        %v1377 = vpop.f32.mrb[0].mxu0
        %v1378 = vpop.f32.mrb[0].mxu0
        %v1379 = vadd.f32 %v955, %v1378
        %v1380 = vpop.f32.mrb[0].mxu0
        %1381 = vmatprep.mubr.bf16.mxu0 %v673
        %1382 = vmatmul.mubr.bf16.gmra.mrb[0].mxu0 %v477
        %v1383 = vpop.f32.mrb[0].mxu0
        %v1384 = vadd.f32 %v955, %v1383
        %v1385 = vpop.f32.mrb[0].mxu0
        %v1386 = vpop.f32.mrb[0].mxu0
        %v1387 = vadd.f32 %v955, %v1386
        %v1388 = vpop.f32.mrb[0].mxu0
        %1389 = vmatprep.mubr.bf16.mxu0 %v674
        %1390 = vmatmul.mubr.bf16.gmra.mrb[0].mxu0 %v478
        %v1391 = vpop.f32.mrb[0].mxu0
        %v1392 = vadd.f32 %v955, %v1391
        %v1393 = vpop.f32.mrb[0].mxu0
        %v1394 = vpop.f32.mrb[0].mxu0
        %v1395 = vadd.f32 %v955, %v1394
        %v1396 = vpop.f32.mrb[0].mxu0
        %1397 = vmatprep.mubr.bf16.mxu0 %v675
        %1398 = vmatmul.mubr.bf16.gmra.mrb[0].mxu0 %v479
        %v1399 = vpop.f32.mrb[0].mxu0
        %v1400 = vadd.f32 %v955, %v1399
        %v1401 = vpop.f32.mrb[0].mxu0
        %v1402 = vpop.f32.mrb[0].mxu0
        %v1403 = vadd.f32 %v955, %v1402
        %v1404 = vpop.f32.mrb[0].mxu0
        %1405 = vmatprep.mubr.bf16.mxu0 %v676
        %1406 = vmatmul.mubr.bf16.gmra.mrb[0].mxu0 %v480
        %v1407 = vpop.f32.mrb[0].mxu0
        %v1408 = vadd.f32 %v955, %v1407
        %v1409 = vpop.f32.mrb[0].mxu0
        %v1410 = vpop.f32.mrb[0].mxu0
        %v1411 = vadd.f32 %v955, %v1410
        %v1412 = vpop.f32.mrb[0].mxu0
        %1413 = vmatprep.mubr.bf16.mxu0 %v677
        %1414 = vmatmul.mubr.bf16.gmra.mrb[0].mxu0 %v481
        %v1415 = vpop.f32.mrb[0].mxu0
        %v1416 = vadd.f32 %v955, %v1415
        %v1417 = vpop.f32.mrb[0].mxu0
        %v1418 = vpop.f32.mrb[0].mxu0
        %v1419 = vadd.f32 %v955, %v1418
        %v1420 = vpop.f32.mrb[0].mxu0
        %1421 = vmatprep.mubr.bf16.mxu0 %v678
        %1422 = vmatmul.mubr.bf16.gmra.mrb[0].mxu0 %v482
        %v1423 = vpop.f32.mrb[0].mxu0
        %v1424 = vadd.f32 %v955, %v1423
        %v1425 = vpop.f32.mrb[0].mxu0
        %v1426 = vpop.f32.mrb[0].mxu0
        %v1427 = vadd.f32 %v955, %v1426
        %v1428 = vpop.f32.mrb[0].mxu0
        %1429 = vmatprep.mubr.bf16.mxu0 %v679
        %1430 = vmatmul.mubr.bf16.gmra.mrb[0].mxu0 %v483
        %v1431 = vpop.f32.mrb[0].mxu0
        %v1432 = vadd.f32 %v955, %v1431
        %v1433 = vpop.f32.mrb[0].mxu0
        %v1434 = vpop.f32.mrb[0].mxu0
        %v1435 = vadd.f32 %v955, %v1434
        %v1436 = vpop.f32.mrb[0].mxu0
        %1437 = vmatprep.mubr.bf16.mxu0 %v680
        %1438 = vmatmul.mubr.bf16.gmra.mrb[0].mxu0 %v484
        %v1439 = vpop.f32.mrb[0].mxu0
        %v1440 = vadd.f32 %v955, %v1439
        %v1441 = vpop.f32.mrb[0].mxu0
        %v1442 = vpop.f32.mrb[0].mxu0
        %v1443 = vadd.f32 %v955, %v1442
        %v1444 = vpop.f32.mrb[0].mxu0
        %1445 = vmatprep.mubr.bf16.mxu0 %v681
        %1446 = vmatmul.mubr.bf16.gmra.mrb[0].mxu0 %v485
        %v1447 = vpop.f32.mrb[0].mxu0
        %v1448 = vadd.f32 %v955, %v1447
        %v1449 = vpop.f32.mrb[0].mxu0
        %v1450 = vpop.f32.mrb[0].mxu0
        %v1451 = vadd.f32 %v955, %v1450
        %v1452 = vpop.f32.mrb[0].mxu0
        %1453 = vmatprep.mubr.bf16.mxu0 %v682
        %1454 = vmatmul.mubr.bf16.gmra.mrb[0].mxu0 %v486
        %v1455 = vpop.f32.mrb[0].mxu0
        %v1456 = vadd.f32 %v955, %v1455
        %v1457 = vpop.f32.mrb[0].mxu0
        %v1458 = vpop.f32.mrb[0].mxu0
        %v1459 = vadd.f32 %v955, %v1458
        %v1460 = vpop.f32.mrb[0].mxu0
        %1461 = vmatprep.mubr.bf16.mxu0 %v683
        %1462 = vmatmul.mubr.bf16.gmra.mrb[0].mxu0 %v487
        %v1463 = vpop.f32.mrb[0].mxu0
        %v1464 = vadd.f32 %v955, %v1463
        %v1465 = vpop.f32.mrb[0].mxu0
        %v1466 = vpop.f32.mrb[0].mxu0
        %v1467 = vadd.f32 %v955, %v1466
        %v1468 = vpop.f32.mrb[0].mxu0
        %1469 = vmatprep.mubr.bf16.mxu0 %v684
        %1470 = vmatmul.mubr.bf16.gmra.mrb[0].mxu0 %v488
        %v1471 = vpop.f32.mrb[0].mxu0
        %v1472 = vadd.f32 %v955, %v1471
        %v1473 = vpop.f32.mrb[0].mxu0
        %v1474 = vpop.f32.mrb[0].mxu0
        %v1475 = vadd.f32 %v955, %v1474
        %v1476 = vpop.f32.mrb[0].mxu0
        %1477 = vmatprep.mubr.bf16.mxu0 %v685
        %1478 = vmatmul.mubr.bf16.gmra.mrb[0].mxu0 %v489
        %v1479 = vpop.f32.mrb[0].mxu0
        %v1480 = vadd.f32 %v955, %v1479
        %v1481 = vpop.f32.mrb[0].mxu0
        %v1482 = vpop.f32.mrb[0].mxu0
        %v1483 = vadd.f32 %v955, %v1482
        %v1484 = vpop.f32.mrb[0].mxu0
        %1485 = vmatprep.mubr.bf16.mxu0 %v686
        %1486 = vmatmul.mubr.bf16.gmra.mrb[0].mxu0 %v490
        %v1487 = vpop.f32.mrb[0].mxu0
        %v1488 = vadd.f32 %v955, %v1487
        %v1489 = vpop.f32.mrb[0].mxu0
        %v1490 = vpop.f32.mrb[0].mxu0
        %v1491 = vadd.f32 %v955, %v1490
        %v1492 = vpop.f32.mrb[0].mxu0
        %1493 = vmatprep.mubr.bf16.mxu0 %v687
        %1494 = vmatmul.mubr.bf16.gmra.mrb[0].mxu0 %v491
        %v1495 = vpop.f32.mrb[0].mxu0
        %v1496 = vadd.f32 %v955, %v1495
        %v1497 = vpop.f32.mrb[0].mxu0
        %v1498 = vpop.f32.mrb[0].mxu0
        %v1499 = vadd.f32 %v955, %v1498
        %v1500 = vpop.f32.mrb[0].mxu0
        %1501 = vmatprep.mubr.bf16.mxu0 %v688
        %1502 = vmatmul.mubr.bf16.gmra.mrb[0].mxu0 %v492
        %v1503 = vpop.f32.mrb[0].mxu0
        %v1504 = vadd.f32 %v955, %v1503
        %v1505 = vpop.f32.mrb[0].mxu0
        %v1506 = vpop.f32.mrb[0].mxu0
        %v1507 = vadd.f32 %v955, %v1506
        %v1508 = vpop.f32.mrb[0].mxu0
        %1509 = vmatprep.mubr.bf16.mxu0 %v689
        %1510 = vmatmul.mubr.bf16.gmra.mrb[0].mxu0 %v493
        %v1511 = vpop.f32.mrb[0].mxu0
        %v1512 = vadd.f32 %v955, %v1511
        %v1513 = vpop.f32.mrb[0].mxu0
        %v1514 = vpop.f32.mrb[0].mxu0
        %v1515 = vadd.f32 %v955, %v1514
        %v1516 = vpop.f32.mrb[0].mxu0
        %1517 = vmatprep.mubr.bf16.mxu0 %v690
        %1518 = vmatmul.mubr.bf16.gmra.mrb[0].mxu0 %v494
        %v1519 = vpop.f32.mrb[0].mxu0
        %v1520 = vadd.f32 %v955, %v1519
        %v1521 = vpop.f32.mrb[0].mxu0
        %v1522 = vpop.f32.mrb[0].mxu0
        %v1523 = vadd.f32 %v955, %v1522
        %v1524 = vpop.f32.mrb[0].mxu0
        %1525 = vmatprep.mubr.bf16.mxu0 %v691
        %1526 = vmatmul.mubr.bf16.gmra.mrb[0].mxu0 %v495
        %v1527 = vpop.f32.mrb[0].mxu0
        %v1528 = vadd.f32 %v955, %v1527
        %v1529 = vpop.f32.mrb[0].mxu0
        %v1530 = vpop.f32.mrb[0].mxu0
        %v1531 = vadd.f32 %v955, %v1530
        %v1532 = vpop.f32.mrb[0].mxu0
        %1533 = vmatprep.mubr.bf16.mxu0 %v692
        %1534 = vmatmul.mubr.bf16.gmra.mrb[0].mxu0 %v496
        %v1535 = vpop.f32.mrb[0].mxu0
        %v1536 = vadd.f32 %v955, %v1535
        %v1537 = vpop.f32.mrb[0].mxu0
        %v1538 = vpop.f32.mrb[0].mxu0
        %v1539 = vadd.f32 %v955, %v1538
        %v1540 = vpop.f32.mrb[0].mxu0
        %1541 = vmatprep.mubr.bf16.mxu0 %v693
        %1542 = vmatmul.mubr.bf16.gmra.mrb[0].mxu0 %v497
        %v1543 = vpop.f32.mrb[0].mxu0
        %v1544 = vadd.f32 %v955, %v1543
        %v1545 = vpop.f32.mrb[0].mxu0
        %v1546 = vpop.f32.mrb[0].mxu0
        %v1547 = vadd.f32 %v955, %v1546
        %v1548 = vpop.f32.mrb[0].mxu0
        %1549 = vmatprep.mubr.bf16.mxu0 %v694
        %1550 = vmatmul.mubr.bf16.gmra.mrb[0].mxu0 %v498
        %v1551 = vpop.f32.mrb[0].mxu0
        %v1552 = vadd.f32 %v955, %v1551
        %v1553 = vpop.f32.mrb[0].mxu0
        %v1554 = vpop.f32.mrb[0].mxu0
        %v1555 = vadd.f32 %v955, %v1554
        %v1556 = vpop.f32.mrb[0].mxu0
        %1557 = vmatprep.mubr.bf16.mxu0 %v695
        %1558 = vmatmul.mubr.bf16.gmra.mrb[0].mxu0 %v499
        %v1559 = vpop.f32.mrb[0].mxu0
        %v1560 = vadd.f32 %v955, %v1559
        %v1561 = vpop.f32.mrb[0].mxu0
        %v1562 = vpop.f32.mrb[0].mxu0
        %v1563 = vadd.f32 %v955, %v1562
        %v1564 = vpop.f32.mrb[0].mxu0
        %1565 = vmatprep.mubr.bf16.mxu0 %v696
        %1566 = vmatmul.mubr.bf16.gmra.mrb[0].mxu0 %v500
        %v1567 = vpop.f32.mrb[0].mxu0
        %v1568 = vadd.f32 %v955, %v1567
        %v1569 = vpop.f32.mrb[0].mxu0
        %v1570 = vpop.f32.mrb[0].mxu0
        %v1571 = vadd.f32 %v955, %v1570
        %v1572 = vpop.f32.mrb[0].mxu0
        %1573 = vmatprep.mubr.bf16.mxu0 %v697
        %1574 = vmatmul.mubr.bf16.gmra.mrb[0].mxu0 %v501
        %v1575 = vpop.f32.mrb[0].mxu0
        %v1576 = vadd.f32 %v955, %v1575
        %v1577 = vpop.f32.mrb[0].mxu0
        %v1578 = vpop.f32.mrb[0].mxu0
        %v1579 = vadd.f32 %v955, %v1578
        %v1580 = vpop.f32.mrb[0].mxu0
        %1581 = vmatprep.mubr.bf16.mxu0 %v698
        %1582 = vmatmul.mubr.bf16.gmra.mrb[0].mxu0 %v502
        %v1583 = vpop.f32.mrb[0].mxu0
        %v1584 = vadd.f32 %v955, %v1583
        %v1585 = vpop.f32.mrb[0].mxu0
        %v1586 = vpop.f32.mrb[0].mxu0
        %v1587 = vadd.f32 %v955, %v1586
        %v1588 = vpop.f32.mrb[0].mxu0
        %1589 = vmatprep.mubr.bf16.mxu0 %v699
        %1590 = vmatmul.mubr.bf16.gmra.mrb[0].mxu0 %v503
        %v1591 = vpop.f32.mrb[0].mxu0
        %v1592 = vadd.f32 %v955, %v1591
        %v1593 = vpop.f32.mrb[0].mxu0
        %v1594 = vpop.f32.mrb[0].mxu0
        %v1595 = vadd.f32 %v955, %v1594
        %v1596 = vpop.f32.mrb[0].mxu0
        %1597 = vmatprep.mubr.bf16.mxu0 %v700
        %1598 = vmatmul.mubr.bf16.gmra.mrb[0].mxu0 %v504
        %v1599 = vpop.f32.mrb[0].mxu0
        %v1600 = vadd.f32 %v955, %v1599
        %v1601 = vpop.f32.mrb[0].mxu0
        %v1602 = vpop.f32.mrb[0].mxu0
        %v1603 = vadd.f32 %v955, %v1602
        %v1604 = vpop.f32.mrb[0].mxu0
        %1605 = vmatprep.mubr.bf16.mxu0 %v701
        %1606 = vmatmul.mubr.bf16.gmra.mrb[0].mxu0 %v505
        %v1607 = vpop.f32.mrb[0].mxu0
        %v1608 = vadd.f32 %v955, %v1607
        %v1609 = vpop.f32.mrb[0].mxu0
        %v1610 = vpop.f32.mrb[0].mxu0
        %v1611 = vadd.f32 %v955, %v1610
        %v1612 = vpop.f32.mrb[0].mxu0
        %1613 = vmatprep.mubr.bf16.mxu0 %v702
        %1614 = vmatmul.mubr.bf16.gmra.mrb[0].mxu0 %v506
        %v1615 = vpop.f32.mrb[0].mxu0
        %v1616 = vadd.f32 %v955, %v1615
        %v1617 = vpop.f32.mrb[0].mxu0
        %v1618 = vpop.f32.mrb[0].mxu0
        %v1619 = vadd.f32 %v955, %v1618
        %v1620 = vpop.f32.mrb[0].mxu0
        %1621 = vmatprep.mubr.bf16.mxu0 %v703
        %1622 = vmatmul.mubr.bf16.gmra.mrb[0].mxu0 %v507
        %v1623 = vpop.f32.mrb[0].mxu0
        %v1624 = vadd.f32 %v955, %v1623
        %v1625 = vpop.f32.mrb[0].mxu0
        %v1626 = vpop.f32.mrb[0].mxu0
        %v1627 = vadd.f32 %v955, %v1626
        %v1628 = vpop.f32.mrb[0].mxu0
        %1629 = vmatprep.mubr.bf16.mxu0 %v704
        %1630 = vmatmul.mubr.bf16.gmra.mrb[0].mxu0 %v508
        %v1631 = vpop.f32.mrb[0].mxu0
        %v1632 = vadd.f32 %v955, %v1631
        %v1633 = vpop.f32.mrb[0].mxu0
        %v1634 = vpop.f32.mrb[0].mxu0
        %v1635 = vadd.f32 %v955, %v1634
        %v1636 = vpop.f32.mrb[0].mxu0
        %1637 = vmatprep.mubr.bf16.mxu0 %v705
        %1638 = vmatmul.mubr.bf16.gmra.mrb[0].mxu0 %v509
        %v1639 = vpop.f32.mrb[0].mxu0
        %v1640 = vadd.f32 %v955, %v1639
        %v1641 = vpop.f32.mrb[0].mxu0
        %v1642 = vpop.f32.mrb[0].mxu0
        %v1643 = vadd.f32 %v955, %v1642
        %v1644 = vpop.f32.mrb[0].mxu0
        %1645 = vmatprep.mubr.bf16.mxu0 %v706
        %1646 = vmatmul.mubr.bf16.gmra.mrb[0].mxu0 %v510
        %v1647 = vpop.f32.mrb[0].mxu0
        %v1648 = vadd.f32 %v955, %v1647
        %v1649 = vpop.f32.mrb[0].mxu0
        %v1650 = vpop.f32.mrb[0].mxu0
        %v1651 = vpop.f32.mrb[0].mxu0
        %1652 = vdwg.mxu0
        %1653 = vmatprep.subr.bf16.mxu0 0
        %1654 = vmatpush1.bf16.msra.mxu0 %v1069
        %1655 = vmatprep.subr.bf16.mxu0 0
        %1656 = vmatpush1.bf16.msra.mxu0 %v1070
        %1657 = vmatprep.subr.bf16.mxu0 0
        %1658 = vmatpush1.bf16.msra.mxu0 %v1071
        %1659 = vmatprep.subr.bf16.mxu0 0
        %1660 = vmatpush1.bf16.msra.mxu0 %v1072
        %1661 = vmatprep.subr.bf16.mxu0 0
        %1662 = vmatpush1.bf16.msra.mxu0 %v1073
        %1663 = vmatprep.subr.bf16.mxu0 0
        %1664 = vmatpush1.bf16.msra.mxu0 %v1074
        %1665 = vmatprep.subr.bf16.mxu0 0
        %1666 = vmatpush1.bf16.msra.mxu0 %v1075
        %1667 = vmatprep.subr.bf16.mxu0 0
        %1668 = vmatpush1.bf16.msra.mxu0 %v1076
        %1669 = vmatprep.subr.bf16.mxu0 0
        %1670 = vmatpush1.bf16.msra.mxu0 0
        %1671 = vmatprep.subr.bf16.mxu0 0
        %1672 = vmatpush1.bf16.msra.mxu0 0
        %1673 = vmatprep.subr.bf16.mxu0 0
        %1674 = vmatpush1.bf16.msra.mxu0 0
        %1675 = vmatprep.subr.bf16.mxu0 0
        %1676 = vmatpush1.bf16.msra.mxu0 0
        %1677 = vmatprep.subr.bf16.mxu0 0
        %1678 = vmatpush1.bf16.msra.mxu0 0
        %1679 = vmatprep.subr.bf16.mxu0 0
        %1680 = vmatpush1.bf16.msra.mxu0 0
        %1681 = vmatprep.subr.bf16.mxu0 0
        %1682 = vmatpush1.bf16.msra.mxu0 0
        %1683 = vmatprep.subr.bf16.mxu0 0
        %1684 = vmatpush1.bf16.msra.mxu0 0
        %1685 = vmatprep.mubr.bf16.mxu0 0
        %1686 = vmatmul.mubr.bf16.gmra.mrb[0].mxu0 %v837
        %v1687 = vpop.f32.mrb[0].mxu0
        %v1688 = vadd.f32 %v1136, %v1687
        %v1689 = vpop.f32.mrb[0].mxu0
        %v1690 = vpop.f32.mrb[0].mxu0
        %v1691 = vadd.f32 %v1139, %v1690
        %v1692 = vpop.f32.mrb[0].mxu0
        %1693 = vmatprep.mubr.bf16.mxu0 0
        %1694 = vmatmul.mubr.bf16.gmra.mrb[0].mxu0 %v838
        %v1695 = vpop.f32.mrb[0].mxu0
        %v1696 = vadd.f32 %v1144, %v1695
        %v1697 = vpop.f32.mrb[0].mxu0
        %v1698 = vpop.f32.mrb[0].mxu0
        %v1699 = vadd.f32 %v1147, %v1698
        %v1700 = vpop.f32.mrb[0].mxu0
        %1701 = vmatprep.mubr.bf16.mxu0 0
        %1702 = vmatmul.mubr.bf16.gmra.mrb[0].mxu0 %v839
        %v1703 = vpop.f32.mrb[0].mxu0
        %v1704 = vadd.f32 %v1152, %v1703
        %v1705 = vpop.f32.mrb[0].mxu0
        %v1706 = vpop.f32.mrb[0].mxu0
        %v1707 = vadd.f32 %v1155, %v1706
        %v1708 = vpop.f32.mrb[0].mxu0
        %1709 = vmatprep.mubr.bf16.mxu0 0
        %1710 = vmatmul.mubr.bf16.gmra.mrb[0].mxu0 %v840
        %v1711 = vpop.f32.mrb[0].mxu0
        %v1712 = vadd.f32 %v1160, %v1711
        %v1713 = vpop.f32.mrb[0].mxu0
        %v1714 = vpop.f32.mrb[0].mxu0
        %v1715 = vadd.f32 %v1163, %v1714
        %v1716 = vpop.f32.mrb[0].mxu0
        %1717 = vmatprep.mubr.bf16.mxu0 0
        %1718 = vmatmul.mubr.bf16.gmra.mrb[0].mxu0 %v841
        %v1719 = vpop.f32.mrb[0].mxu0
        %v1720 = vadd.f32 %v1168, %v1719
        %v1721 = vpop.f32.mrb[0].mxu0
        %v1722 = vpop.f32.mrb[0].mxu0
        %v1723 = vadd.f32 %v1171, %v1722
        %v1724 = vpop.f32.mrb[0].mxu0
        %1725 = vmatprep.mubr.bf16.mxu0 0
        %1726 = vmatmul.mubr.bf16.gmra.mrb[0].mxu0 %v842
        %v1727 = vpop.f32.mrb[0].mxu0
        %v1728 = vadd.f32 %v1176, %v1727
        %v1729 = vpop.f32.mrb[0].mxu0
        %v1730 = vpop.f32.mrb[0].mxu0
        %v1731 = vadd.f32 %v1179, %v1730
        %v1732 = vpop.f32.mrb[0].mxu0
        %1733 = vmatprep.mubr.bf16.mxu0 0
        %1734 = vmatmul.mubr.bf16.gmra.mrb[0].mxu0 %v843
        %v1735 = vpop.f32.mrb[0].mxu0
        %v1736 = vadd.f32 %v1184, %v1735
        %v1737 = vpop.f32.mrb[0].mxu0
        %v1738 = vpop.f32.mrb[0].mxu0
        %v1739 = vadd.f32 %v1187, %v1738
        %v1740 = vpop.f32.mrb[0].mxu0
        %1741 = vmatprep.mubr.bf16.mxu0 0
        %1742 = vmatmul.mubr.bf16.gmra.mrb[0].mxu0 %v844
        %v1743 = vpop.f32.mrb[0].mxu0
        %v1744 = vadd.f32 %v1192, %v1743
        %v1745 = vpop.f32.mrb[0].mxu0
        %v1746 = vpop.f32.mrb[0].mxu0
        %v1747 = vadd.f32 %v1195, %v1746
        %v1748 = vpop.f32.mrb[0].mxu0
        %1749 = vmatprep.mubr.bf16.mxu0 0
        %1750 = vmatmul.mubr.bf16.gmra.mrb[0].mxu0 %v845
        %v1751 = vpop.f32.mrb[0].mxu0
        %v1752 = vadd.f32 %v1200, %v1751
        %v1753 = vpop.f32.mrb[0].mxu0
        %v1754 = vpop.f32.mrb[0].mxu0
        %v1755 = vadd.f32 %v1203, %v1754
        %v1756 = vpop.f32.mrb[0].mxu0
        %1757 = vmatprep.mubr.bf16.mxu0 0
        %1758 = vmatmul.mubr.bf16.gmra.mrb[0].mxu0 %v846
        %v1759 = vpop.f32.mrb[0].mxu0
        %v1760 = vadd.f32 %v1208, %v1759
        %v1761 = vpop.f32.mrb[0].mxu0
        %v1762 = vpop.f32.mrb[0].mxu0
        %v1763 = vadd.f32 %v1211, %v1762
        %v1764 = vpop.f32.mrb[0].mxu0
        %1765 = vmatprep.mubr.bf16.mxu0 0
        %1766 = vmatmul.mubr.bf16.gmra.mrb[0].mxu0 %v847
        %v1767 = vpop.f32.mrb[0].mxu0
        %v1768 = vadd.f32 %v1216, %v1767
        %v1769 = vpop.f32.mrb[0].mxu0
        %v1770 = vpop.f32.mrb[0].mxu0
        %v1771 = vadd.f32 %v1219, %v1770
        %v1772 = vpop.f32.mrb[0].mxu0
        %1773 = vmatprep.mubr.bf16.mxu0 0
        %1774 = vmatmul.mubr.bf16.gmra.mrb[0].mxu0 %v848
        %v1775 = vpop.f32.mrb[0].mxu0
        %v1776 = vadd.f32 %v1224, %v1775
        %v1777 = vpop.f32.mrb[0].mxu0
        %v1778 = vpop.f32.mrb[0].mxu0
        %v1779 = vadd.f32 %v1227, %v1778
        %v1780 = vpop.f32.mrb[0].mxu0
        %1781 = vmatprep.mubr.bf16.mxu0 0
        %1782 = vmatmul.mubr.bf16.gmra.mrb[0].mxu0 %v849
        %v1783 = vpop.f32.mrb[0].mxu0
        %v1784 = vadd.f32 %v1232, %v1783
        %v1785 = vpop.f32.mrb[0].mxu0
        %v1786 = vpop.f32.mrb[0].mxu0
        %v1787 = vadd.f32 %v1235, %v1786
        %v1788 = vpop.f32.mrb[0].mxu0
        %1789 = vmatprep.mubr.bf16.mxu0 0
        %1790 = vmatmul.mubr.bf16.gmra.mrb[0].mxu0 %v850
        %v1791 = vpop.f32.mrb[0].mxu0
        %v1792 = vadd.f32 %v1240, %v1791
        %v1793 = vpop.f32.mrb[0].mxu0
        %v1794 = vpop.f32.mrb[0].mxu0
        %v1795 = vadd.f32 %v1243, %v1794
        %v1796 = vpop.f32.mrb[0].mxu0
        %1797 = vmatprep.mubr.bf16.mxu0 0
        %1798 = vmatmul.mubr.bf16.gmra.mrb[0].mxu0 %v851
        %v1799 = vpop.f32.mrb[0].mxu0
        %v1800 = vadd.f32 %v1248, %v1799
        %v1801 = vpop.f32.mrb[0].mxu0
        %v1802 = vpop.f32.mrb[0].mxu0
        %v1803 = vadd.f32 %v1251, %v1802
        %v1804 = vpop.f32.mrb[0].mxu0
        %1805 = vmatprep.mubr.bf16.mxu0 0
        %1806 = vmatmul.mubr.bf16.gmra.mrb[0].mxu0 %v852
        %v1807 = vpop.f32.mrb[0].mxu0
        %v1808 = vadd.f32 %v1256, %v1807
        %v1809 = vpop.f32.mrb[0].mxu0
        %v1810 = vpop.f32.mrb[0].mxu0
        %v1811 = vadd.f32 %v1259, %v1810
        %v1812 = vpop.f32.mrb[0].mxu0
        %1813 = vmatprep.mubr.bf16.mxu0 0
        %1814 = vmatmul.mubr.bf16.gmra.mrb[0].mxu0 %v853
        %v1815 = vpop.f32.mrb[0].mxu0
        %v1816 = vadd.f32 %v1264, %v1815
        %v1817 = vpop.f32.mrb[0].mxu0
        %v1818 = vpop.f32.mrb[0].mxu0
        %v1819 = vadd.f32 %v1267, %v1818
        %v1820 = vpop.f32.mrb[0].mxu0
        %1821 = vmatprep.mubr.bf16.mxu0 0
        %1822 = vmatmul.mubr.bf16.gmra.mrb[0].mxu0 %v854
        %v1823 = vpop.f32.mrb[0].mxu0
        %v1824 = vadd.f32 %v1272, %v1823
        %v1825 = vpop.f32.mrb[0].mxu0
        %v1826 = vpop.f32.mrb[0].mxu0
        %v1827 = vadd.f32 %v1275, %v1826
        %v1828 = vpop.f32.mrb[0].mxu0
        %1829 = vmatprep.mubr.bf16.mxu0 0
        %1830 = vmatmul.mubr.bf16.gmra.mrb[0].mxu0 %v855
        %v1831 = vpop.f32.mrb[0].mxu0
        %v1832 = vadd.f32 %v1280, %v1831
        %v1833 = vpop.f32.mrb[0].mxu0
        %v1834 = vpop.f32.mrb[0].mxu0
        %v1835 = vadd.f32 %v1283, %v1834
        %v1836 = vpop.f32.mrb[0].mxu0
        %1837 = vmatprep.mubr.bf16.mxu0 0
        %1838 = vmatmul.mubr.bf16.gmra.mrb[0].mxu0 %v856
        %v1839 = vpop.f32.mrb[0].mxu0
        %v1840 = vadd.f32 %v1288, %v1839
        %v1841 = vpop.f32.mrb[0].mxu0
        %v1842 = vpop.f32.mrb[0].mxu0
        %v1843 = vadd.f32 %v1291, %v1842
        %v1844 = vpop.f32.mrb[0].mxu0
        %1845 = vmatprep.mubr.bf16.mxu0 0
        %1846 = vmatmul.mubr.bf16.gmra.mrb[0].mxu0 %v857
        %v1847 = vpop.f32.mrb[0].mxu0
        %v1848 = vadd.f32 %v1296, %v1847
        %v1849 = vpop.f32.mrb[0].mxu0
        %v1850 = vpop.f32.mrb[0].mxu0
        %v1851 = vadd.f32 %v1299, %v1850
        %v1852 = vpop.f32.mrb[0].mxu0
        %1853 = vmatprep.mubr.bf16.mxu0 0
        %1854 = vmatmul.mubr.bf16.gmra.mrb[0].mxu0 %v858
        %v1855 = vpop.f32.mrb[0].mxu0
        %v1856 = vadd.f32 %v1304, %v1855
        %v1857 = vpop.f32.mrb[0].mxu0
        %v1858 = vpop.f32.mrb[0].mxu0
        %v1859 = vadd.f32 %v1307, %v1858
        %v1860 = vpop.f32.mrb[0].mxu0
        %1861 = vmatprep.mubr.bf16.mxu0 0
        %1862 = vmatmul.mubr.bf16.gmra.mrb[0].mxu0 %v859
        %v1863 = vpop.f32.mrb[0].mxu0
        %v1864 = vadd.f32 %v1312, %v1863
        %v1865 = vpop.f32.mrb[0].mxu0
        %v1866 = vpop.f32.mrb[0].mxu0
        %v1867 = vadd.f32 %v1315, %v1866
        %v1868 = vpop.f32.mrb[0].mxu0
        %1869 = vmatprep.mubr.bf16.mxu0 0
        %1870 = vmatmul.mubr.bf16.gmra.mrb[0].mxu0 %v860
        %v1871 = vpop.f32.mrb[0].mxu0
        %v1872 = vadd.f32 %v1320, %v1871
        %v1873 = vpop.f32.mrb[0].mxu0
        %v1874 = vpop.f32.mrb[0].mxu0
        %v1875 = vadd.f32 %v1323, %v1874
        %v1876 = vpop.f32.mrb[0].mxu0
        %1877 = vmatprep.mubr.bf16.mxu0 0
        %1878 = vmatmul.mubr.bf16.gmra.mrb[0].mxu0 %v861
        %v1879 = vpop.f32.mrb[0].mxu0
        %v1880 = vadd.f32 %v1328, %v1879
        %v1881 = vpop.f32.mrb[0].mxu0
        %v1882 = vpop.f32.mrb[0].mxu0
        %v1883 = vadd.f32 %v1331, %v1882
        %v1884 = vpop.f32.mrb[0].mxu0
        %1885 = vmatprep.mubr.bf16.mxu0 0
        %1886 = vmatmul.mubr.bf16.gmra.mrb[0].mxu0 %v862
        %v1887 = vpop.f32.mrb[0].mxu0
        %v1888 = vadd.f32 %v1336, %v1887
        %v1889 = vpop.f32.mrb[0].mxu0
        %v1890 = vpop.f32.mrb[0].mxu0
        %v1891 = vadd.f32 %v1339, %v1890
        %v1892 = vpop.f32.mrb[0].mxu0
        %1893 = vmatprep.mubr.bf16.mxu0 0
        %1894 = vmatmul.mubr.bf16.gmra.mrb[0].mxu0 %v863
        %v1895 = vpop.f32.mrb[0].mxu0
        %v1896 = vadd.f32 %v1344, %v1895
        %v1897 = vpop.f32.mrb[0].mxu0
        %v1898 = vpop.f32.mrb[0].mxu0
        %v1899 = vadd.f32 %v1347, %v1898
        %v1900 = vpop.f32.mrb[0].mxu0
        %1901 = vmatprep.mubr.bf16.mxu0 0
        %1902 = vmatmul.mubr.bf16.gmra.mrb[0].mxu0 %v864
        %v1903 = vpop.f32.mrb[0].mxu0
        %v1904 = vadd.f32 %v1352, %v1903
        %v1905 = vpop.f32.mrb[0].mxu0
        %v1906 = vpop.f32.mrb[0].mxu0
        %v1907 = vadd.f32 %v1355, %v1906
        %v1908 = vpop.f32.mrb[0].mxu0
        %1909 = vmatprep.mubr.bf16.mxu0 0
        %1910 = vmatmul.mubr.bf16.gmra.mrb[0].mxu0 %v865
        %v1911 = vpop.f32.mrb[0].mxu0
        %v1912 = vadd.f32 %v1360, %v1911
        %v1913 = vpop.f32.mrb[0].mxu0
        %v1914 = vpop.f32.mrb[0].mxu0
        %v1915 = vadd.f32 %v1363, %v1914
        %v1916 = vpop.f32.mrb[0].mxu0
        %1917 = vmatprep.mubr.bf16.mxu0 0
        %1918 = vmatmul.mubr.bf16.gmra.mrb[0].mxu0 %v866
        %v1919 = vpop.f32.mrb[0].mxu0
        %v1920 = vadd.f32 %v1368, %v1919
        %v1921 = vpop.f32.mrb[0].mxu0
        %v1922 = vpop.f32.mrb[0].mxu0
        %v1923 = vadd.f32 %v1371, %v1922
        %v1924 = vpop.f32.mrb[0].mxu0
        %1925 = vmatprep.mubr.bf16.mxu0 0
        %1926 = vmatmul.mubr.bf16.gmra.mrb[0].mxu0 %v867
        %v1927 = vpop.f32.mrb[0].mxu0
        %v1928 = vadd.f32 %v1376, %v1927
        %v1929 = vpop.f32.mrb[0].mxu0
        %v1930 = vpop.f32.mrb[0].mxu0
        %v1931 = vadd.f32 %v1379, %v1930
        %v1932 = vpop.f32.mrb[0].mxu0
        %1933 = vmatprep.mubr.bf16.mxu0 0
        %1934 = vmatmul.mubr.bf16.gmra.mrb[0].mxu0 %v868
        %v1935 = vpop.f32.mrb[0].mxu0
        %v1936 = vadd.f32 %v1384, %v1935
        %v1937 = vpop.f32.mrb[0].mxu0
        %v1938 = vpop.f32.mrb[0].mxu0
        %v1939 = vadd.f32 %v1387, %v1938
        %v1940 = vpop.f32.mrb[0].mxu0
        %1941 = vmatprep.mubr.bf16.mxu0 0
        %1942 = vmatmul.mubr.bf16.gmra.mrb[0].mxu0 %v869
        %v1943 = vpop.f32.mrb[0].mxu0
        %v1944 = vadd.f32 %v1392, %v1943
        %v1945 = vpop.f32.mrb[0].mxu0
        %v1946 = vpop.f32.mrb[0].mxu0
        %v1947 = vadd.f32 %v1395, %v1946
        %v1948 = vpop.f32.mrb[0].mxu0
        %1949 = vmatprep.mubr.bf16.mxu0 0
        %1950 = vmatmul.mubr.bf16.gmra.mrb[0].mxu0 %v870
        %v1951 = vpop.f32.mrb[0].mxu0
        %v1952 = vadd.f32 %v1400, %v1951
        %v1953 = vpop.f32.mrb[0].mxu0
        %v1954 = vpop.f32.mrb[0].mxu0
        %v1955 = vadd.f32 %v1403, %v1954
        %v1956 = vpop.f32.mrb[0].mxu0
        %1957 = vmatprep.mubr.bf16.mxu0 0
        %1958 = vmatmul.mubr.bf16.gmra.mrb[0].mxu0 %v871
        %v1959 = vpop.f32.mrb[0].mxu0
        %v1960 = vadd.f32 %v1408, %v1959
        %v1961 = vpop.f32.mrb[0].mxu0
        %v1962 = vpop.f32.mrb[0].mxu0
        %v1963 = vadd.f32 %v1411, %v1962
        %v1964 = vpop.f32.mrb[0].mxu0
        %1965 = vmatprep.mubr.bf16.mxu0 0
        %1966 = vmatmul.mubr.bf16.gmra.mrb[0].mxu0 %v872
        %v1967 = vpop.f32.mrb[0].mxu0
        %v1968 = vadd.f32 %v1416, %v1967
        %v1969 = vpop.f32.mrb[0].mxu0
        %v1970 = vpop.f32.mrb[0].mxu0
        %v1971 = vadd.f32 %v1419, %v1970
        %v1972 = vpop.f32.mrb[0].mxu0
        %1973 = vmatprep.mubr.bf16.mxu0 0
        %1974 = vmatmul.mubr.bf16.gmra.mrb[0].mxu0 %v873
        %v1975 = vpop.f32.mrb[0].mxu0
        %v1976 = vadd.f32 %v1424, %v1975
        %v1977 = vpop.f32.mrb[0].mxu0
        %v1978 = vpop.f32.mrb[0].mxu0
        %v1979 = vadd.f32 %v1427, %v1978
        %v1980 = vpop.f32.mrb[0].mxu0
        %1981 = vmatprep.mubr.bf16.mxu0 0
        %1982 = vmatmul.mubr.bf16.gmra.mrb[0].mxu0 %v874
        %v1983 = vpop.f32.mrb[0].mxu0
        %v1984 = vadd.f32 %v1432, %v1983
        %v1985 = vpop.f32.mrb[0].mxu0
        %v1986 = vpop.f32.mrb[0].mxu0
        %v1987 = vadd.f32 %v1435, %v1986
        %v1988 = vpop.f32.mrb[0].mxu0
        %1989 = vmatprep.mubr.bf16.mxu0 0
        %1990 = vmatmul.mubr.bf16.gmra.mrb[0].mxu0 %v875
        %v1991 = vpop.f32.mrb[0].mxu0
        %v1992 = vadd.f32 %v1440, %v1991
        %v1993 = vpop.f32.mrb[0].mxu0
        %v1994 = vpop.f32.mrb[0].mxu0
        %v1995 = vadd.f32 %v1443, %v1994
        %v1996 = vpop.f32.mrb[0].mxu0
        %1997 = vmatprep.mubr.bf16.mxu0 0
        %1998 = vmatmul.mubr.bf16.gmra.mrb[0].mxu0 %v876
        %v1999 = vpop.f32.mrb[0].mxu0
        %v2000 = vadd.f32 %v1448, %v1999
        %v2001 = vpop.f32.mrb[0].mxu0
        %v2002 = vpop.f32.mrb[0].mxu0
        %v2003 = vadd.f32 %v1451, %v2002
        %v2004 = vpop.f32.mrb[0].mxu0
        %2005 = vmatprep.mubr.bf16.mxu0 0
        %2006 = vmatmul.mubr.bf16.gmra.mrb[0].mxu0 %v877
        %v2007 = vpop.f32.mrb[0].mxu0
        %v2008 = vadd.f32 %v1456, %v2007
        %v2009 = vpop.f32.mrb[0].mxu0
        %v2010 = vpop.f32.mrb[0].mxu0
        %v2011 = vadd.f32 %v1459, %v2010
        %v2012 = vpop.f32.mrb[0].mxu0
        %2013 = vmatprep.mubr.bf16.mxu0 0
        %2014 = vmatmul.mubr.bf16.gmra.mrb[0].mxu0 %v878
        %v2015 = vpop.f32.mrb[0].mxu0
        %v2016 = vadd.f32 %v1464, %v2015
        %v2017 = vpop.f32.mrb[0].mxu0
        %v2018 = vpop.f32.mrb[0].mxu0
        %v2019 = vadd.f32 %v1467, %v2018
        %v2020 = vpop.f32.mrb[0].mxu0
        %2021 = vmatprep.mubr.bf16.mxu0 0
        %2022 = vmatmul.mubr.bf16.gmra.mrb[0].mxu0 %v879
        %v2023 = vpop.f32.mrb[0].mxu0
        %v2024 = vadd.f32 %v1472, %v2023
        %v2025 = vpop.f32.mrb[0].mxu0
        %v2026 = vpop.f32.mrb[0].mxu0
        %v2027 = vadd.f32 %v1475, %v2026
        %v2028 = vpop.f32.mrb[0].mxu0
        %2029 = vmatprep.mubr.bf16.mxu0 0
        %2030 = vmatmul.mubr.bf16.gmra.mrb[0].mxu0 %v880
        %v2031 = vpop.f32.mrb[0].mxu0
        %v2032 = vadd.f32 %v1480, %v2031
        %v2033 = vpop.f32.mrb[0].mxu0
        %v2034 = vpop.f32.mrb[0].mxu0
        %v2035 = vadd.f32 %v1483, %v2034
        %v2036 = vpop.f32.mrb[0].mxu0
        %2037 = vmatprep.mubr.bf16.mxu0 0
        %2038 = vmatmul.mubr.bf16.gmra.mrb[0].mxu0 %v881
        %v2039 = vpop.f32.mrb[0].mxu0
        %v2040 = vadd.f32 %v1488, %v2039
        %v2041 = vpop.f32.mrb[0].mxu0
        %v2042 = vpop.f32.mrb[0].mxu0
        %v2043 = vadd.f32 %v1491, %v2042
        %v2044 = vpop.f32.mrb[0].mxu0
        %2045 = vmatprep.mubr.bf16.mxu0 0
        %2046 = vmatmul.mubr.bf16.gmra.mrb[0].mxu0 %v882
        %v2047 = vpop.f32.mrb[0].mxu0
        %v2048 = vadd.f32 %v1496, %v2047
        %v2049 = vpop.f32.mrb[0].mxu0
        %v2050 = vpop.f32.mrb[0].mxu0
        %v2051 = vadd.f32 %v1499, %v2050
        %v2052 = vpop.f32.mrb[0].mxu0
        %2053 = vmatprep.mubr.bf16.mxu0 0
        %2054 = vmatmul.mubr.bf16.gmra.mrb[0].mxu0 %v883
        %v2055 = vpop.f32.mrb[0].mxu0
        %v2056 = vadd.f32 %v1504, %v2055
        %v2057 = vpop.f32.mrb[0].mxu0
        %v2058 = vpop.f32.mrb[0].mxu0
        %v2059 = vadd.f32 %v1507, %v2058
        %v2060 = vpop.f32.mrb[0].mxu0
        %2061 = vmatprep.mubr.bf16.mxu0 0
        %2062 = vmatmul.mubr.bf16.gmra.mrb[0].mxu0 %v884
        %v2063 = vpop.f32.mrb[0].mxu0
        %v2064 = vadd.f32 %v1512, %v2063
        %v2065 = vpop.f32.mrb[0].mxu0
        %v2066 = vpop.f32.mrb[0].mxu0
        %v2067 = vadd.f32 %v1515, %v2066
        %v2068 = vpop.f32.mrb[0].mxu0
        %2069 = vmatprep.mubr.bf16.mxu0 0
        %2070 = vmatmul.mubr.bf16.gmra.mrb[0].mxu0 %v885
        %v2071 = vpop.f32.mrb[0].mxu0
        %v2072 = vadd.f32 %v1520, %v2071
        %v2073 = vpop.f32.mrb[0].mxu0
        %v2074 = vpop.f32.mrb[0].mxu0
        %v2075 = vadd.f32 %v1523, %v2074
        %v2076 = vpop.f32.mrb[0].mxu0
        %2077 = vmatprep.mubr.bf16.mxu0 0
        %2078 = vmatmul.mubr.bf16.gmra.mrb[0].mxu0 %v886
        %v2079 = vpop.f32.mrb[0].mxu0
        %v2080 = vadd.f32 %v1528, %v2079
        %v2081 = vpop.f32.mrb[0].mxu0
        %v2082 = vpop.f32.mrb[0].mxu0
        %v2083 = vadd.f32 %v1531, %v2082
        %v2084 = vpop.f32.mrb[0].mxu0
        %2085 = vmatprep.mubr.bf16.mxu0 0
        %2086 = vmatmul.mubr.bf16.gmra.mrb[0].mxu0 %v887
        %v2087 = vpop.f32.mrb[0].mxu0
        %v2088 = vadd.f32 %v1536, %v2087
        %v2089 = vpop.f32.mrb[0].mxu0
        %v2090 = vpop.f32.mrb[0].mxu0
        %v2091 = vadd.f32 %v1539, %v2090
        %v2092 = vpop.f32.mrb[0].mxu0
        %2093 = vmatprep.mubr.bf16.mxu0 0
        %2094 = vmatmul.mubr.bf16.gmra.mrb[0].mxu0 %v888
        %v2095 = vpop.f32.mrb[0].mxu0
        %v2096 = vadd.f32 %v1544, %v2095
        %v2097 = vpop.f32.mrb[0].mxu0
        %v2098 = vpop.f32.mrb[0].mxu0
        %v2099 = vadd.f32 %v1547, %v2098
        %v2100 = vpop.f32.mrb[0].mxu0
        %2101 = vmatprep.mubr.bf16.mxu0 0
        %2102 = vmatmul.mubr.bf16.gmra.mrb[0].mxu0 %v889
        %v2103 = vpop.f32.mrb[0].mxu0
        %v2104 = vadd.f32 %v1552, %v2103
        %v2105 = vpop.f32.mrb[0].mxu0
        %v2106 = vpop.f32.mrb[0].mxu0
        %v2107 = vadd.f32 %v1555, %v2106
        %v2108 = vpop.f32.mrb[0].mxu0
        %2109 = vmatprep.mubr.bf16.mxu0 0
        %2110 = vmatmul.mubr.bf16.gmra.mrb[0].mxu0 %v890
        %v2111 = vpop.f32.mrb[0].mxu0
        %v2112 = vadd.f32 %v1560, %v2111
        %v2113 = vpop.f32.mrb[0].mxu0
        %v2114 = vpop.f32.mrb[0].mxu0
        %v2115 = vadd.f32 %v1563, %v2114
        %v2116 = vpop.f32.mrb[0].mxu0
        %2117 = vmatprep.mubr.bf16.mxu0 0
        %2118 = vmatmul.mubr.bf16.gmra.mrb[0].mxu0 %v891
        %v2119 = vpop.f32.mrb[0].mxu0
        %v2120 = vadd.f32 %v1568, %v2119
        %v2121 = vpop.f32.mrb[0].mxu0
        %v2122 = vpop.f32.mrb[0].mxu0
        %v2123 = vadd.f32 %v1571, %v2122
        %v2124 = vpop.f32.mrb[0].mxu0
        %2125 = vmatprep.mubr.bf16.mxu0 0
        %2126 = vmatmul.mubr.bf16.gmra.mrb[0].mxu0 %v892
        %v2127 = vpop.f32.mrb[0].mxu0
        %v2128 = vadd.f32 %v1576, %v2127
        %v2129 = vpop.f32.mrb[0].mxu0
        %v2130 = vpop.f32.mrb[0].mxu0
        %v2131 = vadd.f32 %v1579, %v2130
        %v2132 = vpop.f32.mrb[0].mxu0
        %2133 = vmatprep.mubr.bf16.mxu0 0
        %2134 = vmatmul.mubr.bf16.gmra.mrb[0].mxu0 %v893
        %v2135 = vpop.f32.mrb[0].mxu0
        %v2136 = vadd.f32 %v1584, %v2135
        %v2137 = vpop.f32.mrb[0].mxu0
        %v2138 = vpop.f32.mrb[0].mxu0
        %v2139 = vadd.f32 %v1587, %v2138
        %v2140 = vpop.f32.mrb[0].mxu0
        %2141 = vmatprep.mubr.bf16.mxu0 0
        %2142 = vmatmul.mubr.bf16.gmra.mrb[0].mxu0 %v894
        %v2143 = vpop.f32.mrb[0].mxu0
        %v2144 = vadd.f32 %v1592, %v2143
        %v2145 = vpop.f32.mrb[0].mxu0
        %v2146 = vpop.f32.mrb[0].mxu0
        %v2147 = vadd.f32 %v1595, %v2146
        %v2148 = vpop.f32.mrb[0].mxu0
        %2149 = vmatprep.mubr.bf16.mxu0 0
        %2150 = vmatmul.mubr.bf16.gmra.mrb[0].mxu0 %v895
        %v2151 = vpop.f32.mrb[0].mxu0
        %v2152 = vadd.f32 %v1600, %v2151
        %v2153 = vpop.f32.mrb[0].mxu0
        %v2154 = vpop.f32.mrb[0].mxu0
        %v2155 = vadd.f32 %v1603, %v2154
        %v2156 = vpop.f32.mrb[0].mxu0
        %2157 = vmatprep.mubr.bf16.mxu0 0
        %2158 = vmatmul.mubr.bf16.gmra.mrb[0].mxu0 %v896
        %v2159 = vpop.f32.mrb[0].mxu0
        %v2160 = vadd.f32 %v1608, %v2159
        %v2161 = vpop.f32.mrb[0].mxu0
        %v2162 = vpop.f32.mrb[0].mxu0
        %v2163 = vadd.f32 %v1611, %v2162
        %v2164 = vpop.f32.mrb[0].mxu0
        %2165 = vmatprep.mubr.bf16.mxu0 0
        %2166 = vmatmul.mubr.bf16.gmra.mrb[0].mxu0 %v897
        %v2167 = vpop.f32.mrb[0].mxu0
        %v2168 = vadd.f32 %v1616, %v2167
        %v2169 = vpop.f32.mrb[0].mxu0
        %v2170 = vpop.f32.mrb[0].mxu0
        %v2171 = vadd.f32 %v1619, %v2170
        %v2172 = vpop.f32.mrb[0].mxu0
        %2173 = vmatprep.mubr.bf16.mxu0 0
        %2174 = vmatmul.mubr.bf16.gmra.mrb[0].mxu0 %v898
        %v2175 = vpop.f32.mrb[0].mxu0
        %v2176 = vadd.f32 %v1624, %v2175
        %v2177 = vpop.f32.mrb[0].mxu0
        %v2178 = vpop.f32.mrb[0].mxu0
        %v2179 = vadd.f32 %v1627, %v2178
        %v2180 = vpop.f32.mrb[0].mxu0
        %2181 = vmatprep.mubr.bf16.mxu0 0
        %2182 = vmatmul.mubr.bf16.gmra.mrb[0].mxu0 %v899
        %v2183 = vpop.f32.mrb[0].mxu0
        %v2184 = vadd.f32 %v1632, %v2183
        %v2185 = vpop.f32.mrb[0].mxu0
        %v2186 = vpop.f32.mrb[0].mxu0
        %v2187 = vadd.f32 %v1635, %v2186
        %v2188 = vpop.f32.mrb[0].mxu0
        %2189 = vmatprep.mubr.bf16.mxu0 0
        %2190 = vmatmul.mubr.bf16.gmra.mrb[0].mxu0 %v900
        %v2191 = vpop.f32.mrb[0].mxu0
        %v2192 = vadd.f32 %v1640, %v2191
        %v2193 = vpop.f32.mrb[0].mxu0
        %v2194 = vpop.f32.mrb[0].mxu0
        %v2195 = vadd.f32 %v1643, %v2194
        %v2196 = vpop.f32.mrb[0].mxu0
        %2197 = vmatprep.mubr.bf16.mxu0 0
        %2198 = vmatmul.mubr.bf16.gmra.mrb[0].mxu0 %v901
        %v2199 = vpop.f32.mrb[0].mxu0
        %v2200 = vadd.f32 %v1648, %v2199
        %v2201 = vpop.f32.mrb[0].mxu0
        %v2202 = vpop.f32.mrb[0].mxu0
        %v2203 = vpop.f32.mrb[0].mxu0
        %2204 = vdwg.mxu0
        %v2205 = vmax.f32 %v1688, 0.0
        %v2206 = vmax.f32 %v1691, 0.0
        %v2207 = vmax.f32 %v1696, 0.0
        %v2208 = vmax.f32 %v1699, 0.0
        %v2209 = vmax.f32 %v1704, 0.0
        %v2210 = vmax.f32 %v1707, 0.0
        %v2211 = vmax.f32 %v1712, 0.0
        %v2212 = vmax.f32 %v1715, 0.0
        %v2213 = vmax.f32 %v1720, 0.0
        %v2214 = vmax.f32 %v1723, 0.0
        %v2215 = vmax.f32 %v1728, 0.0
        %v2216 = vmax.f32 %v1731, 0.0
        %v2217 = vmax.f32 %v1736, 0.0
        %v2218 = vmax.f32 %v1739, 0.0
        %v2219 = vmax.f32 %v1744, 0.0
        %v2220 = vmax.f32 %v1747, 0.0
        %v2221 = vmax.f32 %v1752, 0.0
        %v2222 = vmax.f32 %v1755, 0.0
        %v2223 = vmax.f32 %v1760, 0.0
        %v2224 = vmax.f32 %v1763, 0.0
        %v2225 = vmax.f32 %v1768, 0.0
        %v2226 = vmax.f32 %v1771, 0.0
        %v2227 = vmax.f32 %v1776, 0.0
        %v2228 = vmax.f32 %v1779, 0.0
        %v2229 = vmax.f32 %v1784, 0.0
        %v2230 = vmax.f32 %v1787, 0.0
        %v2231 = vmax.f32 %v1792, 0.0
        %v2232 = vmax.f32 %v1795, 0.0
        %v2233 = vmax.f32 %v1800, 0.0
        %v2234 = vmax.f32 %v1803, 0.0
        %v2235 = vmax.f32 %v1808, 0.0
        %v2236 = vmax.f32 %v1811, 0.0
        %v2237 = vmax.f32 %v1816, 0.0
        %v2238 = vmax.f32 %v1819, 0.0
        %v2239 = vmax.f32 %v1824, 0.0
        %v2240 = vmax.f32 %v1827, 0.0
        %v2241 = vmax.f32 %v1832, 0.0
        %v2242 = vmax.f32 %v1835, 0.0
        %v2243 = vmax.f32 %v1840, 0.0
        %v2244 = vmax.f32 %v1843, 0.0
        %v2245 = vmax.f32 %v1848, 0.0
        %v2246 = vmax.f32 %v1851, 0.0
        %v2247 = vmax.f32 %v1856, 0.0
        %v2248 = vmax.f32 %v1859, 0.0
        %v2249 = vmax.f32 %v1864, 0.0
        %v2250 = vmax.f32 %v1867, 0.0
        %v2251 = vmax.f32 %v1872, 0.0
        %v2252 = vmax.f32 %v1875, 0.0
        %v2253 = vmax.f32 %v1880, 0.0
        %v2254 = vmax.f32 %v1883, 0.0
        %v2255 = vmax.f32 %v1888, 0.0
        %v2256 = vmax.f32 %v1891, 0.0
        %v2257 = vmax.f32 %v1896, 0.0
        %v2258 = vmax.f32 %v1899, 0.0
        %v2259 = vmax.f32 %v1904, 0.0
        %v2260 = vmax.f32 %v1907, 0.0
        %v2261 = vmax.f32 %v1912, 0.0
        %v2262 = vmax.f32 %v1915, 0.0
        %v2263 = vmax.f32 %v1920, 0.0
        %v2264 = vmax.f32 %v1923, 0.0
        %v2265 = vmax.f32 %v1928, 0.0
        %v2266 = vmax.f32 %v1931, 0.0
        %v2267 = vmax.f32 %v1936, 0.0
        %v2268 = vmax.f32 %v1939, 0.0
        %v2269 = vmax.f32 %v1944, 0.0
        %v2270 = vmax.f32 %v1947, 0.0
        %v2271 = vmax.f32 %v1952, 0.0
        %v2272 = vmax.f32 %v1955, 0.0
        %v2273 = vmax.f32 %v1960, 0.0
        %v2274 = vmax.f32 %v1963, 0.0
        %v2275 = vmax.f32 %v1968, 0.0
        %v2276 = vmax.f32 %v1971, 0.0
        %v2277 = vmax.f32 %v1976, 0.0
        %v2278 = vmax.f32 %v1979, 0.0
        %v2279 = vmax.f32 %v1984, 0.0
        %v2280 = vmax.f32 %v1987, 0.0
        %v2281 = vmax.f32 %v1992, 0.0
        %v2282 = vmax.f32 %v1995, 0.0
        %v2283 = vmax.f32 %v2000, 0.0
        %v2284 = vmax.f32 %v2003, 0.0
        %v2285 = vmax.f32 %v2008, 0.0
        %v2286 = vmax.f32 %v2011, 0.0
        %v2287 = vmax.f32 %v2016, 0.0
        %v2288 = vmax.f32 %v2019, 0.0
        %v2289 = vmax.f32 %v2024, 0.0
        %v2290 = vmax.f32 %v2027, 0.0
        %v2291 = vmax.f32 %v2032, 0.0
        %v2292 = vmax.f32 %v2035, 0.0
        %v2293 = vmax.f32 %v2040, 0.0
        %v2294 = vmax.f32 %v2043, 0.0
        %v2295 = vmax.f32 %v2048, 0.0
        %v2296 = vmax.f32 %v2051, 0.0
        %v2297 = vmax.f32 %v2056, 0.0
        %v2298 = vmax.f32 %v2059, 0.0
        %v2299 = vmax.f32 %v2064, 0.0
        %v2300 = vmax.f32 %v2067, 0.0
        %v2301 = vmax.f32 %v2072, 0.0
        %v2302 = vmax.f32 %v2075, 0.0
        %v2303 = vmax.f32 %v2080, 0.0
        %v2304 = vmax.f32 %v2083, 0.0
        %v2305 = vmax.f32 %v2088, 0.0
        %v2306 = vmax.f32 %v2091, 0.0
        %v2307 = vmax.f32 %v2096, 0.0
        %v2308 = vmax.f32 %v2099, 0.0
        %v2309 = vmax.f32 %v2104, 0.0
        %v2310 = vmax.f32 %v2107, 0.0
        %v2311 = vmax.f32 %v2112, 0.0
        %v2312 = vmax.f32 %v2115, 0.0
        %v2313 = vmax.f32 %v2120, 0.0
        %v2314 = vmax.f32 %v2123, 0.0
        %v2315 = vmax.f32 %v2128, 0.0
        %v2316 = vmax.f32 %v2131, 0.0
        %v2317 = vmax.f32 %v2136, 0.0
        %v2318 = vmax.f32 %v2139, 0.0
        %v2319 = vmax.f32 %v2144, 0.0
        %v2320 = vmax.f32 %v2147, 0.0
        %v2321 = vmax.f32 %v2152, 0.0
        %v2322 = vmax.f32 %v2155, 0.0
        %v2323 = vmax.f32 %v2160, 0.0
        %v2324 = vmax.f32 %v2163, 0.0
        %v2325 = vmax.f32 %v2168, 0.0
        %v2326 = vmax.f32 %v2171, 0.0
        %v2327 = vmax.f32 %v2176, 0.0
        %v2328 = vmax.f32 %v2179, 0.0
        %v2329 = vmax.f32 %v2184, 0.0
        %v2330 = vmax.f32 %v2187, 0.0
        %v2331 = vmax.f32 %v2192, 0.0
        %v2332 = vmax.f32 %v2195, 0.0
        %v2333 = vmax.f32 %v2200, 0.0
        %s2334 = ssub.s32 %s313, 1
        %v2335 = vlaneseq
        %v2336 = vshrl.u32 %v2335, 7
        %v2337 = vadd.s32 %v2336, 8
        %v2338 = vadd.s32 %v2336, 16
        %v2339 = vadd.s32 %v2336, 24
        %v2340 = vadd.s32 %v2336, 32
        %v2341 = vadd.s32 %v2336, 40
        %v2342 = vadd.s32 %v2336, 48
        %v2343 = vadd.s32 %v2336, 56
        %v2344 = vadd.s32 %v2336, 64
        %v2345 = vadd.s32 %v2336, 72
        %v2346 = vadd.s32 %v2336, 80
        %v2347 = vadd.s32 %v2336, 88
        %v2348 = vadd.s32 %v2336, 96
        %v2349 = vadd.s32 %v2336, 104
        %v2350 = vadd.s32 %v2336, 112
        %v2351 = vadd.s32 %v2336, 120
        %v2352 = vadd.s32 %v2336, 128
        %v2353 = vadd.s32 %v2336, 136
        %v2354 = vadd.s32 %v2336, 144
        %v2355 = vadd.s32 %v2336, 152
        %v2356 = vadd.s32 %v2336, 160
        %v2357 = vadd.s32 %v2336, 168
        %v2358 = vadd.s32 %v2336, 176
        %v2359 = vadd.s32 %v2336, 184
        %v2360 = vadd.s32 %v2336, 192
        %v2361 = vadd.s32 %v2336, 200
        %v2362 = vadd.s32 %v2336, 208
        %v2363 = vadd.s32 %v2336, 216
        %v2364 = vadd.s32 %v2336, 224
        %v2365 = vadd.s32 %v2336, 232
        %v2366 = vadd.s32 %v2336, 240
        %v2367 = vadd.s32 %v2336, 248
        %v2368 = vadd.s32 %v2336, 256
        %v2369 = vadd.s32 %v2336, 264
        %v2370 = vadd.s32 %v2336, 272
        %v2371 = vadd.s32 %v2336, 280
        %v2372 = vadd.s32 %v2336, 288
        %v2373 = vadd.s32 %v2336, 296
        %v2374 = vadd.s32 %v2336, 304
        %v2375 = vadd.s32 %v2336, 312
        %v2376 = vadd.s32 %v2336, 320
        %v2377 = vadd.s32 %v2336, 328
        %v2378 = vadd.s32 %v2336, 336
        %v2379 = vadd.s32 %v2336, 344
        %v2380 = vadd.s32 %v2336, 352
        %v2381 = vadd.s32 %v2336, 360
        %v2382 = vadd.s32 %v2336, 368
        %v2383 = vadd.s32 %v2336, 376
        %v2384 = vadd.s32 %v2336, 384
        %v2385 = vadd.s32 %v2336, 392
        %v2386 = vadd.s32 %v2336, 400
        %v2387 = vadd.s32 %v2336, 408
        %v2388 = vadd.s32 %v2336, 416
        %v2389 = vadd.s32 %v2336, 424
        %v2390 = vadd.s32 %v2336, 432
        %v2391 = vadd.s32 %v2336, 440
        %v2392 = vadd.s32 %v2336, 448
        %v2393 = vadd.s32 %v2336, 456
        %v2394 = vadd.s32 %v2336, 464
        %v2395 = vadd.s32 %v2336, 472
        %v2396 = vadd.s32 %v2336, 480
        %v2397 = vadd.s32 %v2336, 488
        %v2398 = vadd.s32 %v2336, 496
        %v2399 = vadd.s32 %v2336, 504
        %v2400 = vadd.s32 %v2336, 512
        %v2401 = vadd.s32 %v2336, 520
        %v2402 = vadd.s32 %v2336, 528
        %v2403 = vadd.s32 %v2336, 536
        %v2404 = vadd.s32 %v2336, 544
        %v2405 = vadd.s32 %v2336, 552
        %v2406 = vadd.s32 %v2336, 560
        %v2407 = vadd.s32 %v2336, 568
        %v2408 = vadd.s32 %v2336, 576
        %v2409 = vadd.s32 %v2336, 584
        %v2410 = vadd.s32 %v2336, 592
        %v2411 = vadd.s32 %v2336, 600
        %v2412 = vadd.s32 %v2336, 608
        %v2413 = vadd.s32 %v2336, 616
        %v2414 = vadd.s32 %v2336, 624
        %v2415 = vadd.s32 %v2336, 632
        %v2416 = vadd.s32 %v2336, 640
        %v2417 = vadd.s32 %v2336, 648
        %v2418 = vadd.s32 %v2336, 656
        %v2419 = vadd.s32 %v2336, 664
        %v2420 = vadd.s32 %v2336, 672
        %v2421 = vadd.s32 %v2336, 680
        %v2422 = vadd.s32 %v2336, 688
        %v2423 = vadd.s32 %v2336, 696
        %v2424 = vadd.s32 %v2336, 704
        %v2425 = vadd.s32 %v2336, 712
        %v2426 = vadd.s32 %v2336, 720
        %v2427 = vadd.s32 %v2336, 728
        %v2428 = vadd.s32 %v2336, 736
        %v2429 = vadd.s32 %v2336, 744
        %v2430 = vadd.s32 %v2336, 752
        %v2431 = vadd.s32 %v2336, 760
        %v2432 = vadd.s32 %v2336, 768
        %v2433 = vadd.s32 %v2336, 776
        %v2434 = vadd.s32 %v2336, 784
        %v2435 = vadd.s32 %v2336, 792
        %v2436 = vadd.s32 %v2336, 800
        %v2437 = vadd.s32 %v2336, 808
        %v2438 = vadd.s32 %v2336, 816
        %v2439 = vadd.s32 %v2336, 824
        %v2440 = vadd.s32 %v2336, 832
        %v2441 = vadd.s32 %v2336, 840
        %v2442 = vadd.s32 %v2336, 848
        %v2443 = vadd.s32 %v2336, 856
        %v2444 = vadd.s32 %v2336, 864
        %v2445 = vadd.s32 %v2336, 872
        %v2446 = vadd.s32 %v2336, 880
        %v2447 = vadd.s32 %v2336, 888
        %v2448 = vadd.s32 %v2336, 896
        %v2449 = vadd.s32 %v2336, 904
        %v2450 = vadd.s32 %v2336, 912
        %v2451 = vadd.s32 %v2336, 920
        %v2452 = vadd.s32 %v2336, 928
        %v2453 = vadd.s32 %v2336, 936
        %v2454 = vadd.s32 %v2336, 944
        %v2455 = vadd.s32 %v2336, 952
        %v2456 = vadd.s32 %v2336, 960
        %v2457 = vadd.s32 %v2336, 968
        %v2458 = vadd.s32 %v2336, 976
        %v2459 = vadd.s32 %v2336, 984
        %v2460 = vadd.s32 %v2336, 992
        %v2461 = vadd.s32 %v2336, 1000
        %v2462 = vadd.s32 %v2336, 1008
        %v2463 = vadd.s32 %v2336, 1016
        %v2464 = vadd.s32 %v2336, 1024
        %v2465 = vstv %s2334
        %v2466 = vadd.s32 %v2465, %v2336
        %v2467 = vadd.s32 %v2465, %v2337
        %v2468 = vadd.s32 %v2465, %v2338
        %v2469 = vadd.s32 %v2465, %v2339
        %v2470 = vadd.s32 %v2465, %v2340
        %v2471 = vadd.s32 %v2465, %v2341
        %v2472 = vadd.s32 %v2465, %v2342
        %v2473 = vadd.s32 %v2465, %v2343
        %v2474 = vadd.s32 %v2465, %v2344
        %v2475 = vadd.s32 %v2465, %v2345
        %v2476 = vadd.s32 %v2465, %v2346
        %v2477 = vadd.s32 %v2465, %v2347
        %v2478 = vadd.s32 %v2465, %v2348
        %v2479 = vadd.s32 %v2465, %v2349
        %v2480 = vadd.s32 %v2465, %v2350
        %v2481 = vadd.s32 %v2465, %v2351
        %v2482 = vadd.s32 %v2465, %v2352
        %v2483 = vadd.s32 %v2465, %v2353
        %v2484 = vadd.s32 %v2465, %v2354
        %v2485 = vadd.s32 %v2465, %v2355
        %v2486 = vadd.s32 %v2465, %v2356
        %v2487 = vadd.s32 %v2465, %v2357
        %v2488 = vadd.s32 %v2465, %v2358
        %v2489 = vadd.s32 %v2465, %v2359
        %v2490 = vadd.s32 %v2465, %v2360
        %v2491 = vadd.s32 %v2465, %v2361
        %v2492 = vadd.s32 %v2465, %v2362
        %v2493 = vadd.s32 %v2465, %v2363
        %v2494 = vadd.s32 %v2465, %v2364
        %v2495 = vadd.s32 %v2465, %v2365
        %v2496 = vadd.s32 %v2465, %v2366
        %v2497 = vadd.s32 %v2465, %v2367
        %v2498 = vadd.s32 %v2465, %v2368
        %v2499 = vadd.s32 %v2465, %v2369
        %v2500 = vadd.s32 %v2465, %v2370
        %v2501 = vadd.s32 %v2465, %v2371
        %v2502 = vadd.s32 %v2465, %v2372
        %v2503 = vadd.s32 %v2465, %v2373
        %v2504 = vadd.s32 %v2465, %v2374
        %v2505 = vadd.s32 %v2465, %v2375
        %v2506 = vadd.s32 %v2465, %v2376
        %v2507 = vadd.s32 %v2465, %v2377
        %v2508 = vadd.s32 %v2465, %v2378
        %v2509 = vadd.s32 %v2465, %v2379
        %v2510 = vadd.s32 %v2465, %v2380
        %v2511 = vadd.s32 %v2465, %v2381
        %v2512 = vadd.s32 %v2465, %v2382
        %v2513 = vadd.s32 %v2465, %v2383
        %v2514 = vadd.s32 %v2465, %v2384
        %v2515 = vadd.s32 %v2465, %v2385
        %v2516 = vadd.s32 %v2465, %v2386
        %v2517 = vadd.s32 %v2465, %v2387
        %v2518 = vadd.s32 %v2465, %v2388
        %v2519 = vadd.s32 %v2465, %v2389
        %v2520 = vadd.s32 %v2465, %v2390
        %v2521 = vadd.s32 %v2465, %v2391
        %v2522 = vadd.s32 %v2465, %v2392
        %v2523 = vadd.s32 %v2465, %v2393
        %v2524 = vadd.s32 %v2465, %v2394
        %v2525 = vadd.s32 %v2465, %v2395
        %v2526 = vadd.s32 %v2465, %v2396
        %v2527 = vadd.s32 %v2465, %v2397
        %v2528 = vadd.s32 %v2465, %v2398
        %v2529 = vadd.s32 %v2465, %v2399
        %v2530 = vadd.s32 %v2465, %v2400
        %v2531 = vadd.s32 %v2465, %v2401
        %v2532 = vadd.s32 %v2465, %v2402
        %v2533 = vadd.s32 %v2465, %v2403
        %v2534 = vadd.s32 %v2465, %v2404
        %v2535 = vadd.s32 %v2465, %v2405
        %v2536 = vadd.s32 %v2465, %v2406
        %v2537 = vadd.s32 %v2465, %v2407
        %v2538 = vadd.s32 %v2465, %v2408
        %v2539 = vadd.s32 %v2465, %v2409
        %v2540 = vadd.s32 %v2465, %v2410
        %v2541 = vadd.s32 %v2465, %v2411
        %v2542 = vadd.s32 %v2465, %v2412
        %v2543 = vadd.s32 %v2465, %v2413
        %v2544 = vadd.s32 %v2465, %v2414
        %v2545 = vadd.s32 %v2465, %v2415
        %v2546 = vadd.s32 %v2465, %v2416
        %v2547 = vadd.s32 %v2465, %v2417
        %v2548 = vadd.s32 %v2465, %v2418
        %v2549 = vadd.s32 %v2465, %v2419
        %v2550 = vadd.s32 %v2465, %v2420
        %v2551 = vadd.s32 %v2465, %v2421
        %v2552 = vadd.s32 %v2465, %v2422
        %v2553 = vadd.s32 %v2465, %v2423
        %v2554 = vadd.s32 %v2465, %v2424
        %v2555 = vadd.s32 %v2465, %v2425
        %v2556 = vadd.s32 %v2465, %v2426
        %v2557 = vadd.s32 %v2465, %v2427
        %v2558 = vadd.s32 %v2465, %v2428
        %v2559 = vadd.s32 %v2465, %v2429
        %v2560 = vadd.s32 %v2465, %v2430
        %v2561 = vadd.s32 %v2465, %v2431
        %v2562 = vadd.s32 %v2465, %v2432
        %v2563 = vadd.s32 %v2465, %v2433
        %v2564 = vadd.s32 %v2465, %v2434
        %v2565 = vadd.s32 %v2465, %v2435
        %v2566 = vadd.s32 %v2465, %v2436
        %v2567 = vadd.s32 %v2465, %v2437
        %v2568 = vadd.s32 %v2465, %v2438
        %v2569 = vadd.s32 %v2465, %v2439
        %v2570 = vadd.s32 %v2465, %v2440
        %v2571 = vadd.s32 %v2465, %v2441
        %v2572 = vadd.s32 %v2465, %v2442
        %v2573 = vadd.s32 %v2465, %v2443
        %v2574 = vadd.s32 %v2465, %v2444
        %v2575 = vadd.s32 %v2465, %v2445
        %v2576 = vadd.s32 %v2465, %v2446
        %v2577 = vadd.s32 %v2465, %v2447
        %v2578 = vadd.s32 %v2465, %v2448
        %v2579 = vadd.s32 %v2465, %v2449
        %v2580 = vadd.s32 %v2465, %v2450
        %v2581 = vadd.s32 %v2465, %v2451
        %v2582 = vadd.s32 %v2465, %v2452
        %v2583 = vadd.s32 %v2465, %v2453
        %v2584 = vadd.s32 %v2465, %v2454
        %v2585 = vadd.s32 %v2465, %v2455
        %v2586 = vadd.s32 %v2465, %v2456
        %v2587 = vadd.s32 %v2465, %v2457
        %v2588 = vadd.s32 %v2465, %v2458
        %v2589 = vadd.s32 %v2465, %v2459
        %v2590 = vadd.s32 %v2465, %v2460
        %v2591 = vadd.s32 %v2465, %v2461
        %v2592 = vadd.s32 %v2465, %v2462
        %v2593 = vadd.s32 %v2465, %v2463
        %v2594 = vadd.s32 %v2465, %v2464
        %vm2595 = vcmp.ge.s32.totalorder %v2466, 0
        %vm2596 = vcmp.ge.s32.totalorder %v2467, 0
        %vm2597 = vcmp.ge.s32.totalorder %v2468, 0
        %vm2598 = vcmp.ge.s32.totalorder %v2469, 0
        %vm2599 = vcmp.ge.s32.totalorder %v2470, 0
        %vm2600 = vcmp.ge.s32.totalorder %v2471, 0
        %vm2601 = vcmp.ge.s32.totalorder %v2472, 0
        %vm2602 = vcmp.ge.s32.totalorder %v2473, 0
        %vm2603 = vcmp.ge.s32.totalorder %v2474, 0
        %vm2604 = vcmp.ge.s32.totalorder %v2475, 0
        %vm2605 = vcmp.ge.s32.totalorder %v2476, 0
        %vm2606 = vcmp.ge.s32.totalorder %v2477, 0
        %vm2607 = vcmp.ge.s32.totalorder %v2478, 0
        %vm2608 = vcmp.ge.s32.totalorder %v2479, 0
        %vm2609 = vcmp.ge.s32.totalorder %v2480, 0
        %vm2610 = vcmp.ge.s32.totalorder %v2481, 0
        %vm2611 = vcmp.ge.s32.totalorder %v2482, 0
        %vm2612 = vcmp.ge.s32.totalorder %v2483, 0
        %vm2613 = vcmp.ge.s32.totalorder %v2484, 0
        %vm2614 = vcmp.ge.s32.totalorder %v2485, 0
        %vm2615 = vcmp.ge.s32.totalorder %v2486, 0
        %vm2616 = vcmp.ge.s32.totalorder %v2487, 0
        %vm2617 = vcmp.ge.s32.totalorder %v2488, 0
        %vm2618 = vcmp.ge.s32.totalorder %v2489, 0
        %vm2619 = vcmp.ge.s32.totalorder %v2490, 0
        %vm2620 = vcmp.ge.s32.totalorder %v2491, 0
        %vm2621 = vcmp.ge.s32.totalorder %v2492, 0
        %vm2622 = vcmp.ge.s32.totalorder %v2493, 0
        %vm2623 = vcmp.ge.s32.totalorder %v2494, 0
        %vm2624 = vcmp.ge.s32.totalorder %v2495, 0
        %vm2625 = vcmp.ge.s32.totalorder %v2496, 0
        %vm2626 = vcmp.ge.s32.totalorder %v2497, 0
        %vm2627 = vcmp.ge.s32.totalorder %v2498, 0
        %vm2628 = vcmp.ge.s32.totalorder %v2499, 0
        %vm2629 = vcmp.ge.s32.totalorder %v2500, 0
        %vm2630 = vcmp.ge.s32.totalorder %v2501, 0
        %vm2631 = vcmp.ge.s32.totalorder %v2502, 0
        %vm2632 = vcmp.ge.s32.totalorder %v2503, 0
        %vm2633 = vcmp.ge.s32.totalorder %v2504, 0
        %vm2634 = vcmp.ge.s32.totalorder %v2505, 0
        %vm2635 = vcmp.ge.s32.totalorder %v2506, 0
        %vm2636 = vcmp.ge.s32.totalorder %v2507, 0
        %vm2637 = vcmp.ge.s32.totalorder %v2508, 0
        %vm2638 = vcmp.ge.s32.totalorder %v2509, 0
        %vm2639 = vcmp.ge.s32.totalorder %v2510, 0
        %vm2640 = vcmp.ge.s32.totalorder %v2511, 0
        %vm2641 = vcmp.ge.s32.totalorder %v2512, 0
        %vm2642 = vcmp.ge.s32.totalorder %v2513, 0
        %vm2643 = vcmp.ge.s32.totalorder %v2514, 0
        %vm2644 = vcmp.ge.s32.totalorder %v2515, 0
        %vm2645 = vcmp.ge.s32.totalorder %v2516, 0
        %vm2646 = vcmp.ge.s32.totalorder %v2517, 0
        %vm2647 = vcmp.ge.s32.totalorder %v2518, 0
        %vm2648 = vcmp.ge.s32.totalorder %v2519, 0
        %vm2649 = vcmp.ge.s32.totalorder %v2520, 0
        %vm2650 = vcmp.ge.s32.totalorder %v2521, 0
        %vm2651 = vcmp.ge.s32.totalorder %v2522, 0
        %vm2652 = vcmp.ge.s32.totalorder %v2523, 0
        %vm2653 = vcmp.ge.s32.totalorder %v2524, 0
        %vm2654 = vcmp.ge.s32.totalorder %v2525, 0
        %vm2655 = vcmp.ge.s32.totalorder %v2526, 0
        %vm2656 = vcmp.ge.s32.totalorder %v2527, 0
        %vm2657 = vcmp.ge.s32.totalorder %v2528, 0
        %vm2658 = vcmp.ge.s32.totalorder %v2529, 0
        %vm2659 = vcmp.ge.s32.totalorder %v2530, 0
        %vm2660 = vcmp.ge.s32.totalorder %v2531, 0
        %vm2661 = vcmp.ge.s32.totalorder %v2532, 0
        %vm2662 = vcmp.ge.s32.totalorder %v2533, 0
        %vm2663 = vcmp.ge.s32.totalorder %v2534, 0
        %vm2664 = vcmp.ge.s32.totalorder %v2535, 0
        %vm2665 = vcmp.ge.s32.totalorder %v2536, 0
        %vm2666 = vcmp.ge.s32.totalorder %v2537, 0
        %vm2667 = vcmp.ge.s32.totalorder %v2538, 0
        %vm2668 = vcmp.ge.s32.totalorder %v2539, 0
        %vm2669 = vcmp.ge.s32.totalorder %v2540, 0
        %vm2670 = vcmp.ge.s32.totalorder %v2541, 0
        %vm2671 = vcmp.ge.s32.totalorder %v2542, 0
        %vm2672 = vcmp.ge.s32.totalorder %v2543, 0
        %vm2673 = vcmp.ge.s32.totalorder %v2544, 0
        %vm2674 = vcmp.ge.s32.totalorder %v2545, 0
        %vm2675 = vcmp.ge.s32.totalorder %v2546, 0
        %vm2676 = vcmp.ge.s32.totalorder %v2547, 0
        %vm2677 = vcmp.ge.s32.totalorder %v2548, 0
        %vm2678 = vcmp.ge.s32.totalorder %v2549, 0
        %vm2679 = vcmp.ge.s32.totalorder %v2550, 0
        %vm2680 = vcmp.ge.s32.totalorder %v2551, 0
        %vm2681 = vcmp.ge.s32.totalorder %v2552, 0
        %vm2682 = vcmp.ge.s32.totalorder %v2553, 0
        %vm2683 = vcmp.ge.s32.totalorder %v2554, 0
        %vm2684 = vcmp.ge.s32.totalorder %v2555, 0
        %vm2685 = vcmp.ge.s32.totalorder %v2556, 0
        %vm2686 = vcmp.ge.s32.totalorder %v2557, 0
        %vm2687 = vcmp.ge.s32.totalorder %v2558, 0
        %vm2688 = vcmp.ge.s32.totalorder %v2559, 0
        %vm2689 = vcmp.ge.s32.totalorder %v2560, 0
        %vm2690 = vcmp.ge.s32.totalorder %v2561, 0
        %vm2691 = vcmp.ge.s32.totalorder %v2562, 0
        %vm2692 = vcmp.ge.s32.totalorder %v2563, 0
        %vm2693 = vcmp.ge.s32.totalorder %v2564, 0
        %vm2694 = vcmp.ge.s32.totalorder %v2565, 0
        %vm2695 = vcmp.ge.s32.totalorder %v2566, 0
        %vm2696 = vcmp.ge.s32.totalorder %v2567, 0
        %vm2697 = vcmp.ge.s32.totalorder %v2568, 0
        %vm2698 = vcmp.ge.s32.totalorder %v2569, 0
        %vm2699 = vcmp.ge.s32.totalorder %v2570, 0
        %vm2700 = vcmp.ge.s32.totalorder %v2571, 0
        %vm2701 = vcmp.ge.s32.totalorder %v2572, 0
        %vm2702 = vcmp.ge.s32.totalorder %v2573, 0
        %vm2703 = vcmp.ge.s32.totalorder %v2574, 0
        %vm2704 = vcmp.ge.s32.totalorder %v2575, 0
        %vm2705 = vcmp.ge.s32.totalorder %v2576, 0
        %vm2706 = vcmp.ge.s32.totalorder %v2577, 0
        %vm2707 = vcmp.ge.s32.totalorder %v2578, 0
        %vm2708 = vcmp.ge.s32.totalorder %v2579, 0
        %vm2709 = vcmp.ge.s32.totalorder %v2580, 0
        %vm2710 = vcmp.ge.s32.totalorder %v2581, 0
        %vm2711 = vcmp.ge.s32.totalorder %v2582, 0
        %vm2712 = vcmp.ge.s32.totalorder %v2583, 0
        %vm2713 = vcmp.ge.s32.totalorder %v2584, 0
        %vm2714 = vcmp.ge.s32.totalorder %v2585, 0
        %vm2715 = vcmp.ge.s32.totalorder %v2586, 0
        %vm2716 = vcmp.ge.s32.totalorder %v2587, 0
        %vm2717 = vcmp.ge.s32.totalorder %v2588, 0
        %vm2718 = vcmp.ge.s32.totalorder %v2589, 0
        %vm2719 = vcmp.ge.s32.totalorder %v2590, 0
        %vm2720 = vcmp.ge.s32.totalorder %v2591, 0
        %vm2721 = vcmp.ge.s32.totalorder %v2592, 0
        %vm2722 = vcmp.ge.s32.totalorder %v2593, 0
        %vm2723 = vcmp.ge.s32.totalorder %v2594, 0
        %vm2724 = vcmp.lt.s32.totalorder %v2466, 3072
        %vm2725 = vcmp.lt.s32.totalorder %v2467, 3072
        %vm2726 = vcmp.lt.s32.totalorder %v2468, 3072
        %vm2727 = vcmp.lt.s32.totalorder %v2469, 3072
        %vm2728 = vcmp.lt.s32.totalorder %v2470, 3072
        %vm2729 = vcmp.lt.s32.totalorder %v2471, 3072
        %vm2730 = vcmp.lt.s32.totalorder %v2472, 3072
        %vm2731 = vcmp.lt.s32.totalorder %v2473, 3072
        %vm2732 = vcmp.lt.s32.totalorder %v2474, 3072
        %vm2733 = vcmp.lt.s32.totalorder %v2475, 3072
        %vm2734 = vcmp.lt.s32.totalorder %v2476, 3072
        %vm2735 = vcmp.lt.s32.totalorder %v2477, 3072
        %vm2736 = vcmp.lt.s32.totalorder %v2478, 3072
        %vm2737 = vcmp.lt.s32.totalorder %v2479, 3072
        %vm2738 = vcmp.lt.s32.totalorder %v2480, 3072
        %vm2739 = vcmp.lt.s32.totalorder %v2481, 3072
        %vm2740 = vcmp.lt.s32.totalorder %v2482, 3072
        %vm2741 = vcmp.lt.s32.totalorder %v2483, 3072
        %vm2742 = vcmp.lt.s32.totalorder %v2484, 3072
        %vm2743 = vcmp.lt.s32.totalorder %v2485, 3072
        %vm2744 = vcmp.lt.s32.totalorder %v2486, 3072
        %vm2745 = vcmp.lt.s32.totalorder %v2487, 3072
        %vm2746 = vcmp.lt.s32.totalorder %v2488, 3072
        %vm2747 = vcmp.lt.s32.totalorder %v2489, 3072
        %vm2748 = vcmp.lt.s32.totalorder %v2490, 3072
        %vm2749 = vcmp.lt.s32.totalorder %v2491, 3072
        %vm2750 = vcmp.lt.s32.totalorder %v2492, 3072
        %vm2751 = vcmp.lt.s32.totalorder %v2493, 3072
        %vm2752 = vcmp.lt.s32.totalorder %v2494, 3072
        %vm2753 = vcmp.lt.s32.totalorder %v2495, 3072
        %vm2754 = vcmp.lt.s32.totalorder %v2496, 3072
        %vm2755 = vcmp.lt.s32.totalorder %v2497, 3072
        %vm2756 = vcmp.lt.s32.totalorder %v2498, 3072
        %vm2757 = vcmp.lt.s32.totalorder %v2499, 3072
        %vm2758 = vcmp.lt.s32.totalorder %v2500, 3072
        %vm2759 = vcmp.lt.s32.totalorder %v2501, 3072
        %vm2760 = vcmp.lt.s32.totalorder %v2502, 3072
        %vm2761 = vcmp.lt.s32.totalorder %v2503, 3072
        %vm2762 = vcmp.lt.s32.totalorder %v2504, 3072
        %vm2763 = vcmp.lt.s32.totalorder %v2505, 3072
        %vm2764 = vcmp.lt.s32.totalorder %v2506, 3072
        %vm2765 = vcmp.lt.s32.totalorder %v2507, 3072
        %vm2766 = vcmp.lt.s32.totalorder %v2508, 3072
        %vm2767 = vcmp.lt.s32.totalorder %v2509, 3072
        %vm2768 = vcmp.lt.s32.totalorder %v2510, 3072
        %vm2769 = vcmp.lt.s32.totalorder %v2511, 3072
        %vm2770 = vcmp.lt.s32.totalorder %v2512, 3072
        %vm2771 = vcmp.lt.s32.totalorder %v2513, 3072
        %vm2772 = vcmp.lt.s32.totalorder %v2514, 3072
        %vm2773 = vcmp.lt.s32.totalorder %v2515, 3072
        %vm2774 = vcmp.lt.s32.totalorder %v2516, 3072
        %vm2775 = vcmp.lt.s32.totalorder %v2517, 3072
        %vm2776 = vcmp.lt.s32.totalorder %v2518, 3072
        %vm2777 = vcmp.lt.s32.totalorder %v2519, 3072
        %vm2778 = vcmp.lt.s32.totalorder %v2520, 3072
        %vm2779 = vcmp.lt.s32.totalorder %v2521, 3072
        %vm2780 = vcmp.lt.s32.totalorder %v2522, 3072
        %vm2781 = vcmp.lt.s32.totalorder %v2523, 3072
        %vm2782 = vcmp.lt.s32.totalorder %v2524, 3072
        %vm2783 = vcmp.lt.s32.totalorder %v2525, 3072
        %vm2784 = vcmp.lt.s32.totalorder %v2526, 3072
        %vm2785 = vcmp.lt.s32.totalorder %v2527, 3072
        %vm2786 = vcmp.lt.s32.totalorder %v2528, 3072
        %vm2787 = vcmp.lt.s32.totalorder %v2529, 3072
        %vm2788 = vcmp.lt.s32.totalorder %v2530, 3072
        %vm2789 = vcmp.lt.s32.totalorder %v2531, 3072
        %vm2790 = vcmp.lt.s32.totalorder %v2532, 3072
        %vm2791 = vcmp.lt.s32.totalorder %v2533, 3072
        %vm2792 = vcmp.lt.s32.totalorder %v2534, 3072
        %vm2793 = vcmp.lt.s32.totalorder %v2535, 3072
        %vm2794 = vcmp.lt.s32.totalorder %v2536, 3072
        %vm2795 = vcmp.lt.s32.totalorder %v2537, 3072
        %vm2796 = vcmp.lt.s32.totalorder %v2538, 3072
        %vm2797 = vcmp.lt.s32.totalorder %v2539, 3072
        %vm2798 = vcmp.lt.s32.totalorder %v2540, 3072
        %vm2799 = vcmp.lt.s32.totalorder %v2541, 3072
        %vm2800 = vcmp.lt.s32.totalorder %v2542, 3072
        %vm2801 = vcmp.lt.s32.totalorder %v2543, 3072
        %vm2802 = vcmp.lt.s32.totalorder %v2544, 3072
        %vm2803 = vcmp.lt.s32.totalorder %v2545, 3072
        %vm2804 = vcmp.lt.s32.totalorder %v2546, 3072
        %vm2805 = vcmp.lt.s32.totalorder %v2547, 3072
        %vm2806 = vcmp.lt.s32.totalorder %v2548, 3072
        %vm2807 = vcmp.lt.s32.totalorder %v2549, 3072
        %vm2808 = vcmp.lt.s32.totalorder %v2550, 3072
        %vm2809 = vcmp.lt.s32.totalorder %v2551, 3072
        %vm2810 = vcmp.lt.s32.totalorder %v2552, 3072
        %vm2811 = vcmp.lt.s32.totalorder %v2553, 3072
        %vm2812 = vcmp.lt.s32.totalorder %v2554, 3072
        %vm2813 = vcmp.lt.s32.totalorder %v2555, 3072
        %vm2814 = vcmp.lt.s32.totalorder %v2556, 3072
        %vm2815 = vcmp.lt.s32.totalorder %v2557, 3072
        %vm2816 = vcmp.lt.s32.totalorder %v2558, 3072
        %vm2817 = vcmp.lt.s32.totalorder %v2559, 3072
        %vm2818 = vcmp.lt.s32.totalorder %v2560, 3072
        %vm2819 = vcmp.lt.s32.totalorder %v2561, 3072
        %vm2820 = vcmp.lt.s32.totalorder %v2562, 3072
        %vm2821 = vcmp.lt.s32.totalorder %v2563, 3072
        %vm2822 = vcmp.lt.s32.totalorder %v2564, 3072
        %vm2823 = vcmp.lt.s32.totalorder %v2565, 3072
        %vm2824 = vcmp.lt.s32.totalorder %v2566, 3072
        %vm2825 = vcmp.lt.s32.totalorder %v2567, 3072
        %vm2826 = vcmp.lt.s32.totalorder %v2568, 3072
        %vm2827 = vcmp.lt.s32.totalorder %v2569, 3072
        %vm2828 = vcmp.lt.s32.totalorder %v2570, 3072
        %vm2829 = vcmp.lt.s32.totalorder %v2571, 3072
        %vm2830 = vcmp.lt.s32.totalorder %v2572, 3072
        %vm2831 = vcmp.lt.s32.totalorder %v2573, 3072
        %vm2832 = vcmp.lt.s32.totalorder %v2574, 3072
        %vm2833 = vcmp.lt.s32.totalorder %v2575, 3072
        %vm2834 = vcmp.lt.s32.totalorder %v2576, 3072
        %vm2835 = vcmp.lt.s32.totalorder %v2577, 3072
        %vm2836 = vcmp.lt.s32.totalorder %v2578, 3072
        %vm2837 = vcmp.lt.s32.totalorder %v2579, 3072
        %vm2838 = vcmp.lt.s32.totalorder %v2580, 3072
        %vm2839 = vcmp.lt.s32.totalorder %v2581, 3072
        %vm2840 = vcmp.lt.s32.totalorder %v2582, 3072
        %vm2841 = vcmp.lt.s32.totalorder %v2583, 3072
        %vm2842 = vcmp.lt.s32.totalorder %v2584, 3072
        %vm2843 = vcmp.lt.s32.totalorder %v2585, 3072
        %vm2844 = vcmp.lt.s32.totalorder %v2586, 3072
        %vm2845 = vcmp.lt.s32.totalorder %v2587, 3072
        %vm2846 = vcmp.lt.s32.totalorder %v2588, 3072
        %vm2847 = vcmp.lt.s32.totalorder %v2589, 3072
        %vm2848 = vcmp.lt.s32.totalorder %v2590, 3072
        %vm2849 = vcmp.lt.s32.totalorder %v2591, 3072
        %vm2850 = vcmp.lt.s32.totalorder %v2592, 3072
        %vm2851 = vcmp.lt.s32.totalorder %v2593, 3072
        %vm2852 = vcmp.lt.s32.totalorder %v2594, 3072
        %vm2853 = vmand %vm2595, %vm2724
        %vm2854 = vmand %vm2596, %vm2725
        %vm2855 = vmand %vm2597, %vm2726
        %vm2856 = vmand %vm2598, %vm2727
        %vm2857 = vmand %vm2599, %vm2728
        %vm2858 = vmand %vm2600, %vm2729
        %vm2859 = vmand %vm2601, %vm2730
        %vm2860 = vmand %vm2602, %vm2731
        %vm2861 = vmand %vm2603, %vm2732
        %vm2862 = vmand %vm2604, %vm2733
        %vm2863 = vmand %vm2605, %vm2734
        %vm2864 = vmand %vm2606, %vm2735
        %vm2865 = vmand %vm2607, %vm2736
        %vm2866 = vmand %vm2608, %vm2737
        %vm2867 = vmand %vm2609, %vm2738
        %vm2868 = vmand %vm2610, %vm2739
        %vm2869 = vmand %vm2611, %vm2740
        %vm2870 = vmand %vm2612, %vm2741
        %vm2871 = vmand %vm2613, %vm2742
        %vm2872 = vmand %vm2614, %vm2743
        %vm2873 = vmand %vm2615, %vm2744
        %vm2874 = vmand %vm2616, %vm2745
        %vm2875 = vmand %vm2617, %vm2746
        %vm2876 = vmand %vm2618, %vm2747
        %vm2877 = vmand %vm2619, %vm2748
        %vm2878 = vmand %vm2620, %vm2749
        %vm2879 = vmand %vm2621, %vm2750
        %vm2880 = vmand %vm2622, %vm2751
        %vm2881 = vmand %vm2623, %vm2752
        %vm2882 = vmand %vm2624, %vm2753
        %vm2883 = vmand %vm2625, %vm2754
        %vm2884 = vmand %vm2626, %vm2755
        %vm2885 = vmand %vm2627, %vm2756
        %vm2886 = vmand %vm2628, %vm2757
        %vm2887 = vmand %vm2629, %vm2758
        %vm2888 = vmand %vm2630, %vm2759
        %vm2889 = vmand %vm2631, %vm2760
        %vm2890 = vmand %vm2632, %vm2761
        %vm2891 = vmand %vm2633, %vm2762
        %vm2892 = vmand %vm2634, %vm2763
        %vm2893 = vmand %vm2635, %vm2764
        %vm2894 = vmand %vm2636, %vm2765
        %vm2895 = vmand %vm2637, %vm2766
        %vm2896 = vmand %vm2638, %vm2767
        %vm2897 = vmand %vm2639, %vm2768
        %vm2898 = vmand %vm2640, %vm2769
        %vm2899 = vmand %vm2641, %vm2770
        %vm2900 = vmand %vm2642, %vm2771
        %vm2901 = vmand %vm2643, %vm2772
        %vm2902 = vmand %vm2644, %vm2773
        %vm2903 = vmand %vm2645, %vm2774
        %vm2904 = vmand %vm2646, %vm2775
        %vm2905 = vmand %vm2647, %vm2776
        %vm2906 = vmand %vm2648, %vm2777
        %vm2907 = vmand %vm2649, %vm2778
        %vm2908 = vmand %vm2650, %vm2779
        %vm2909 = vmand %vm2651, %vm2780
        %vm2910 = vmand %vm2652, %vm2781
        %vm2911 = vmand %vm2653, %vm2782
        %vm2912 = vmand %vm2654, %vm2783
        %vm2913 = vmand %vm2655, %vm2784
        %vm2914 = vmand %vm2656, %vm2785
        %vm2915 = vmand %vm2657, %vm2786
        %vm2916 = vmand %vm2658, %vm2787
        %vm2917 = vmand %vm2659, %vm2788
        %vm2918 = vmand %vm2660, %vm2789
        %vm2919 = vmand %vm2661, %vm2790
        %vm2920 = vmand %vm2662, %vm2791
        %vm2921 = vmand %vm2663, %vm2792
        %vm2922 = vmand %vm2664, %vm2793
        %vm2923 = vmand %vm2665, %vm2794
        %vm2924 = vmand %vm2666, %vm2795
        %vm2925 = vmand %vm2667, %vm2796
        %vm2926 = vmand %vm2668, %vm2797
        %vm2927 = vmand %vm2669, %vm2798
        %vm2928 = vmand %vm2670, %vm2799
        %vm2929 = vmand %vm2671, %vm2800
        %vm2930 = vmand %vm2672, %vm2801
        %vm2931 = vmand %vm2673, %vm2802
        %vm2932 = vmand %vm2674, %vm2803
        %vm2933 = vmand %vm2675, %vm2804
        %vm2934 = vmand %vm2676, %vm2805
        %vm2935 = vmand %vm2677, %vm2806
        %vm2936 = vmand %vm2678, %vm2807
        %vm2937 = vmand %vm2679, %vm2808
        %vm2938 = vmand %vm2680, %vm2809
        %vm2939 = vmand %vm2681, %vm2810
        %vm2940 = vmand %vm2682, %vm2811
        %vm2941 = vmand %vm2683, %vm2812
        %vm2942 = vmand %vm2684, %vm2813
        %vm2943 = vmand %vm2685, %vm2814
        %vm2944 = vmand %vm2686, %vm2815
        %vm2945 = vmand %vm2687, %vm2816
        %vm2946 = vmand %vm2688, %vm2817
        %vm2947 = vmand %vm2689, %vm2818
        %vm2948 = vmand %vm2690, %vm2819
        %vm2949 = vmand %vm2691, %vm2820
        %vm2950 = vmand %vm2692, %vm2821
        %vm2951 = vmand %vm2693, %vm2822
        %vm2952 = vmand %vm2694, %vm2823
        %vm2953 = vmand %vm2695, %vm2824
        %vm2954 = vmand %vm2696, %vm2825
        %vm2955 = vmand %vm2697, %vm2826
        %vm2956 = vmand %vm2698, %vm2827
        %vm2957 = vmand %vm2699, %vm2828
        %vm2958 = vmand %vm2700, %vm2829
        %vm2959 = vmand %vm2701, %vm2830
        %vm2960 = vmand %vm2702, %vm2831
        %vm2961 = vmand %vm2703, %vm2832
        %vm2962 = vmand %vm2704, %vm2833
        %vm2963 = vmand %vm2705, %vm2834
        %vm2964 = vmand %vm2706, %vm2835
        %vm2965 = vmand %vm2707, %vm2836
        %vm2966 = vmand %vm2708, %vm2837
        %vm2967 = vmand %vm2709, %vm2838
        %vm2968 = vmand %vm2710, %vm2839
        %vm2969 = vmand %vm2711, %vm2840
        %vm2970 = vmand %vm2712, %vm2841
        %vm2971 = vmand %vm2713, %vm2842
        %vm2972 = vmand %vm2714, %vm2843
        %vm2973 = vmand %vm2715, %vm2844
        %vm2974 = vmand %vm2716, %vm2845
        %vm2975 = vmand %vm2717, %vm2846
        %vm2976 = vmand %vm2718, %vm2847
        %vm2977 = vmand %vm2719, %vm2848
        %vm2978 = vmand %vm2720, %vm2849
        %vm2979 = vmand %vm2721, %vm2850
        %vm2980 = vmand %vm2722, %vm2851
        %vm2981 = vmand %vm2723, %vm2852
        %v2982 = vsel %vm2853, 1, 0
        %v2983 = vsel %vm2854, 1, 0
        %v2984 = vsel %vm2855, 1, 0
        %v2985 = vsel %vm2856, 1, 0
        %v2986 = vsel %vm2857, 1, 0
        %v2987 = vsel %vm2858, 1, 0
        %v2988 = vsel %vm2859, 1, 0
        %v2989 = vsel %vm2860, 1, 0
        %v2990 = vsel %vm2861, 1, 0
        %v2991 = vsel %vm2862, 1, 0
        %v2992 = vsel %vm2863, 1, 0
        %v2993 = vsel %vm2864, 1, 0
        %v2994 = vsel %vm2865, 1, 0
        %v2995 = vsel %vm2866, 1, 0
        %v2996 = vsel %vm2867, 1, 0
        %v2997 = vsel %vm2868, 1, 0
        %v2998 = vsel %vm2869, 1, 0
        %v2999 = vsel %vm2870, 1, 0
        %v3000 = vsel %vm2871, 1, 0
        %v3001 = vsel %vm2872, 1, 0
        %v3002 = vsel %vm2873, 1, 0
        %v3003 = vsel %vm2874, 1, 0
        %v3004 = vsel %vm2875, 1, 0
        %v3005 = vsel %vm2876, 1, 0
        %v3006 = vsel %vm2877, 1, 0
        %v3007 = vsel %vm2878, 1, 0
        %v3008 = vsel %vm2879, 1, 0
        %v3009 = vsel %vm2880, 1, 0
        %v3010 = vsel %vm2881, 1, 0
        %v3011 = vsel %vm2882, 1, 0
        %v3012 = vsel %vm2883, 1, 0
        %v3013 = vsel %vm2884, 1, 0
        %v3014 = vsel %vm2885, 1, 0
        %v3015 = vsel %vm2886, 1, 0
        %v3016 = vsel %vm2887, 1, 0
        %v3017 = vsel %vm2888, 1, 0
        %v3018 = vsel %vm2889, 1, 0
        %v3019 = vsel %vm2890, 1, 0
        %v3020 = vsel %vm2891, 1, 0
        %v3021 = vsel %vm2892, 1, 0
        %v3022 = vsel %vm2893, 1, 0
        %v3023 = vsel %vm2894, 1, 0
        %v3024 = vsel %vm2895, 1, 0
        %v3025 = vsel %vm2896, 1, 0
        %v3026 = vsel %vm2897, 1, 0
        %v3027 = vsel %vm2898, 1, 0
        %v3028 = vsel %vm2899, 1, 0
        %v3029 = vsel %vm2900, 1, 0
        %v3030 = vsel %vm2901, 1, 0
        %v3031 = vsel %vm2902, 1, 0
        %v3032 = vsel %vm2903, 1, 0
        %v3033 = vsel %vm2904, 1, 0
        %v3034 = vsel %vm2905, 1, 0
        %v3035 = vsel %vm2906, 1, 0
        %v3036 = vsel %vm2907, 1, 0
        %v3037 = vsel %vm2908, 1, 0
        %v3038 = vsel %vm2909, 1, 0
        %v3039 = vsel %vm2910, 1, 0
        %v3040 = vsel %vm2911, 1, 0
        %v3041 = vsel %vm2912, 1, 0
        %v3042 = vsel %vm2913, 1, 0
        %v3043 = vsel %vm2914, 1, 0
        %v3044 = vsel %vm2915, 1, 0
        %v3045 = vsel %vm2916, 1, 0
        %v3046 = vsel %vm2917, 1, 0
        %v3047 = vsel %vm2918, 1, 0
        %v3048 = vsel %vm2919, 1, 0
        %v3049 = vsel %vm2920, 1, 0
        %v3050 = vsel %vm2921, 1, 0
        %v3051 = vsel %vm2922, 1, 0
        %v3052 = vsel %vm2923, 1, 0
        %v3053 = vsel %vm2924, 1, 0
        %v3054 = vsel %vm2925, 1, 0
        %v3055 = vsel %vm2926, 1, 0
        %v3056 = vsel %vm2927, 1, 0
        %v3057 = vsel %vm2928, 1, 0
        %v3058 = vsel %vm2929, 1, 0
        %v3059 = vsel %vm2930, 1, 0
        %v3060 = vsel %vm2931, 1, 0
        %v3061 = vsel %vm2932, 1, 0
        %v3062 = vsel %vm2933, 1, 0
        %v3063 = vsel %vm2934, 1, 0
        %v3064 = vsel %vm2935, 1, 0
        %v3065 = vsel %vm2936, 1, 0
        %v3066 = vsel %vm2937, 1, 0
        %v3067 = vsel %vm2938, 1, 0
        %v3068 = vsel %vm2939, 1, 0
        %v3069 = vsel %vm2940, 1, 0
        %v3070 = vsel %vm2941, 1, 0
        %v3071 = vsel %vm2942, 1, 0
        %v3072 = vsel %vm2943, 1, 0
        %v3073 = vsel %vm2944, 1, 0
        %v3074 = vsel %vm2945, 1, 0
        %v3075 = vsel %vm2946, 1, 0
        %v3076 = vsel %vm2947, 1, 0
        %v3077 = vsel %vm2948, 1, 0
        %v3078 = vsel %vm2949, 1, 0
        %v3079 = vsel %vm2950, 1, 0
        %v3080 = vsel %vm2951, 1, 0
        %v3081 = vsel %vm2952, 1, 0
        %v3082 = vsel %vm2953, 1, 0
        %v3083 = vsel %vm2954, 1, 0
        %v3084 = vsel %vm2955, 1, 0
        %v3085 = vsel %vm2956, 1, 0
        %v3086 = vsel %vm2957, 1, 0
        %v3087 = vsel %vm2958, 1, 0
        %v3088 = vsel %vm2959, 1, 0
        %v3089 = vsel %vm2960, 1, 0
        %v3090 = vsel %vm2961, 1, 0
        %v3091 = vsel %vm2962, 1, 0
        %v3092 = vsel %vm2963, 1, 0
        %v3093 = vsel %vm2964, 1, 0
        %v3094 = vsel %vm2965, 1, 0
        %v3095 = vsel %vm2966, 1, 0
        %v3096 = vsel %vm2967, 1, 0
        %v3097 = vsel %vm2968, 1, 0
        %v3098 = vsel %vm2969, 1, 0
        %v3099 = vsel %vm2970, 1, 0
        %v3100 = vsel %vm2971, 1, 0
        %v3101 = vsel %vm2972, 1, 0
        %v3102 = vsel %vm2973, 1, 0
        %v3103 = vsel %vm2974, 1, 0
        %v3104 = vsel %vm2975, 1, 0
        %v3105 = vsel %vm2976, 1, 0
        %v3106 = vsel %vm2977, 1, 0
        %v3107 = vsel %vm2978, 1, 0
        %v3108 = vsel %vm2979, 1, 0
        %v3109 = vsel %vm2980, 1, 0
        %v3110 = vsel %vm2981, 1, 0
        %vm3111 = vcmp.eq.s32.totalorder %v2982, 1
        %vm3112 = vcmp.eq.s32.totalorder %v2983, 1
        %vm3113 = vcmp.eq.s32.totalorder %v2984, 1
        %vm3114 = vcmp.eq.s32.totalorder %v2985, 1
        %vm3115 = vcmp.eq.s32.totalorder %v2986, 1
        %vm3116 = vcmp.eq.s32.totalorder %v2987, 1
        %vm3117 = vcmp.eq.s32.totalorder %v2988, 1
        %vm3118 = vcmp.eq.s32.totalorder %v2989, 1
        %vm3119 = vcmp.eq.s32.totalorder %v2990, 1
        %vm3120 = vcmp.eq.s32.totalorder %v2991, 1
        %vm3121 = vcmp.eq.s32.totalorder %v2992, 1
        %vm3122 = vcmp.eq.s32.totalorder %v2993, 1
        %vm3123 = vcmp.eq.s32.totalorder %v2994, 1
        %vm3124 = vcmp.eq.s32.totalorder %v2995, 1
        %vm3125 = vcmp.eq.s32.totalorder %v2996, 1
        %vm3126 = vcmp.eq.s32.totalorder %v2997, 1
        %vm3127 = vcmp.eq.s32.totalorder %v2998, 1
        %vm3128 = vcmp.eq.s32.totalorder %v2999, 1
        %vm3129 = vcmp.eq.s32.totalorder %v3000, 1
        %vm3130 = vcmp.eq.s32.totalorder %v3001, 1
        %vm3131 = vcmp.eq.s32.totalorder %v3002, 1
        %vm3132 = vcmp.eq.s32.totalorder %v3003, 1
        %vm3133 = vcmp.eq.s32.totalorder %v3004, 1
        %vm3134 = vcmp.eq.s32.totalorder %v3005, 1
        %vm3135 = vcmp.eq.s32.totalorder %v3006, 1
        %vm3136 = vcmp.eq.s32.totalorder %v3007, 1
        %vm3137 = vcmp.eq.s32.totalorder %v3008, 1
        %vm3138 = vcmp.eq.s32.totalorder %v3009, 1
        %vm3139 = vcmp.eq.s32.totalorder %v3010, 1
        %vm3140 = vcmp.eq.s32.totalorder %v3011, 1
        %vm3141 = vcmp.eq.s32.totalorder %v3012, 1
        %vm3142 = vcmp.eq.s32.totalorder %v3013, 1
        %vm3143 = vcmp.eq.s32.totalorder %v3014, 1
        %vm3144 = vcmp.eq.s32.totalorder %v3015, 1
        %vm3145 = vcmp.eq.s32.totalorder %v3016, 1
        %vm3146 = vcmp.eq.s32.totalorder %v3017, 1
        %vm3147 = vcmp.eq.s32.totalorder %v3018, 1
        %vm3148 = vcmp.eq.s32.totalorder %v3019, 1
        %vm3149 = vcmp.eq.s32.totalorder %v3020, 1
        %vm3150 = vcmp.eq.s32.totalorder %v3021, 1
        %vm3151 = vcmp.eq.s32.totalorder %v3022, 1
        %vm3152 = vcmp.eq.s32.totalorder %v3023, 1
        %vm3153 = vcmp.eq.s32.totalorder %v3024, 1
        %vm3154 = vcmp.eq.s32.totalorder %v3025, 1
        %vm3155 = vcmp.eq.s32.totalorder %v3026, 1
        %vm3156 = vcmp.eq.s32.totalorder %v3027, 1
        %vm3157 = vcmp.eq.s32.totalorder %v3028, 1
        %vm3158 = vcmp.eq.s32.totalorder %v3029, 1
        %vm3159 = vcmp.eq.s32.totalorder %v3030, 1
        %vm3160 = vcmp.eq.s32.totalorder %v3031, 1
        %vm3161 = vcmp.eq.s32.totalorder %v3032, 1
        %vm3162 = vcmp.eq.s32.totalorder %v3033, 1
        %vm3163 = vcmp.eq.s32.totalorder %v3034, 1
        %vm3164 = vcmp.eq.s32.totalorder %v3035, 1
        %vm3165 = vcmp.eq.s32.totalorder %v3036, 1
        %vm3166 = vcmp.eq.s32.totalorder %v3037, 1
        %vm3167 = vcmp.eq.s32.totalorder %v3038, 1
        %vm3168 = vcmp.eq.s32.totalorder %v3039, 1
        %vm3169 = vcmp.eq.s32.totalorder %v3040, 1
        %vm3170 = vcmp.eq.s32.totalorder %v3041, 1
        %vm3171 = vcmp.eq.s32.totalorder %v3042, 1
        %vm3172 = vcmp.eq.s32.totalorder %v3043, 1
        %vm3173 = vcmp.eq.s32.totalorder %v3044, 1
        %vm3174 = vcmp.eq.s32.totalorder %v3045, 1
        %vm3175 = vcmp.eq.s32.totalorder %v3046, 1
        %vm3176 = vcmp.eq.s32.totalorder %v3047, 1
        %vm3177 = vcmp.eq.s32.totalorder %v3048, 1
        %vm3178 = vcmp.eq.s32.totalorder %v3049, 1
        %vm3179 = vcmp.eq.s32.totalorder %v3050, 1
        %vm3180 = vcmp.eq.s32.totalorder %v3051, 1
        %vm3181 = vcmp.eq.s32.totalorder %v3052, 1
        %vm3182 = vcmp.eq.s32.totalorder %v3053, 1
        %vm3183 = vcmp.eq.s32.totalorder %v3054, 1
        %vm3184 = vcmp.eq.s32.totalorder %v3055, 1
        %vm3185 = vcmp.eq.s32.totalorder %v3056, 1
        %vm3186 = vcmp.eq.s32.totalorder %v3057, 1
        %vm3187 = vcmp.eq.s32.totalorder %v3058, 1
        %vm3188 = vcmp.eq.s32.totalorder %v3059, 1
        %vm3189 = vcmp.eq.s32.totalorder %v3060, 1
        %vm3190 = vcmp.eq.s32.totalorder %v3061, 1
        %vm3191 = vcmp.eq.s32.totalorder %v3062, 1
        %vm3192 = vcmp.eq.s32.totalorder %v3063, 1
        %vm3193 = vcmp.eq.s32.totalorder %v3064, 1
        %vm3194 = vcmp.eq.s32.totalorder %v3065, 1
        %vm3195 = vcmp.eq.s32.totalorder %v3066, 1
        %vm3196 = vcmp.eq.s32.totalorder %v3067, 1
        %vm3197 = vcmp.eq.s32.totalorder %v3068, 1
        %vm3198 = vcmp.eq.s32.totalorder %v3069, 1
        %vm3199 = vcmp.eq.s32.totalorder %v3070, 1
        %vm3200 = vcmp.eq.s32.totalorder %v3071, 1
        %vm3201 = vcmp.eq.s32.totalorder %v3072, 1
        %vm3202 = vcmp.eq.s32.totalorder %v3073, 1
        %vm3203 = vcmp.eq.s32.totalorder %v3074, 1
        %vm3204 = vcmp.eq.s32.totalorder %v3075, 1
        %vm3205 = vcmp.eq.s32.totalorder %v3076, 1
        %vm3206 = vcmp.eq.s32.totalorder %v3077, 1
        %vm3207 = vcmp.eq.s32.totalorder %v3078, 1
        %vm3208 = vcmp.eq.s32.totalorder %v3079, 1
        %vm3209 = vcmp.eq.s32.totalorder %v3080, 1
        %vm3210 = vcmp.eq.s32.totalorder %v3081, 1
        %vm3211 = vcmp.eq.s32.totalorder %v3082, 1
        %vm3212 = vcmp.eq.s32.totalorder %v3083, 1
        %vm3213 = vcmp.eq.s32.totalorder %v3084, 1
        %vm3214 = vcmp.eq.s32.totalorder %v3085, 1
        %vm3215 = vcmp.eq.s32.totalorder %v3086, 1
        %vm3216 = vcmp.eq.s32.totalorder %v3087, 1
        %vm3217 = vcmp.eq.s32.totalorder %v3088, 1
        %vm3218 = vcmp.eq.s32.totalorder %v3089, 1
        %vm3219 = vcmp.eq.s32.totalorder %v3090, 1
        %vm3220 = vcmp.eq.s32.totalorder %v3091, 1
        %vm3221 = vcmp.eq.s32.totalorder %v3092, 1
        %vm3222 = vcmp.eq.s32.totalorder %v3093, 1
        %vm3223 = vcmp.eq.s32.totalorder %v3094, 1
        %vm3224 = vcmp.eq.s32.totalorder %v3095, 1
        %vm3225 = vcmp.eq.s32.totalorder %v3096, 1
        %vm3226 = vcmp.eq.s32.totalorder %v3097, 1
        %vm3227 = vcmp.eq.s32.totalorder %v3098, 1
        %vm3228 = vcmp.eq.s32.totalorder %v3099, 1
        %vm3229 = vcmp.eq.s32.totalorder %v3100, 1
        %vm3230 = vcmp.eq.s32.totalorder %v3101, 1
        %vm3231 = vcmp.eq.s32.totalorder %v3102, 1
        %vm3232 = vcmp.eq.s32.totalorder %v3103, 1
        %vm3233 = vcmp.eq.s32.totalorder %v3104, 1
        %vm3234 = vcmp.eq.s32.totalorder %v3105, 1
        %vm3235 = vcmp.eq.s32.totalorder %v3106, 1
        %vm3236 = vcmp.eq.s32.totalorder %v3107, 1
        %vm3237 = vcmp.eq.s32.totalorder %v3108, 1
        %vm3238 = vcmp.eq.s32.totalorder %v3109, 1
        %vm3239 = vcmp.eq.s32.totalorder %v3110, 1
        %v3240 = vsel %vm3111, %v2205, 0.0
        %v3241 = vsel %vm3112, %v2206, 0.0
        %v3242 = vsel %vm3113, %v2207, 0.0
        %v3243 = vsel %vm3114, %v2208, 0.0
        %v3244 = vsel %vm3115, %v2209, 0.0
        %v3245 = vsel %vm3116, %v2210, 0.0
        %v3246 = vsel %vm3117, %v2211, 0.0
        %v3247 = vsel %vm3118, %v2212, 0.0
        %v3248 = vsel %vm3119, %v2213, 0.0
        %v3249 = vsel %vm3120, %v2214, 0.0
        %v3250 = vsel %vm3121, %v2215, 0.0
        %v3251 = vsel %vm3122, %v2216, 0.0
        %v3252 = vsel %vm3123, %v2217, 0.0
        %v3253 = vsel %vm3124, %v2218, 0.0
        %v3254 = vsel %vm3125, %v2219, 0.0
        %v3255 = vsel %vm3126, %v2220, 0.0
        %v3256 = vsel %vm3127, %v2221, 0.0
        %v3257 = vsel %vm3128, %v2222, 0.0
        %v3258 = vsel %vm3129, %v2223, 0.0
        %v3259 = vsel %vm3130, %v2224, 0.0
        %v3260 = vsel %vm3131, %v2225, 0.0
        %v3261 = vsel %vm3132, %v2226, 0.0
        %v3262 = vsel %vm3133, %v2227, 0.0
        %v3263 = vsel %vm3134, %v2228, 0.0
        %v3264 = vsel %vm3135, %v2229, 0.0
        %v3265 = vsel %vm3136, %v2230, 0.0
        %v3266 = vsel %vm3137, %v2231, 0.0
        %v3267 = vsel %vm3138, %v2232, 0.0
        %v3268 = vsel %vm3139, %v2233, 0.0
        %v3269 = vsel %vm3140, %v2234, 0.0
        %v3270 = vsel %vm3141, %v2235, 0.0
        %v3271 = vsel %vm3142, %v2236, 0.0
        %v3272 = vsel %vm3143, %v2237, 0.0
        %v3273 = vsel %vm3144, %v2238, 0.0
        %v3274 = vsel %vm3145, %v2239, 0.0
        %v3275 = vsel %vm3146, %v2240, 0.0
        %v3276 = vsel %vm3147, %v2241, 0.0
        %v3277 = vsel %vm3148, %v2242, 0.0
        %v3278 = vsel %vm3149, %v2243, 0.0
        %v3279 = vsel %vm3150, %v2244, 0.0
        %v3280 = vsel %vm3151, %v2245, 0.0
        %v3281 = vsel %vm3152, %v2246, 0.0
        %v3282 = vsel %vm3153, %v2247, 0.0
        %v3283 = vsel %vm3154, %v2248, 0.0
        %v3284 = vsel %vm3155, %v2249, 0.0
        %v3285 = vsel %vm3156, %v2250, 0.0
        %v3286 = vsel %vm3157, %v2251, 0.0
        %v3287 = vsel %vm3158, %v2252, 0.0
        %v3288 = vsel %vm3159, %v2253, 0.0
        %v3289 = vsel %vm3160, %v2254, 0.0
        %v3290 = vsel %vm3161, %v2255, 0.0
        %v3291 = vsel %vm3162, %v2256, 0.0
        %v3292 = vsel %vm3163, %v2257, 0.0
        %v3293 = vsel %vm3164, %v2258, 0.0
        %v3294 = vsel %vm3165, %v2259, 0.0
        %v3295 = vsel %vm3166, %v2260, 0.0
        %v3296 = vsel %vm3167, %v2261, 0.0
        %v3297 = vsel %vm3168, %v2262, 0.0
        %v3298 = vsel %vm3169, %v2263, 0.0
        %v3299 = vsel %vm3170, %v2264, 0.0
        %v3300 = vsel %vm3171, %v2265, 0.0
        %v3301 = vsel %vm3172, %v2266, 0.0
        %v3302 = vsel %vm3173, %v2267, 0.0
        %v3303 = vsel %vm3174, %v2268, 0.0
        %v3304 = vsel %vm3175, %v2269, 0.0
        %v3305 = vsel %vm3176, %v2270, 0.0
        %v3306 = vsel %vm3177, %v2271, 0.0
        %v3307 = vsel %vm3178, %v2272, 0.0
        %v3308 = vsel %vm3179, %v2273, 0.0
        %v3309 = vsel %vm3180, %v2274, 0.0
        %v3310 = vsel %vm3181, %v2275, 0.0
        %v3311 = vsel %vm3182, %v2276, 0.0
        %v3312 = vsel %vm3183, %v2277, 0.0
        %v3313 = vsel %vm3184, %v2278, 0.0
        %v3314 = vsel %vm3185, %v2279, 0.0
        %v3315 = vsel %vm3186, %v2280, 0.0
        %v3316 = vsel %vm3187, %v2281, 0.0
        %v3317 = vsel %vm3188, %v2282, 0.0
        %v3318 = vsel %vm3189, %v2283, 0.0
        %v3319 = vsel %vm3190, %v2284, 0.0
        %v3320 = vsel %vm3191, %v2285, 0.0
        %v3321 = vsel %vm3192, %v2286, 0.0
        %v3322 = vsel %vm3193, %v2287, 0.0
        %v3323 = vsel %vm3194, %v2288, 0.0
        %v3324 = vsel %vm3195, %v2289, 0.0
        %v3325 = vsel %vm3196, %v2290, 0.0
        %v3326 = vsel %vm3197, %v2291, 0.0
        %v3327 = vsel %vm3198, %v2292, 0.0
        %v3328 = vsel %vm3199, %v2293, 0.0
        %v3329 = vsel %vm3200, %v2294, 0.0
        %v3330 = vsel %vm3201, %v2295, 0.0
        %v3331 = vsel %vm3202, %v2296, 0.0
        %v3332 = vsel %vm3203, %v2297, 0.0
        %v3333 = vsel %vm3204, %v2298, 0.0
        %v3334 = vsel %vm3205, %v2299, 0.0
        %v3335 = vsel %vm3206, %v2300, 0.0
        %v3336 = vsel %vm3207, %v2301, 0.0
        %v3337 = vsel %vm3208, %v2302, 0.0
        %v3338 = vsel %vm3209, %v2303, 0.0
        %v3339 = vsel %vm3210, %v2304, 0.0
        %v3340 = vsel %vm3211, %v2305, 0.0
        %v3341 = vsel %vm3212, %v2306, 0.0
        %v3342 = vsel %vm3213, %v2307, 0.0
        %v3343 = vsel %vm3214, %v2308, 0.0
        %v3344 = vsel %vm3215, %v2309, 0.0
        %v3345 = vsel %vm3216, %v2310, 0.0
        %v3346 = vsel %vm3217, %v2311, 0.0
        %v3347 = vsel %vm3218, %v2312, 0.0
        %v3348 = vsel %vm3219, %v2313, 0.0
        %v3349 = vsel %vm3220, %v2314, 0.0
        %v3350 = vsel %vm3221, %v2315, 0.0
        %v3351 = vsel %vm3222, %v2316, 0.0
        %v3352 = vsel %vm3223, %v2317, 0.0
        %v3353 = vsel %vm3224, %v2318, 0.0
        %v3354 = vsel %vm3225, %v2319, 0.0
        %v3355 = vsel %vm3226, %v2320, 0.0
        %v3356 = vsel %vm3227, %v2321, 0.0
        %v3357 = vsel %vm3228, %v2322, 0.0
        %v3358 = vsel %vm3229, %v2323, 0.0
        %v3359 = vsel %vm3230, %v2324, 0.0
        %v3360 = vsel %vm3231, %v2325, 0.0
        %v3361 = vsel %vm3232, %v2326, 0.0
        %v3362 = vsel %vm3233, %v2327, 0.0
        %v3363 = vsel %vm3234, %v2328, 0.0
        %v3364 = vsel %vm3235, %v2329, 0.0
        %v3365 = vsel %vm3236, %v2330, 0.0
        %v3366 = vsel %vm3237, %v2331, 0.0
        %v3367 = vsel %vm3238, %v2332, 0.0
        %v3368 = vsel %vm3239, %v2333, 0.0
        %v3369 = vpack.c.bf16 %v3241, %v3240
        %v3370 = vpack.c.bf16 %v3243, %v3242
        %v3371 = vpack.c.bf16 %v3245, %v3244
        %v3372 = vpack.c.bf16 %v3247, %v3246
        %v3373 = vpack.c.bf16 %v3249, %v3248
        %v3374 = vpack.c.bf16 %v3251, %v3250
        %v3375 = vpack.c.bf16 %v3253, %v3252
        %v3376 = vpack.c.bf16 %v3255, %v3254
        %v3377 = vpack.c.bf16 %v3257, %v3256
        %v3378 = vpack.c.bf16 %v3259, %v3258
        %v3379 = vpack.c.bf16 %v3261, %v3260
        %v3380 = vpack.c.bf16 %v3263, %v3262
        %v3381 = vpack.c.bf16 %v3265, %v3264
        %v3382 = vpack.c.bf16 %v3267, %v3266
        %v3383 = vpack.c.bf16 %v3269, %v3268
        %v3384 = vpack.c.bf16 %v3271, %v3270
        %v3385 = vpack.c.bf16 %v3273, %v3272
        %v3386 = vpack.c.bf16 %v3275, %v3274
        %v3387 = vpack.c.bf16 %v3277, %v3276
        %v3388 = vpack.c.bf16 %v3279, %v3278
        %v3389 = vpack.c.bf16 %v3281, %v3280
        %v3390 = vpack.c.bf16 %v3283, %v3282
        %v3391 = vpack.c.bf16 %v3285, %v3284
        %v3392 = vpack.c.bf16 %v3287, %v3286
        %v3393 = vpack.c.bf16 %v3289, %v3288
        %v3394 = vpack.c.bf16 %v3291, %v3290
        %v3395 = vpack.c.bf16 %v3293, %v3292
        %v3396 = vpack.c.bf16 %v3295, %v3294
        %v3397 = vpack.c.bf16 %v3297, %v3296
        %v3398 = vpack.c.bf16 %v3299, %v3298
        %v3399 = vpack.c.bf16 %v3301, %v3300
        %v3400 = vpack.c.bf16 %v3303, %v3302
        %v3401 = vpack.c.bf16 %v3305, %v3304
        %v3402 = vpack.c.bf16 %v3307, %v3306
        %v3403 = vpack.c.bf16 %v3309, %v3308
        %v3404 = vpack.c.bf16 %v3311, %v3310
        %v3405 = vpack.c.bf16 %v3313, %v3312
        %v3406 = vpack.c.bf16 %v3315, %v3314
        %v3407 = vpack.c.bf16 %v3317, %v3316
        %v3408 = vpack.c.bf16 %v3319, %v3318
        %v3409 = vpack.c.bf16 %v3321, %v3320
        %v3410 = vpack.c.bf16 %v3323, %v3322
        %v3411 = vpack.c.bf16 %v3325, %v3324
        %v3412 = vpack.c.bf16 %v3327, %v3326
        %v3413 = vpack.c.bf16 %v3329, %v3328
        %v3414 = vpack.c.bf16 %v3331, %v3330
        %v3415 = vpack.c.bf16 %v3333, %v3332
        %v3416 = vpack.c.bf16 %v3335, %v3334
        %v3417 = vpack.c.bf16 %v3337, %v3336
        %v3418 = vpack.c.bf16 %v3339, %v3338
        %v3419 = vpack.c.bf16 %v3341, %v3340
        %v3420 = vpack.c.bf16 %v3343, %v3342
        %v3421 = vpack.c.bf16 %v3345, %v3344
        %v3422 = vpack.c.bf16 %v3347, %v3346
        %v3423 = vpack.c.bf16 %v3349, %v3348
        %v3424 = vpack.c.bf16 %v3351, %v3350
        %v3425 = vpack.c.bf16 %v3353, %v3352
        %v3426 = vpack.c.bf16 %v3355, %v3354
        %v3427 = vpack.c.bf16 %v3357, %v3356
        %v3428 = vpack.c.bf16 %v3359, %v3358
        %v3429 = vpack.c.bf16 %v3361, %v3360
        %v3430 = vpack.c.bf16 %v3363, %v3362
        %v3431 = vpack.c.bf16 %v3365, %v3364
        %v3432 = vpack.c.bf16 %v3367, %v3366
        %v3433 = vpack.c.bf16 %v3368, %v3368
        %vm3434 = vsmask.f32 7424
        %v3436 = vshrl.u32 %v3369, 16
        %v3438 = vshll.u32 %v3369, 16
        %v3440 = vrot.slane %v3438, 1
        %v3441 = vor.u32 %v3436, %v3440
        %v3443 = vshll.u32 %v3370, 16
        %v3445 = vrot.slane %v3443, 1
        %v3446 = vsel %vm3434, %v3441, %v3445
        %v3447 = vshrl.u32 %v3370, 16
        %v3449 = vor.u32 %v3447, %v3445
        %v3451 = vshll.u32 %v3371, 16
        %v3453 = vrot.slane %v3451, 1
        %v3454 = vsel %vm3434, %v3449, %v3453
        %v3455 = vshrl.u32 %v3371, 16
        %v3457 = vor.u32 %v3455, %v3453
        %v3459 = vshll.u32 %v3372, 16
        %v3461 = vrot.slane %v3459, 1
        %v3462 = vsel %vm3434, %v3457, %v3461
        %v3463 = vshrl.u32 %v3372, 16
        %v3465 = vor.u32 %v3463, %v3461
        %v3467 = vshll.u32 %v3373, 16
        %v3469 = vrot.slane %v3467, 1
        %v3470 = vsel %vm3434, %v3465, %v3469
        %v3471 = vshrl.u32 %v3373, 16
        %v3473 = vor.u32 %v3471, %v3469
        %v3475 = vshll.u32 %v3374, 16
        %v3477 = vrot.slane %v3475, 1
        %v3478 = vsel %vm3434, %v3473, %v3477
        %v3479 = vshrl.u32 %v3374, 16
        %v3481 = vor.u32 %v3479, %v3477
        %v3483 = vshll.u32 %v3375, 16
        %v3485 = vrot.slane %v3483, 1
        %v3486 = vsel %vm3434, %v3481, %v3485
        %v3487 = vshrl.u32 %v3375, 16
        %v3489 = vor.u32 %v3487, %v3485
        %v3491 = vshll.u32 %v3376, 16
        %v3493 = vrot.slane %v3491, 1
        %v3494 = vsel %vm3434, %v3489, %v3493
        %v3495 = vshrl.u32 %v3376, 16
        %v3497 = vor.u32 %v3495, %v3493
        %v3499 = vshll.u32 %v3377, 16
        %v3501 = vrot.slane %v3499, 1
        %v3502 = vsel %vm3434, %v3497, %v3501
        %v3503 = vshrl.u32 %v3377, 16
        %v3505 = vor.u32 %v3503, %v3501
        %v3507 = vshll.u32 %v3378, 16
        %v3509 = vrot.slane %v3507, 1
        %v3510 = vsel %vm3434, %v3505, %v3509
        %v3511 = vshrl.u32 %v3378, 16
        %v3513 = vor.u32 %v3511, %v3509
        %v3515 = vshll.u32 %v3379, 16
        %v3517 = vrot.slane %v3515, 1
        %v3518 = vsel %vm3434, %v3513, %v3517
        %v3519 = vshrl.u32 %v3379, 16
        %v3521 = vor.u32 %v3519, %v3517
        %v3523 = vshll.u32 %v3380, 16
        %v3525 = vrot.slane %v3523, 1
        %v3526 = vsel %vm3434, %v3521, %v3525
        %v3527 = vshrl.u32 %v3380, 16
        %v3529 = vor.u32 %v3527, %v3525
        %v3531 = vshll.u32 %v3381, 16
        %v3533 = vrot.slane %v3531, 1
        %v3534 = vsel %vm3434, %v3529, %v3533
        %v3535 = vshrl.u32 %v3381, 16
        %v3537 = vor.u32 %v3535, %v3533
        %v3539 = vshll.u32 %v3382, 16
        %v3541 = vrot.slane %v3539, 1
        %v3542 = vsel %vm3434, %v3537, %v3541
        %v3543 = vshrl.u32 %v3382, 16
        %v3545 = vor.u32 %v3543, %v3541
        %v3547 = vshll.u32 %v3383, 16
        %v3549 = vrot.slane %v3547, 1
        %v3550 = vsel %vm3434, %v3545, %v3549
        %v3551 = vshrl.u32 %v3383, 16
        %v3553 = vor.u32 %v3551, %v3549
        %v3555 = vshll.u32 %v3384, 16
        %v3557 = vrot.slane %v3555, 1
        %v3558 = vsel %vm3434, %v3553, %v3557
        %v3559 = vshrl.u32 %v3384, 16
        %v3561 = vor.u32 %v3559, %v3557
        %v3563 = vshll.u32 %v3385, 16
        %v3565 = vrot.slane %v3563, 1
        %v3566 = vsel %vm3434, %v3561, %v3565
        %v3567 = vshrl.u32 %v3385, 16
        %v3569 = vor.u32 %v3567, %v3565
        %v3571 = vshll.u32 %v3386, 16
        %v3573 = vrot.slane %v3571, 1
        %v3574 = vsel %vm3434, %v3569, %v3573
        %v3575 = vshrl.u32 %v3386, 16
        %v3577 = vor.u32 %v3575, %v3573
        %v3579 = vshll.u32 %v3387, 16
        %v3581 = vrot.slane %v3579, 1
        %v3582 = vsel %vm3434, %v3577, %v3581
        %v3583 = vshrl.u32 %v3387, 16
        %v3585 = vor.u32 %v3583, %v3581
        %v3587 = vshll.u32 %v3388, 16
        %v3589 = vrot.slane %v3587, 1
        %v3590 = vsel %vm3434, %v3585, %v3589
        %v3591 = vshrl.u32 %v3388, 16
        %v3593 = vor.u32 %v3591, %v3589
        %v3595 = vshll.u32 %v3389, 16
        %v3597 = vrot.slane %v3595, 1
        %v3598 = vsel %vm3434, %v3593, %v3597
        %v3599 = vshrl.u32 %v3389, 16
        %v3601 = vor.u32 %v3599, %v3597
        %v3603 = vshll.u32 %v3390, 16
        %v3605 = vrot.slane %v3603, 1
        %v3606 = vsel %vm3434, %v3601, %v3605
        %v3607 = vshrl.u32 %v3390, 16
        %v3609 = vor.u32 %v3607, %v3605
        %v3611 = vshll.u32 %v3391, 16
        %v3613 = vrot.slane %v3611, 1
        %v3614 = vsel %vm3434, %v3609, %v3613
        %v3615 = vshrl.u32 %v3391, 16
        %v3617 = vor.u32 %v3615, %v3613
        %v3619 = vshll.u32 %v3392, 16
        %v3621 = vrot.slane %v3619, 1
        %v3622 = vsel %vm3434, %v3617, %v3621
        %v3623 = vshrl.u32 %v3392, 16
        %v3625 = vor.u32 %v3623, %v3621
        %v3627 = vshll.u32 %v3393, 16
        %v3629 = vrot.slane %v3627, 1
        %v3630 = vsel %vm3434, %v3625, %v3629
        %v3631 = vshrl.u32 %v3393, 16
        %v3633 = vor.u32 %v3631, %v3629
        %v3635 = vshll.u32 %v3394, 16
        %v3637 = vrot.slane %v3635, 1
        %v3638 = vsel %vm3434, %v3633, %v3637
        %v3639 = vshrl.u32 %v3394, 16
        %v3641 = vor.u32 %v3639, %v3637
        %v3643 = vshll.u32 %v3395, 16
        %v3645 = vrot.slane %v3643, 1
        %v3646 = vsel %vm3434, %v3641, %v3645
        %v3647 = vshrl.u32 %v3395, 16
        %v3649 = vor.u32 %v3647, %v3645
        %v3651 = vshll.u32 %v3396, 16
        %v3653 = vrot.slane %v3651, 1
        %v3654 = vsel %vm3434, %v3649, %v3653
        %v3655 = vshrl.u32 %v3396, 16
        %v3657 = vor.u32 %v3655, %v3653
        %v3659 = vshll.u32 %v3397, 16
        %v3661 = vrot.slane %v3659, 1
        %v3662 = vsel %vm3434, %v3657, %v3661
        %v3663 = vshrl.u32 %v3397, 16
        %v3665 = vor.u32 %v3663, %v3661
        %v3667 = vshll.u32 %v3398, 16
        %v3669 = vrot.slane %v3667, 1
        %v3670 = vsel %vm3434, %v3665, %v3669
        %v3671 = vshrl.u32 %v3398, 16
        %v3673 = vor.u32 %v3671, %v3669
        %v3675 = vshll.u32 %v3399, 16
        %v3677 = vrot.slane %v3675, 1
        %v3678 = vsel %vm3434, %v3673, %v3677
        %v3679 = vshrl.u32 %v3399, 16
        %v3681 = vor.u32 %v3679, %v3677
        %v3683 = vshll.u32 %v3400, 16
        %v3685 = vrot.slane %v3683, 1
        %v3686 = vsel %vm3434, %v3681, %v3685
        %v3687 = vshrl.u32 %v3400, 16
        %v3689 = vor.u32 %v3687, %v3685
        %v3691 = vshll.u32 %v3401, 16
        %v3693 = vrot.slane %v3691, 1
        %v3694 = vsel %vm3434, %v3689, %v3693
        %v3695 = vshrl.u32 %v3401, 16
        %v3697 = vor.u32 %v3695, %v3693
        %v3699 = vshll.u32 %v3402, 16
        %v3701 = vrot.slane %v3699, 1
        %v3702 = vsel %vm3434, %v3697, %v3701
        %v3703 = vshrl.u32 %v3402, 16
        %v3705 = vor.u32 %v3703, %v3701
        %v3707 = vshll.u32 %v3403, 16
        %v3709 = vrot.slane %v3707, 1
        %v3710 = vsel %vm3434, %v3705, %v3709
        %v3711 = vshrl.u32 %v3403, 16
        %v3713 = vor.u32 %v3711, %v3709
        %v3715 = vshll.u32 %v3404, 16
        %v3717 = vrot.slane %v3715, 1
        %v3718 = vsel %vm3434, %v3713, %v3717
        %v3719 = vshrl.u32 %v3404, 16
        %v3721 = vor.u32 %v3719, %v3717
        %v3723 = vshll.u32 %v3405, 16
        %v3725 = vrot.slane %v3723, 1
        %v3726 = vsel %vm3434, %v3721, %v3725
        %v3727 = vshrl.u32 %v3405, 16
        %v3729 = vor.u32 %v3727, %v3725
        %v3731 = vshll.u32 %v3406, 16
        %v3733 = vrot.slane %v3731, 1
        %v3734 = vsel %vm3434, %v3729, %v3733
        %v3735 = vshrl.u32 %v3406, 16
        %v3737 = vor.u32 %v3735, %v3733
        %v3739 = vshll.u32 %v3407, 16
        %v3741 = vrot.slane %v3739, 1
        %v3742 = vsel %vm3434, %v3737, %v3741
        %v3743 = vshrl.u32 %v3407, 16
        %v3745 = vor.u32 %v3743, %v3741
        %v3747 = vshll.u32 %v3408, 16
        %v3749 = vrot.slane %v3747, 1
        %v3750 = vsel %vm3434, %v3745, %v3749
        %v3751 = vshrl.u32 %v3408, 16
        %v3753 = vor.u32 %v3751, %v3749
        %v3755 = vshll.u32 %v3409, 16
        %v3757 = vrot.slane %v3755, 1
        %v3758 = vsel %vm3434, %v3753, %v3757
        %v3759 = vshrl.u32 %v3409, 16
        %v3761 = vor.u32 %v3759, %v3757
        %v3763 = vshll.u32 %v3410, 16
        %v3765 = vrot.slane %v3763, 1
        %v3766 = vsel %vm3434, %v3761, %v3765
        %v3767 = vshrl.u32 %v3410, 16
        %v3769 = vor.u32 %v3767, %v3765
        %v3771 = vshll.u32 %v3411, 16
        %v3773 = vrot.slane %v3771, 1
        %v3774 = vsel %vm3434, %v3769, %v3773
        %v3775 = vshrl.u32 %v3411, 16
        %v3777 = vor.u32 %v3775, %v3773
        %v3779 = vshll.u32 %v3412, 16
        %v3781 = vrot.slane %v3779, 1
        %v3782 = vsel %vm3434, %v3777, %v3781
        %v3783 = vshrl.u32 %v3412, 16
        %v3785 = vor.u32 %v3783, %v3781
        %v3787 = vshll.u32 %v3413, 16
        %v3789 = vrot.slane %v3787, 1
        %v3790 = vsel %vm3434, %v3785, %v3789
        %v3791 = vshrl.u32 %v3413, 16
        %v3793 = vor.u32 %v3791, %v3789
        %v3795 = vshll.u32 %v3414, 16
        %v3797 = vrot.slane %v3795, 1
        %v3798 = vsel %vm3434, %v3793, %v3797
        %v3799 = vshrl.u32 %v3414, 16
        %v3801 = vor.u32 %v3799, %v3797
        %v3803 = vshll.u32 %v3415, 16
        %v3805 = vrot.slane %v3803, 1
        %v3806 = vsel %vm3434, %v3801, %v3805
        %v3807 = vshrl.u32 %v3415, 16
        %v3809 = vor.u32 %v3807, %v3805
        %v3811 = vshll.u32 %v3416, 16
        %v3813 = vrot.slane %v3811, 1
        %v3814 = vsel %vm3434, %v3809, %v3813
        %v3815 = vshrl.u32 %v3416, 16
        %v3817 = vor.u32 %v3815, %v3813
        %v3819 = vshll.u32 %v3417, 16
        %v3821 = vrot.slane %v3819, 1
        %v3822 = vsel %vm3434, %v3817, %v3821
        %v3823 = vshrl.u32 %v3417, 16
        %v3825 = vor.u32 %v3823, %v3821
        %v3827 = vshll.u32 %v3418, 16
        %v3829 = vrot.slane %v3827, 1
        %v3830 = vsel %vm3434, %v3825, %v3829
        %v3831 = vshrl.u32 %v3418, 16
        %v3833 = vor.u32 %v3831, %v3829
        %v3835 = vshll.u32 %v3419, 16
        %v3837 = vrot.slane %v3835, 1
        %v3838 = vsel %vm3434, %v3833, %v3837
        %v3839 = vshrl.u32 %v3419, 16
        %v3841 = vor.u32 %v3839, %v3837
        %v3843 = vshll.u32 %v3420, 16
        %v3845 = vrot.slane %v3843, 1
        %v3846 = vsel %vm3434, %v3841, %v3845
        %v3847 = vshrl.u32 %v3420, 16
        %v3849 = vor.u32 %v3847, %v3845
        %v3851 = vshll.u32 %v3421, 16
        %v3853 = vrot.slane %v3851, 1
        %v3854 = vsel %vm3434, %v3849, %v3853
        %v3855 = vshrl.u32 %v3421, 16
        %v3857 = vor.u32 %v3855, %v3853
        %v3859 = vshll.u32 %v3422, 16
        %v3861 = vrot.slane %v3859, 1
        %v3862 = vsel %vm3434, %v3857, %v3861
        %v3863 = vshrl.u32 %v3422, 16
        %v3865 = vor.u32 %v3863, %v3861
        %v3867 = vshll.u32 %v3423, 16
        %v3869 = vrot.slane %v3867, 1
        %v3870 = vsel %vm3434, %v3865, %v3869
        %v3871 = vshrl.u32 %v3423, 16
        %v3873 = vor.u32 %v3871, %v3869
        %v3875 = vshll.u32 %v3424, 16
        %v3877 = vrot.slane %v3875, 1
        %v3878 = vsel %vm3434, %v3873, %v3877
        %v3879 = vshrl.u32 %v3424, 16
        %v3881 = vor.u32 %v3879, %v3877
        %v3883 = vshll.u32 %v3425, 16
        %v3885 = vrot.slane %v3883, 1
        %v3886 = vsel %vm3434, %v3881, %v3885
        %v3887 = vshrl.u32 %v3425, 16
        %v3889 = vor.u32 %v3887, %v3885
        %v3891 = vshll.u32 %v3426, 16
        %v3893 = vrot.slane %v3891, 1
        %v3894 = vsel %vm3434, %v3889, %v3893
        %v3895 = vshrl.u32 %v3426, 16
        %v3897 = vor.u32 %v3895, %v3893
        %v3899 = vshll.u32 %v3427, 16
        %v3901 = vrot.slane %v3899, 1
        %v3902 = vsel %vm3434, %v3897, %v3901
        %v3903 = vshrl.u32 %v3427, 16
        %v3905 = vor.u32 %v3903, %v3901
        %v3907 = vshll.u32 %v3428, 16
        %v3909 = vrot.slane %v3907, 1
        %v3910 = vsel %vm3434, %v3905, %v3909
        %v3911 = vshrl.u32 %v3428, 16
        %v3913 = vor.u32 %v3911, %v3909
        %v3915 = vshll.u32 %v3429, 16
        %v3917 = vrot.slane %v3915, 1
        %v3918 = vsel %vm3434, %v3913, %v3917
        %v3919 = vshrl.u32 %v3429, 16
        %v3921 = vor.u32 %v3919, %v3917
        %v3923 = vshll.u32 %v3430, 16
        %v3925 = vrot.slane %v3923, 1
        %v3926 = vsel %vm3434, %v3921, %v3925
        %v3927 = vshrl.u32 %v3430, 16
        %v3929 = vor.u32 %v3927, %v3925
        %v3931 = vshll.u32 %v3431, 16
        %v3933 = vrot.slane %v3931, 1
        %v3934 = vsel %vm3434, %v3929, %v3933
        %v3935 = vshrl.u32 %v3431, 16
        %v3937 = vor.u32 %v3935, %v3933
        %v3939 = vshll.u32 %v3432, 16
        %v3941 = vrot.slane %v3939, 1
        %v3942 = vsel %vm3434, %v3937, %v3941
        %v3943 = vshrl.u32 %v3432, 16
        %v3945 = vor.u32 %v3943, %v3941
        %v3947 = vshll.u32 %v3433, 16
        %v3949 = vrot.slane %v3947, 1
        %v3950 = vsel %vm3434, %v3945, %v3949
        %vm4080 = vcmask 1046528
        %v4081 = vrot.slane %v3369, 1
        %v4082 = vrot.slane %v3370, 1
        %v4083 = vsel %vm4080, %v4081, %v4082
        %v4084 = vrot.slane %v3371, 1
        %v4085 = vsel %vm4080, %v4082, %v4084
        %v4086 = vrot.slane %v3372, 1
        %v4087 = vsel %vm4080, %v4084, %v4086
        %v4088 = vrot.slane %v3373, 1
        %v4089 = vsel %vm4080, %v4086, %v4088
        %v4090 = vrot.slane %v3374, 1
        %v4091 = vsel %vm4080, %v4088, %v4090
        %v4092 = vrot.slane %v3375, 1
        %v4093 = vsel %vm4080, %v4090, %v4092
        %v4094 = vrot.slane %v3376, 1
        %v4095 = vsel %vm4080, %v4092, %v4094
        %v4096 = vrot.slane %v3377, 1
        %v4097 = vsel %vm4080, %v4094, %v4096
        %v4098 = vrot.slane %v3378, 1
        %v4099 = vsel %vm4080, %v4096, %v4098
        %v4100 = vrot.slane %v3379, 1
        %v4101 = vsel %vm4080, %v4098, %v4100
        %v4102 = vrot.slane %v3380, 1
        %v4103 = vsel %vm4080, %v4100, %v4102
        %v4104 = vrot.slane %v3381, 1
        %v4105 = vsel %vm4080, %v4102, %v4104
        %v4106 = vrot.slane %v3382, 1
        %v4107 = vsel %vm4080, %v4104, %v4106
        %v4108 = vrot.slane %v3383, 1
        %v4109 = vsel %vm4080, %v4106, %v4108
        %v4110 = vrot.slane %v3384, 1
        %v4111 = vsel %vm4080, %v4108, %v4110
        %v4112 = vrot.slane %v3385, 1
        %v4113 = vsel %vm4080, %v4110, %v4112
        %v4114 = vrot.slane %v3386, 1
        %v4115 = vsel %vm4080, %v4112, %v4114
        %v4116 = vrot.slane %v3387, 1
        %v4117 = vsel %vm4080, %v4114, %v4116
        %v4118 = vrot.slane %v3388, 1
        %v4119 = vsel %vm4080, %v4116, %v4118
        %v4120 = vrot.slane %v3389, 1
        %v4121 = vsel %vm4080, %v4118, %v4120
        %v4122 = vrot.slane %v3390, 1
        %v4123 = vsel %vm4080, %v4120, %v4122
        %v4124 = vrot.slane %v3391, 1
        %v4125 = vsel %vm4080, %v4122, %v4124
        %v4126 = vrot.slane %v3392, 1
        %v4127 = vsel %vm4080, %v4124, %v4126
        %v4128 = vrot.slane %v3393, 1
        %v4129 = vsel %vm4080, %v4126, %v4128
        %v4130 = vrot.slane %v3394, 1
        %v4131 = vsel %vm4080, %v4128, %v4130
        %v4132 = vrot.slane %v3395, 1
        %v4133 = vsel %vm4080, %v4130, %v4132
        %v4134 = vrot.slane %v3396, 1
        %v4135 = vsel %vm4080, %v4132, %v4134
        %v4136 = vrot.slane %v3397, 1
        %v4137 = vsel %vm4080, %v4134, %v4136
        %v4138 = vrot.slane %v3398, 1
        %v4139 = vsel %vm4080, %v4136, %v4138
        %v4140 = vrot.slane %v3399, 1
        %v4141 = vsel %vm4080, %v4138, %v4140
        %v4142 = vrot.slane %v3400, 1
        %v4143 = vsel %vm4080, %v4140, %v4142
        %v4144 = vrot.slane %v3401, 1
        %v4145 = vsel %vm4080, %v4142, %v4144
        %v4146 = vrot.slane %v3402, 1
        %v4147 = vsel %vm4080, %v4144, %v4146
        %v4148 = vrot.slane %v3403, 1
        %v4149 = vsel %vm4080, %v4146, %v4148
        %v4150 = vrot.slane %v3404, 1
        %v4151 = vsel %vm4080, %v4148, %v4150
        %v4152 = vrot.slane %v3405, 1
        %v4153 = vsel %vm4080, %v4150, %v4152
        %v4154 = vrot.slane %v3406, 1
        %v4155 = vsel %vm4080, %v4152, %v4154
        %v4156 = vrot.slane %v3407, 1
        %v4157 = vsel %vm4080, %v4154, %v4156
        %v4158 = vrot.slane %v3408, 1
        %v4159 = vsel %vm4080, %v4156, %v4158
        %v4160 = vrot.slane %v3409, 1
        %v4161 = vsel %vm4080, %v4158, %v4160
        %v4162 = vrot.slane %v3410, 1
        %v4163 = vsel %vm4080, %v4160, %v4162
        %v4164 = vrot.slane %v3411, 1
        %v4165 = vsel %vm4080, %v4162, %v4164
        %v4166 = vrot.slane %v3412, 1
        %v4167 = vsel %vm4080, %v4164, %v4166
        %v4168 = vrot.slane %v3413, 1
        %v4169 = vsel %vm4080, %v4166, %v4168
        %v4170 = vrot.slane %v3414, 1
        %v4171 = vsel %vm4080, %v4168, %v4170
        %v4172 = vrot.slane %v3415, 1
        %v4173 = vsel %vm4080, %v4170, %v4172
        %v4174 = vrot.slane %v3416, 1
        %v4175 = vsel %vm4080, %v4172, %v4174
        %v4176 = vrot.slane %v3417, 1
        %v4177 = vsel %vm4080, %v4174, %v4176
        %v4178 = vrot.slane %v3418, 1
        %v4179 = vsel %vm4080, %v4176, %v4178
        %v4180 = vrot.slane %v3419, 1
        %v4181 = vsel %vm4080, %v4178, %v4180
        %v4182 = vrot.slane %v3420, 1
        %v4183 = vsel %vm4080, %v4180, %v4182
        %v4184 = vrot.slane %v3421, 1
        %v4185 = vsel %vm4080, %v4182, %v4184
        %v4186 = vrot.slane %v3422, 1
        %v4187 = vsel %vm4080, %v4184, %v4186
        %v4188 = vrot.slane %v3423, 1
        %v4189 = vsel %vm4080, %v4186, %v4188
        %v4190 = vrot.slane %v3424, 1
        %v4191 = vsel %vm4080, %v4188, %v4190
        %v4192 = vrot.slane %v3425, 1
        %v4193 = vsel %vm4080, %v4190, %v4192
        %v4194 = vrot.slane %v3426, 1
        %v4195 = vsel %vm4080, %v4192, %v4194
        %v4196 = vrot.slane %v3427, 1
        %v4197 = vsel %vm4080, %v4194, %v4196
        %v4198 = vrot.slane %v3428, 1
        %v4199 = vsel %vm4080, %v4196, %v4198
        %v4200 = vrot.slane %v3429, 1
        %v4201 = vsel %vm4080, %v4198, %v4200
        %v4202 = vrot.slane %v3430, 1
        %v4203 = vsel %vm4080, %v4200, %v4202
        %v4204 = vrot.slane %v3431, 1
        %v4205 = vsel %vm4080, %v4202, %v4204
        %v4206 = vrot.slane %v3432, 1
        %v4207 = vsel %vm4080, %v4204, %v4206
        %v4208 = vrot.slane %v3433, 1
        %v4209 = vsel %vm4080, %v4206, %v4208
        %v4274 = vld [vmem:[#allocation8] sm:$0xf]
        %v4275 = vld [vmem:[#allocation8 + $0x4] sm:$0xf]
        %v4276 = vld [vmem:[#allocation8 + $0x8] sm:$0xf]
        %v4277 = vld [vmem:[#allocation8 + $0xc] sm:$0xf]
        %v4278 = vld [vmem:[#allocation8 + $0x10] sm:$0xf]
        %v4279 = vld [vmem:[#allocation8 + $0x14] sm:$0xf]
        %v4280 = vld [vmem:[#allocation8 + $0x18] sm:$0xf]
        %v4281 = vld [vmem:[#allocation8 + $0x1c] sm:$0xf]
        %v4282 = vld [vmem:[#allocation8 + $0x20] sm:$0xf]
        %v4283 = vld [vmem:[#allocation8 + $0x24] sm:$0xf]
        %v4284 = vld [vmem:[#allocation8 + $0x28] sm:$0xf]
        %v4285 = vld [vmem:[#allocation8 + $0x2c] sm:$0xf]
        %v4286 = vld [vmem:[#allocation8 + $0x30] sm:$0xf]
        %v4287 = vld [vmem:[#allocation8 + $0x34] sm:$0xf]
        %v4288 = vld [vmem:[#allocation8 + $0x38] sm:$0xf]
        %v4289 = vld [vmem:[#allocation8 + $0x3c] sm:$0xf]
        %v4290 = vld [vmem:[#allocation8 + $0x40] sm:$0xf]
        %v4291 = vld [vmem:[#allocation8 + $0x44] sm:$0xf]
        %v4292 = vld [vmem:[#allocation8 + $0x48] sm:$0xf]
        %v4293 = vld [vmem:[#allocation8 + $0x4c] sm:$0xf]
        %v4294 = vld [vmem:[#allocation8 + $0x50] sm:$0xf]
        %v4295 = vld [vmem:[#allocation8 + $0x54] sm:$0xf]
        %v4296 = vld [vmem:[#allocation8 + $0x58] sm:$0xf]
        %v4297 = vld [vmem:[#allocation8 + $0x5c] sm:$0xf]
        %v4298 = vld [vmem:[#allocation8 + $0x60] sm:$0xf]
        %v4299 = vld [vmem:[#allocation8 + $0x64] sm:$0xf]
        %v4300 = vld [vmem:[#allocation8 + $0x68] sm:$0xf]
        %v4301 = vld [vmem:[#allocation8 + $0x6c] sm:$0xf]
        %v4302 = vld [vmem:[#allocation8 + $0x70] sm:$0xf]
        %v4303 = vld [vmem:[#allocation8 + $0x74] sm:$0xf]
        %v4304 = vld [vmem:[#allocation8 + $0x78] sm:$0xf]
        %v4305 = vld [vmem:[#allocation8 + $0x7c] sm:$0xf]
        %v4306 = vld [vmem:[#allocation8 + $0x80] sm:$0xf]
        %v4307 = vld [vmem:[#allocation8 + $0x84] sm:$0xf]
        %v4308 = vld [vmem:[#allocation8 + $0x88] sm:$0xf]
        %v4309 = vld [vmem:[#allocation8 + $0x8c] sm:$0xf]
        %v4310 = vld [vmem:[#allocation8 + $0x90] sm:$0xf]
        %v4311 = vld [vmem:[#allocation8 + $0x94] sm:$0xf]
        %v4312 = vld [vmem:[#allocation8 + $0x98] sm:$0xf]
        %v4313 = vld [vmem:[#allocation8 + $0x9c] sm:$0xf]
        %v4314 = vld [vmem:[#allocation8 + $0xa0] sm:$0xf]
        %v4315 = vld [vmem:[#allocation8 + $0xa4] sm:$0xf]
        %v4316 = vld [vmem:[#allocation8 + $0xa8] sm:$0xf]
        %v4317 = vld [vmem:[#allocation8 + $0xac] sm:$0xf]
        %v4318 = vld [vmem:[#allocation8 + $0xb0] sm:$0xf]
        %v4319 = vld [vmem:[#allocation8 + $0xb4] sm:$0xf]
        %v4320 = vld [vmem:[#allocation8 + $0xb8] sm:$0xf]
        %v4321 = vld [vmem:[#allocation8 + $0xbc] sm:$0xf]
        %v4322 = vld [vmem:[#allocation10] sm:$0x1]
        %v4324 = vlaneseq
        %v4325 = vshrl.u32 %v4324, 7
        %v4326 = vsub.s32 0, %v4325
        %v4327 = vrot.slane %v4322, %v4326
        %v4377 = vunpack.c.l.b16 %v4274
        %v4378 = vunpack.c.l.b16 %v4275
        %v4379 = vunpack.c.l.b16 %v4276
        %v4380 = vunpack.c.l.b16 %v4277
        %v4381 = vunpack.c.l.b16 %v4278
        %v4382 = vunpack.c.l.b16 %v4279
        %v4383 = vunpack.c.l.b16 %v4280
        %v4384 = vunpack.c.l.b16 %v4281
        %v4385 = vunpack.c.l.b16 %v4282
        %v4386 = vunpack.c.l.b16 %v4283
        %v4387 = vunpack.c.l.b16 %v4284
        %v4388 = vunpack.c.l.b16 %v4285
        %v4389 = vunpack.c.l.b16 %v4286
        %v4390 = vunpack.c.l.b16 %v4287
        %v4391 = vunpack.c.l.b16 %v4288
        %v4392 = vunpack.c.l.b16 %v4289
        %v4393 = vunpack.c.l.b16 %v4290
        %v4394 = vunpack.c.l.b16 %v4291
        %v4395 = vunpack.c.l.b16 %v4292
        %v4396 = vunpack.c.l.b16 %v4293
        %v4397 = vunpack.c.l.b16 %v4294
        %v4398 = vunpack.c.l.b16 %v4295
        %v4399 = vunpack.c.l.b16 %v4296
        %v4400 = vunpack.c.l.b16 %v4297
        %v4401 = vunpack.c.l.b16 %v4298
        %v4402 = vunpack.c.l.b16 %v4299
        %v4403 = vunpack.c.l.b16 %v4300
        %v4404 = vunpack.c.l.b16 %v4301
        %v4405 = vunpack.c.l.b16 %v4302
        %v4406 = vunpack.c.l.b16 %v4303
        %v4407 = vunpack.c.l.b16 %v4304
        %v4408 = vunpack.c.l.b16 %v4305
        %v4409 = vunpack.c.l.b16 %v4306
        %v4410 = vunpack.c.l.b16 %v4307
        %v4411 = vunpack.c.l.b16 %v4308
        %v4412 = vunpack.c.l.b16 %v4309
        %v4413 = vunpack.c.l.b16 %v4310
        %v4414 = vunpack.c.l.b16 %v4311
        %v4415 = vunpack.c.l.b16 %v4312
        %v4416 = vunpack.c.l.b16 %v4313
        %v4417 = vunpack.c.l.b16 %v4314
        %v4418 = vunpack.c.l.b16 %v4315
        %v4419 = vunpack.c.l.b16 %v4316
        %v4420 = vunpack.c.l.b16 %v4317
        %v4421 = vunpack.c.l.b16 %v4318
        %v4422 = vunpack.c.l.b16 %v4319
        %v4423 = vunpack.c.l.b16 %v4320
        %v4424 = vunpack.c.l.b16 %v4321
        %v4425 = vpack.c.b16 %v4378, %v4377
        %v4426 = vpack.c.b16 %v4380, %v4379
        %v4427 = vpack.c.b16 %v4382, %v4381
        %v4428 = vpack.c.b16 %v4384, %v4383
        %v4429 = vpack.c.b16 %v4386, %v4385
        %v4430 = vpack.c.b16 %v4388, %v4387
        %v4431 = vpack.c.b16 %v4390, %v4389
        %v4432 = vpack.c.b16 %v4392, %v4391
        %v4433 = vpack.c.b16 %v4394, %v4393
        %v4434 = vpack.c.b16 %v4396, %v4395
        %v4435 = vpack.c.b16 %v4398, %v4397
        %v4436 = vpack.c.b16 %v4400, %v4399
        %v4437 = vpack.c.b16 %v4402, %v4401
        %v4438 = vpack.c.b16 %v4404, %v4403
        %v4439 = vpack.c.b16 %v4406, %v4405
        %v4440 = vpack.c.b16 %v4408, %v4407
        %v4441 = vpack.c.b16 %v4410, %v4409
        %v4442 = vpack.c.b16 %v4412, %v4411
        %v4443 = vpack.c.b16 %v4414, %v4413
        %v4444 = vpack.c.b16 %v4416, %v4415
        %v4445 = vpack.c.b16 %v4418, %v4417
        %v4446 = vpack.c.b16 %v4420, %v4419
        %v4447 = vpack.c.b16 %v4422, %v4421
        %v4448 = vpack.c.b16 %v4424, %v4423
        %4473 = vmatprep.subr.bf16.mxu0 0
        %4474 = vmatpush1.bf16.msra.mxu0 %v4425
        %4475 = vmatprep.subr.bf16.mxu0 0
        %4476 = vmatpush1.bf16.msra.mxu0 %v4426
        %4477 = vmatprep.subr.bf16.mxu0 0
        %4478 = vmatpush1.bf16.msra.mxu0 %v4427
        %4479 = vmatprep.subr.bf16.mxu0 0
        %4480 = vmatpush1.bf16.msra.mxu0 %v4428
        %4481 = vmatprep.subr.bf16.mxu0 0
        %4482 = vmatpush1.bf16.msra.mxu0 %v4429
        %4483 = vmatprep.subr.bf16.mxu0 0
        %4484 = vmatpush1.bf16.msra.mxu0 %v4430
        %4485 = vmatprep.subr.bf16.mxu0 0
        %4486 = vmatpush1.bf16.msra.mxu0 %v4431
        %4487 = vmatprep.subr.bf16.mxu0 0
        %4488 = vmatpush1.bf16.msra.mxu0 %v4432
        %4489 = vmatprep.subr.bf16.mxu0 0
        %4490 = vmatpush1.bf16.msra.mxu0 %v4433
        %4491 = vmatprep.subr.bf16.mxu0 0
        %4492 = vmatpush1.bf16.msra.mxu0 %v4434
        %4493 = vmatprep.subr.bf16.mxu0 0
        %4494 = vmatpush1.bf16.msra.mxu0 %v4435
        %4495 = vmatprep.subr.bf16.mxu0 0
        %4496 = vmatpush1.bf16.msra.mxu0 %v4436
        %4497 = vmatprep.subr.bf16.mxu0 0
        %4498 = vmatpush1.bf16.msra.mxu0 %v4437
        %4499 = vmatprep.subr.bf16.mxu0 0
        %4500 = vmatpush1.bf16.msra.mxu0 %v4438
        %4501 = vmatprep.subr.bf16.mxu0 0
        %4502 = vmatpush1.bf16.msra.mxu0 %v4439
        %4503 = vmatprep.subr.bf16.mxu0 0
        %4504 = vmatpush1.bf16.msra.mxu0 %v4440
        %4505 = vmatprep.mubr.bf16.mxu0 %v3446
        %4506 = vmatmul.mubr.bf16.gmra.mrb[0].mxu0 %v3369
        %v4507 = vpop.f32.mrb[0].mxu0
        %v4508 = vadd.f32 %v4327, %v4507
        %v4509 = vpop.f32.mrb[0].mxu0
        %v4510 = vpop.f32.mrb[0].mxu0
        %v4511 = vadd.f32 %v4327, %v4510
        %v4512 = vpop.f32.mrb[0].mxu0
        %4513 = vmatprep.mubr.bf16.mxu0 %v3454
        %4514 = vmatmul.mubr.bf16.gmra.mrb[0].mxu0 %v3370
        %v4515 = vpop.f32.mrb[0].mxu0
        %v4516 = vadd.f32 %v4327, %v4515
        %v4517 = vpop.f32.mrb[0].mxu0
        %v4518 = vpop.f32.mrb[0].mxu0
        %v4519 = vadd.f32 %v4327, %v4518
        %v4520 = vpop.f32.mrb[0].mxu0
        %4521 = vmatprep.mubr.bf16.mxu0 %v3462
        %4522 = vmatmul.mubr.bf16.gmra.mrb[0].mxu0 %v3371
        %v4523 = vpop.f32.mrb[0].mxu0
        %v4524 = vadd.f32 %v4327, %v4523
        %v4525 = vpop.f32.mrb[0].mxu0
        %v4526 = vpop.f32.mrb[0].mxu0
        %v4527 = vadd.f32 %v4327, %v4526
        %v4528 = vpop.f32.mrb[0].mxu0
        %4529 = vmatprep.mubr.bf16.mxu0 %v3470
        %4530 = vmatmul.mubr.bf16.gmra.mrb[0].mxu0 %v3372
        %v4531 = vpop.f32.mrb[0].mxu0
        %v4532 = vadd.f32 %v4327, %v4531
        %v4533 = vpop.f32.mrb[0].mxu0
        %v4534 = vpop.f32.mrb[0].mxu0
        %v4535 = vadd.f32 %v4327, %v4534
        %v4536 = vpop.f32.mrb[0].mxu0
        %4537 = vmatprep.mubr.bf16.mxu0 %v3478
        %4538 = vmatmul.mubr.bf16.gmra.mrb[0].mxu0 %v3373
        %v4539 = vpop.f32.mrb[0].mxu0
        %v4540 = vadd.f32 %v4327, %v4539
        %v4541 = vpop.f32.mrb[0].mxu0
        %v4542 = vpop.f32.mrb[0].mxu0
        %v4543 = vadd.f32 %v4327, %v4542
        %v4544 = vpop.f32.mrb[0].mxu0
        %4545 = vmatprep.mubr.bf16.mxu0 %v3486
        %4546 = vmatmul.mubr.bf16.gmra.mrb[0].mxu0 %v3374
        %v4547 = vpop.f32.mrb[0].mxu0
        %v4548 = vadd.f32 %v4327, %v4547
        %v4549 = vpop.f32.mrb[0].mxu0
        %v4550 = vpop.f32.mrb[0].mxu0
        %v4551 = vadd.f32 %v4327, %v4550
        %v4552 = vpop.f32.mrb[0].mxu0
        %4553 = vmatprep.mubr.bf16.mxu0 %v3494
        %4554 = vmatmul.mubr.bf16.gmra.mrb[0].mxu0 %v3375
        %v4555 = vpop.f32.mrb[0].mxu0
        %v4556 = vadd.f32 %v4327, %v4555
        %v4557 = vpop.f32.mrb[0].mxu0
        %v4558 = vpop.f32.mrb[0].mxu0
        %v4559 = vadd.f32 %v4327, %v4558
        %v4560 = vpop.f32.mrb[0].mxu0
        %4561 = vmatprep.mubr.bf16.mxu0 %v3502
        %4562 = vmatmul.mubr.bf16.gmra.mrb[0].mxu0 %v3376
        %v4563 = vpop.f32.mrb[0].mxu0
        %v4564 = vadd.f32 %v4327, %v4563
        %v4565 = vpop.f32.mrb[0].mxu0
        %v4566 = vpop.f32.mrb[0].mxu0
        %v4567 = vadd.f32 %v4327, %v4566
        %v4568 = vpop.f32.mrb[0].mxu0
        %4569 = vmatprep.mubr.bf16.mxu0 %v3510
        %4570 = vmatmul.mubr.bf16.gmra.mrb[0].mxu0 %v3377
        %v4571 = vpop.f32.mrb[0].mxu0
        %v4572 = vadd.f32 %v4327, %v4571
        %v4573 = vpop.f32.mrb[0].mxu0
        %v4574 = vpop.f32.mrb[0].mxu0
        %v4575 = vadd.f32 %v4327, %v4574
        %v4576 = vpop.f32.mrb[0].mxu0
        %4577 = vmatprep.mubr.bf16.mxu0 %v3518
        %4578 = vmatmul.mubr.bf16.gmra.mrb[0].mxu0 %v3378
        %v4579 = vpop.f32.mrb[0].mxu0
        %v4580 = vadd.f32 %v4327, %v4579
        %v4581 = vpop.f32.mrb[0].mxu0
        %v4582 = vpop.f32.mrb[0].mxu0
        %v4583 = vadd.f32 %v4327, %v4582
        %v4584 = vpop.f32.mrb[0].mxu0
        %4585 = vmatprep.mubr.bf16.mxu0 %v3526
        %4586 = vmatmul.mubr.bf16.gmra.mrb[0].mxu0 %v3379
        %v4587 = vpop.f32.mrb[0].mxu0
        %v4588 = vadd.f32 %v4327, %v4587
        %v4589 = vpop.f32.mrb[0].mxu0
        %v4590 = vpop.f32.mrb[0].mxu0
        %v4591 = vadd.f32 %v4327, %v4590
        %v4592 = vpop.f32.mrb[0].mxu0
        %4593 = vmatprep.mubr.bf16.mxu0 %v3534
        %4594 = vmatmul.mubr.bf16.gmra.mrb[0].mxu0 %v3380
        %v4595 = vpop.f32.mrb[0].mxu0
        %v4596 = vadd.f32 %v4327, %v4595
        %v4597 = vpop.f32.mrb[0].mxu0
        %v4598 = vpop.f32.mrb[0].mxu0
        %v4599 = vadd.f32 %v4327, %v4598
        %v4600 = vpop.f32.mrb[0].mxu0
        %4601 = vmatprep.mubr.bf16.mxu0 %v3542
        %4602 = vmatmul.mubr.bf16.gmra.mrb[0].mxu0 %v3381
        %v4603 = vpop.f32.mrb[0].mxu0
        %v4604 = vadd.f32 %v4327, %v4603
        %v4605 = vpop.f32.mrb[0].mxu0
        %v4606 = vpop.f32.mrb[0].mxu0
        %v4607 = vadd.f32 %v4327, %v4606
        %v4608 = vpop.f32.mrb[0].mxu0
        %4609 = vmatprep.mubr.bf16.mxu0 %v3550
        %4610 = vmatmul.mubr.bf16.gmra.mrb[0].mxu0 %v3382
        %v4611 = vpop.f32.mrb[0].mxu0
        %v4612 = vadd.f32 %v4327, %v4611
        %v4613 = vpop.f32.mrb[0].mxu0
        %v4614 = vpop.f32.mrb[0].mxu0
        %v4615 = vadd.f32 %v4327, %v4614
        %v4616 = vpop.f32.mrb[0].mxu0
        %4617 = vmatprep.mubr.bf16.mxu0 %v3558
        %4618 = vmatmul.mubr.bf16.gmra.mrb[0].mxu0 %v3383
        %v4619 = vpop.f32.mrb[0].mxu0
        %v4620 = vadd.f32 %v4327, %v4619
        %v4621 = vpop.f32.mrb[0].mxu0
        %v4622 = vpop.f32.mrb[0].mxu0
        %v4623 = vadd.f32 %v4327, %v4622
        %v4624 = vpop.f32.mrb[0].mxu0
        %4625 = vmatprep.mubr.bf16.mxu0 %v3566
        %4626 = vmatmul.mubr.bf16.gmra.mrb[0].mxu0 %v3384
        %v4627 = vpop.f32.mrb[0].mxu0
        %v4628 = vadd.f32 %v4327, %v4627
        %v4629 = vpop.f32.mrb[0].mxu0
        %v4630 = vpop.f32.mrb[0].mxu0
        %v4631 = vadd.f32 %v4327, %v4630
        %v4632 = vpop.f32.mrb[0].mxu0
        %4633 = vmatprep.mubr.bf16.mxu0 %v3574
        %4634 = vmatmul.mubr.bf16.gmra.mrb[0].mxu0 %v3385
        %v4635 = vpop.f32.mrb[0].mxu0
        %v4636 = vadd.f32 %v4327, %v4635
        %v4637 = vpop.f32.mrb[0].mxu0
        %v4638 = vpop.f32.mrb[0].mxu0
        %v4639 = vadd.f32 %v4327, %v4638
        %v4640 = vpop.f32.mrb[0].mxu0
        %4641 = vmatprep.mubr.bf16.mxu0 %v3582
        %4642 = vmatmul.mubr.bf16.gmra.mrb[0].mxu0 %v3386
        %v4643 = vpop.f32.mrb[0].mxu0
        %v4644 = vadd.f32 %v4327, %v4643
        %v4645 = vpop.f32.mrb[0].mxu0
        %v4646 = vpop.f32.mrb[0].mxu0
        %v4647 = vadd.f32 %v4327, %v4646
        %v4648 = vpop.f32.mrb[0].mxu0
        %4649 = vmatprep.mubr.bf16.mxu0 %v3590
        %4650 = vmatmul.mubr.bf16.gmra.mrb[0].mxu0 %v3387
        %v4651 = vpop.f32.mrb[0].mxu0
        %v4652 = vadd.f32 %v4327, %v4651
        %v4653 = vpop.f32.mrb[0].mxu0
        %v4654 = vpop.f32.mrb[0].mxu0
        %v4655 = vadd.f32 %v4327, %v4654
        %v4656 = vpop.f32.mrb[0].mxu0
        %4657 = vmatprep.mubr.bf16.mxu0 %v3598
        %4658 = vmatmul.mubr.bf16.gmra.mrb[0].mxu0 %v3388
        %v4659 = vpop.f32.mrb[0].mxu0
        %v4660 = vadd.f32 %v4327, %v4659
        %v4661 = vpop.f32.mrb[0].mxu0
        %v4662 = vpop.f32.mrb[0].mxu0
        %v4663 = vadd.f32 %v4327, %v4662
        %v4664 = vpop.f32.mrb[0].mxu0
        %4665 = vmatprep.mubr.bf16.mxu0 %v3606
        %4666 = vmatmul.mubr.bf16.gmra.mrb[0].mxu0 %v3389
        %v4667 = vpop.f32.mrb[0].mxu0
        %v4668 = vadd.f32 %v4327, %v4667
        %v4669 = vpop.f32.mrb[0].mxu0
        %v4670 = vpop.f32.mrb[0].mxu0
        %v4671 = vadd.f32 %v4327, %v4670
        %v4672 = vpop.f32.mrb[0].mxu0
        %4673 = vmatprep.mubr.bf16.mxu0 %v3614
        %4674 = vmatmul.mubr.bf16.gmra.mrb[0].mxu0 %v3390
        %v4675 = vpop.f32.mrb[0].mxu0
        %v4676 = vadd.f32 %v4327, %v4675
        %v4677 = vpop.f32.mrb[0].mxu0
        %v4678 = vpop.f32.mrb[0].mxu0
        %v4679 = vadd.f32 %v4327, %v4678
        %v4680 = vpop.f32.mrb[0].mxu0
        %4681 = vmatprep.mubr.bf16.mxu0 %v3622
        %4682 = vmatmul.mubr.bf16.gmra.mrb[0].mxu0 %v3391
        %v4683 = vpop.f32.mrb[0].mxu0
        %v4684 = vadd.f32 %v4327, %v4683
        %v4685 = vpop.f32.mrb[0].mxu0
        %v4686 = vpop.f32.mrb[0].mxu0
        %v4687 = vadd.f32 %v4327, %v4686
        %v4688 = vpop.f32.mrb[0].mxu0
        %4689 = vmatprep.mubr.bf16.mxu0 %v3630
        %4690 = vmatmul.mubr.bf16.gmra.mrb[0].mxu0 %v3392
        %v4691 = vpop.f32.mrb[0].mxu0
        %v4692 = vadd.f32 %v4327, %v4691
        %v4693 = vpop.f32.mrb[0].mxu0
        %v4694 = vpop.f32.mrb[0].mxu0
        %v4695 = vadd.f32 %v4327, %v4694
        %v4696 = vpop.f32.mrb[0].mxu0
        %4697 = vmatprep.mubr.bf16.mxu0 %v3638
        %4698 = vmatmul.mubr.bf16.gmra.mrb[0].mxu0 %v3393
        %v4699 = vpop.f32.mrb[0].mxu0
        %v4700 = vadd.f32 %v4327, %v4699
        %v4701 = vpop.f32.mrb[0].mxu0
        %v4702 = vpop.f32.mrb[0].mxu0
        %v4703 = vadd.f32 %v4327, %v4702
        %v4704 = vpop.f32.mrb[0].mxu0
        %4705 = vmatprep.mubr.bf16.mxu0 %v3646
        %4706 = vmatmul.mubr.bf16.gmra.mrb[0].mxu0 %v3394
        %v4707 = vpop.f32.mrb[0].mxu0
        %v4708 = vadd.f32 %v4327, %v4707
        %v4709 = vpop.f32.mrb[0].mxu0
        %v4710 = vpop.f32.mrb[0].mxu0
        %v4711 = vadd.f32 %v4327, %v4710
        %v4712 = vpop.f32.mrb[0].mxu0
        %4713 = vmatprep.mubr.bf16.mxu0 %v3654
        %4714 = vmatmul.mubr.bf16.gmra.mrb[0].mxu0 %v3395
        %v4715 = vpop.f32.mrb[0].mxu0
        %v4716 = vadd.f32 %v4327, %v4715
        %v4717 = vpop.f32.mrb[0].mxu0
        %v4718 = vpop.f32.mrb[0].mxu0
        %v4719 = vadd.f32 %v4327, %v4718
        %v4720 = vpop.f32.mrb[0].mxu0
        %4721 = vmatprep.mubr.bf16.mxu0 %v3662
        %4722 = vmatmul.mubr.bf16.gmra.mrb[0].mxu0 %v3396
        %v4723 = vpop.f32.mrb[0].mxu0
        %v4724 = vadd.f32 %v4327, %v4723
        %v4725 = vpop.f32.mrb[0].mxu0
        %v4726 = vpop.f32.mrb[0].mxu0
        %v4727 = vadd.f32 %v4327, %v4726
        %v4728 = vpop.f32.mrb[0].mxu0
        %4729 = vmatprep.mubr.bf16.mxu0 %v3670
        %4730 = vmatmul.mubr.bf16.gmra.mrb[0].mxu0 %v3397
        %v4731 = vpop.f32.mrb[0].mxu0
        %v4732 = vadd.f32 %v4327, %v4731
        %v4733 = vpop.f32.mrb[0].mxu0
        %v4734 = vpop.f32.mrb[0].mxu0
        %v4735 = vadd.f32 %v4327, %v4734
        %v4736 = vpop.f32.mrb[0].mxu0
        %4737 = vmatprep.mubr.bf16.mxu0 %v3678
        %4738 = vmatmul.mubr.bf16.gmra.mrb[0].mxu0 %v3398
        %v4739 = vpop.f32.mrb[0].mxu0
        %v4740 = vadd.f32 %v4327, %v4739
        %v4741 = vpop.f32.mrb[0].mxu0
        %v4742 = vpop.f32.mrb[0].mxu0
        %v4743 = vadd.f32 %v4327, %v4742
        %v4744 = vpop.f32.mrb[0].mxu0
        %4745 = vmatprep.mubr.bf16.mxu0 %v3686
        %4746 = vmatmul.mubr.bf16.gmra.mrb[0].mxu0 %v3399
        %v4747 = vpop.f32.mrb[0].mxu0
        %v4748 = vadd.f32 %v4327, %v4747
        %v4749 = vpop.f32.mrb[0].mxu0
        %v4750 = vpop.f32.mrb[0].mxu0
        %v4751 = vadd.f32 %v4327, %v4750
        %v4752 = vpop.f32.mrb[0].mxu0
        %4753 = vmatprep.mubr.bf16.mxu0 %v3694
        %4754 = vmatmul.mubr.bf16.gmra.mrb[0].mxu0 %v3400
        %v4755 = vpop.f32.mrb[0].mxu0
        %v4756 = vadd.f32 %v4327, %v4755
        %v4757 = vpop.f32.mrb[0].mxu0
        %v4758 = vpop.f32.mrb[0].mxu0
        %v4759 = vadd.f32 %v4327, %v4758
        %v4760 = vpop.f32.mrb[0].mxu0
        %4761 = vmatprep.mubr.bf16.mxu0 %v3702
        %4762 = vmatmul.mubr.bf16.gmra.mrb[0].mxu0 %v3401
        %v4763 = vpop.f32.mrb[0].mxu0
        %v4764 = vadd.f32 %v4327, %v4763
        %v4765 = vpop.f32.mrb[0].mxu0
        %v4766 = vpop.f32.mrb[0].mxu0
        %v4767 = vadd.f32 %v4327, %v4766
        %v4768 = vpop.f32.mrb[0].mxu0
        %4769 = vmatprep.mubr.bf16.mxu0 %v3710
        %4770 = vmatmul.mubr.bf16.gmra.mrb[0].mxu0 %v3402
        %v4771 = vpop.f32.mrb[0].mxu0
        %v4772 = vadd.f32 %v4327, %v4771
        %v4773 = vpop.f32.mrb[0].mxu0
        %v4774 = vpop.f32.mrb[0].mxu0
        %v4775 = vadd.f32 %v4327, %v4774
        %v4776 = vpop.f32.mrb[0].mxu0
        %4777 = vmatprep.mubr.bf16.mxu0 %v3718
        %4778 = vmatmul.mubr.bf16.gmra.mrb[0].mxu0 %v3403
        %v4779 = vpop.f32.mrb[0].mxu0
        %v4780 = vadd.f32 %v4327, %v4779
        %v4781 = vpop.f32.mrb[0].mxu0
        %v4782 = vpop.f32.mrb[0].mxu0
        %v4783 = vadd.f32 %v4327, %v4782
        %v4784 = vpop.f32.mrb[0].mxu0
        %4785 = vmatprep.mubr.bf16.mxu0 %v3726
        %4786 = vmatmul.mubr.bf16.gmra.mrb[0].mxu0 %v3404
        %v4787 = vpop.f32.mrb[0].mxu0
        %v4788 = vadd.f32 %v4327, %v4787
        %v4789 = vpop.f32.mrb[0].mxu0
        %v4790 = vpop.f32.mrb[0].mxu0
        %v4791 = vadd.f32 %v4327, %v4790
        %v4792 = vpop.f32.mrb[0].mxu0
        %4793 = vmatprep.mubr.bf16.mxu0 %v3734
        %4794 = vmatmul.mubr.bf16.gmra.mrb[0].mxu0 %v3405
        %v4795 = vpop.f32.mrb[0].mxu0
        %v4796 = vadd.f32 %v4327, %v4795
        %v4797 = vpop.f32.mrb[0].mxu0
        %v4798 = vpop.f32.mrb[0].mxu0
        %v4799 = vadd.f32 %v4327, %v4798
        %v4800 = vpop.f32.mrb[0].mxu0
        %4801 = vmatprep.mubr.bf16.mxu0 %v3742
        %4802 = vmatmul.mubr.bf16.gmra.mrb[0].mxu0 %v3406
        %v4803 = vpop.f32.mrb[0].mxu0
        %v4804 = vadd.f32 %v4327, %v4803
        %v4805 = vpop.f32.mrb[0].mxu0
        %v4806 = vpop.f32.mrb[0].mxu0
        %v4807 = vadd.f32 %v4327, %v4806
        %v4808 = vpop.f32.mrb[0].mxu0
        %4809 = vmatprep.mubr.bf16.mxu0 %v3750
        %4810 = vmatmul.mubr.bf16.gmra.mrb[0].mxu0 %v3407
        %v4811 = vpop.f32.mrb[0].mxu0
        %v4812 = vadd.f32 %v4327, %v4811
        %v4813 = vpop.f32.mrb[0].mxu0
        %v4814 = vpop.f32.mrb[0].mxu0
        %v4815 = vadd.f32 %v4327, %v4814
        %v4816 = vpop.f32.mrb[0].mxu0
        %4817 = vmatprep.mubr.bf16.mxu0 %v3758
        %4818 = vmatmul.mubr.bf16.gmra.mrb[0].mxu0 %v3408
        %v4819 = vpop.f32.mrb[0].mxu0
        %v4820 = vadd.f32 %v4327, %v4819
        %v4821 = vpop.f32.mrb[0].mxu0
        %v4822 = vpop.f32.mrb[0].mxu0
        %v4823 = vadd.f32 %v4327, %v4822
        %v4824 = vpop.f32.mrb[0].mxu0
        %4825 = vmatprep.mubr.bf16.mxu0 %v3766
        %4826 = vmatmul.mubr.bf16.gmra.mrb[0].mxu0 %v3409
        %v4827 = vpop.f32.mrb[0].mxu0
        %v4828 = vadd.f32 %v4327, %v4827
        %v4829 = vpop.f32.mrb[0].mxu0
        %v4830 = vpop.f32.mrb[0].mxu0
        %v4831 = vadd.f32 %v4327, %v4830
        %v4832 = vpop.f32.mrb[0].mxu0
        %4833 = vmatprep.mubr.bf16.mxu0 %v3774
        %4834 = vmatmul.mubr.bf16.gmra.mrb[0].mxu0 %v3410
        %v4835 = vpop.f32.mrb[0].mxu0
        %v4836 = vadd.f32 %v4327, %v4835
        %v4837 = vpop.f32.mrb[0].mxu0
        %v4838 = vpop.f32.mrb[0].mxu0
        %v4839 = vadd.f32 %v4327, %v4838
        %v4840 = vpop.f32.mrb[0].mxu0
        %4841 = vmatprep.mubr.bf16.mxu0 %v3782
        %4842 = vmatmul.mubr.bf16.gmra.mrb[0].mxu0 %v3411
        %v4843 = vpop.f32.mrb[0].mxu0
        %v4844 = vadd.f32 %v4327, %v4843
        %v4845 = vpop.f32.mrb[0].mxu0
        %v4846 = vpop.f32.mrb[0].mxu0
        %v4847 = vadd.f32 %v4327, %v4846
        %v4848 = vpop.f32.mrb[0].mxu0
        %4849 = vmatprep.mubr.bf16.mxu0 %v3790
        %4850 = vmatmul.mubr.bf16.gmra.mrb[0].mxu0 %v3412
        %v4851 = vpop.f32.mrb[0].mxu0
        %v4852 = vadd.f32 %v4327, %v4851
        %v4853 = vpop.f32.mrb[0].mxu0
        %v4854 = vpop.f32.mrb[0].mxu0
        %v4855 = vadd.f32 %v4327, %v4854
        %v4856 = vpop.f32.mrb[0].mxu0
        %4857 = vmatprep.mubr.bf16.mxu0 %v3798
        %4858 = vmatmul.mubr.bf16.gmra.mrb[0].mxu0 %v3413
        %v4859 = vpop.f32.mrb[0].mxu0
        %v4860 = vadd.f32 %v4327, %v4859
        %v4861 = vpop.f32.mrb[0].mxu0
        %v4862 = vpop.f32.mrb[0].mxu0
        %v4863 = vadd.f32 %v4327, %v4862
        %v4864 = vpop.f32.mrb[0].mxu0
        %4865 = vmatprep.mubr.bf16.mxu0 %v3806
        %4866 = vmatmul.mubr.bf16.gmra.mrb[0].mxu0 %v3414
        %v4867 = vpop.f32.mrb[0].mxu0
        %v4868 = vadd.f32 %v4327, %v4867
        %v4869 = vpop.f32.mrb[0].mxu0
        %v4870 = vpop.f32.mrb[0].mxu0
        %v4871 = vadd.f32 %v4327, %v4870
        %v4872 = vpop.f32.mrb[0].mxu0
        %4873 = vmatprep.mubr.bf16.mxu0 %v3814
        %4874 = vmatmul.mubr.bf16.gmra.mrb[0].mxu0 %v3415
        %v4875 = vpop.f32.mrb[0].mxu0
        %v4876 = vadd.f32 %v4327, %v4875
        %v4877 = vpop.f32.mrb[0].mxu0
        %v4878 = vpop.f32.mrb[0].mxu0
        %v4879 = vadd.f32 %v4327, %v4878
        %v4880 = vpop.f32.mrb[0].mxu0
        %4881 = vmatprep.mubr.bf16.mxu0 %v3822
        %4882 = vmatmul.mubr.bf16.gmra.mrb[0].mxu0 %v3416
        %v4883 = vpop.f32.mrb[0].mxu0
        %v4884 = vadd.f32 %v4327, %v4883
        %v4885 = vpop.f32.mrb[0].mxu0
        %v4886 = vpop.f32.mrb[0].mxu0
        %v4887 = vadd.f32 %v4327, %v4886
        %v4888 = vpop.f32.mrb[0].mxu0
        %4889 = vmatprep.mubr.bf16.mxu0 %v3830
        %4890 = vmatmul.mubr.bf16.gmra.mrb[0].mxu0 %v3417
        %v4891 = vpop.f32.mrb[0].mxu0
        %v4892 = vadd.f32 %v4327, %v4891
        %v4893 = vpop.f32.mrb[0].mxu0
        %v4894 = vpop.f32.mrb[0].mxu0
        %v4895 = vadd.f32 %v4327, %v4894
        %v4896 = vpop.f32.mrb[0].mxu0
        %4897 = vmatprep.mubr.bf16.mxu0 %v3838
        %4898 = vmatmul.mubr.bf16.gmra.mrb[0].mxu0 %v3418
        %v4899 = vpop.f32.mrb[0].mxu0
        %v4900 = vadd.f32 %v4327, %v4899
        %v4901 = vpop.f32.mrb[0].mxu0
        %v4902 = vpop.f32.mrb[0].mxu0
        %v4903 = vadd.f32 %v4327, %v4902
        %v4904 = vpop.f32.mrb[0].mxu0
        %4905 = vmatprep.mubr.bf16.mxu0 %v3846
        %4906 = vmatmul.mubr.bf16.gmra.mrb[0].mxu0 %v3419
        %v4907 = vpop.f32.mrb[0].mxu0
        %v4908 = vadd.f32 %v4327, %v4907
        %v4909 = vpop.f32.mrb[0].mxu0
        %v4910 = vpop.f32.mrb[0].mxu0
        %v4911 = vadd.f32 %v4327, %v4910
        %v4912 = vpop.f32.mrb[0].mxu0
        %4913 = vmatprep.mubr.bf16.mxu0 %v3854
        %4914 = vmatmul.mubr.bf16.gmra.mrb[0].mxu0 %v3420
        %v4915 = vpop.f32.mrb[0].mxu0
        %v4916 = vadd.f32 %v4327, %v4915
        %v4917 = vpop.f32.mrb[0].mxu0
        %v4918 = vpop.f32.mrb[0].mxu0
        %v4919 = vadd.f32 %v4327, %v4918
        %v4920 = vpop.f32.mrb[0].mxu0
        %4921 = vmatprep.mubr.bf16.mxu0 %v3862
        %4922 = vmatmul.mubr.bf16.gmra.mrb[0].mxu0 %v3421
        %v4923 = vpop.f32.mrb[0].mxu0
        %v4924 = vadd.f32 %v4327, %v4923
        %v4925 = vpop.f32.mrb[0].mxu0
        %v4926 = vpop.f32.mrb[0].mxu0
        %v4927 = vadd.f32 %v4327, %v4926
        %v4928 = vpop.f32.mrb[0].mxu0
        %4929 = vmatprep.mubr.bf16.mxu0 %v3870
        %4930 = vmatmul.mubr.bf16.gmra.mrb[0].mxu0 %v3422
        %v4931 = vpop.f32.mrb[0].mxu0
        %v4932 = vadd.f32 %v4327, %v4931
        %v4933 = vpop.f32.mrb[0].mxu0
        %v4934 = vpop.f32.mrb[0].mxu0
        %v4935 = vadd.f32 %v4327, %v4934
        %v4936 = vpop.f32.mrb[0].mxu0
        %4937 = vmatprep.mubr.bf16.mxu0 %v3878
        %4938 = vmatmul.mubr.bf16.gmra.mrb[0].mxu0 %v3423
        %v4939 = vpop.f32.mrb[0].mxu0
        %v4940 = vadd.f32 %v4327, %v4939
        %v4941 = vpop.f32.mrb[0].mxu0
        %v4942 = vpop.f32.mrb[0].mxu0
        %v4943 = vadd.f32 %v4327, %v4942
        %v4944 = vpop.f32.mrb[0].mxu0
        %4945 = vmatprep.mubr.bf16.mxu0 %v3886
        %4946 = vmatmul.mubr.bf16.gmra.mrb[0].mxu0 %v3424
        %v4947 = vpop.f32.mrb[0].mxu0
        %v4948 = vadd.f32 %v4327, %v4947
        %v4949 = vpop.f32.mrb[0].mxu0
        %v4950 = vpop.f32.mrb[0].mxu0
        %v4951 = vadd.f32 %v4327, %v4950
        %v4952 = vpop.f32.mrb[0].mxu0
        %4953 = vmatprep.mubr.bf16.mxu0 %v3894
        %4954 = vmatmul.mubr.bf16.gmra.mrb[0].mxu0 %v3425
        %v4955 = vpop.f32.mrb[0].mxu0
        %v4956 = vadd.f32 %v4327, %v4955
        %v4957 = vpop.f32.mrb[0].mxu0
        %v4958 = vpop.f32.mrb[0].mxu0
        %v4959 = vadd.f32 %v4327, %v4958
        %v4960 = vpop.f32.mrb[0].mxu0
        %4961 = vmatprep.mubr.bf16.mxu0 %v3902
        %4962 = vmatmul.mubr.bf16.gmra.mrb[0].mxu0 %v3426
        %v4963 = vpop.f32.mrb[0].mxu0
        %v4964 = vadd.f32 %v4327, %v4963
        %v4965 = vpop.f32.mrb[0].mxu0
        %v4966 = vpop.f32.mrb[0].mxu0
        %v4967 = vadd.f32 %v4327, %v4966
        %v4968 = vpop.f32.mrb[0].mxu0
        %4969 = vmatprep.mubr.bf16.mxu0 %v3910
        %4970 = vmatmul.mubr.bf16.gmra.mrb[0].mxu0 %v3427
        %v4971 = vpop.f32.mrb[0].mxu0
        %v4972 = vadd.f32 %v4327, %v4971
        %v4973 = vpop.f32.mrb[0].mxu0
        %v4974 = vpop.f32.mrb[0].mxu0
        %v4975 = vadd.f32 %v4327, %v4974
        %v4976 = vpop.f32.mrb[0].mxu0
        %4977 = vmatprep.mubr.bf16.mxu0 %v3918
        %4978 = vmatmul.mubr.bf16.gmra.mrb[0].mxu0 %v3428
        %v4979 = vpop.f32.mrb[0].mxu0
        %v4980 = vadd.f32 %v4327, %v4979
        %v4981 = vpop.f32.mrb[0].mxu0
        %v4982 = vpop.f32.mrb[0].mxu0
        %v4983 = vadd.f32 %v4327, %v4982
        %v4984 = vpop.f32.mrb[0].mxu0
        %4985 = vmatprep.mubr.bf16.mxu0 %v3926
        %4986 = vmatmul.mubr.bf16.gmra.mrb[0].mxu0 %v3429
        %v4987 = vpop.f32.mrb[0].mxu0
        %v4988 = vadd.f32 %v4327, %v4987
        %v4989 = vpop.f32.mrb[0].mxu0
        %v4990 = vpop.f32.mrb[0].mxu0
        %v4991 = vadd.f32 %v4327, %v4990
        %v4992 = vpop.f32.mrb[0].mxu0
        %4993 = vmatprep.mubr.bf16.mxu0 %v3934
        %4994 = vmatmul.mubr.bf16.gmra.mrb[0].mxu0 %v3430
        %v4995 = vpop.f32.mrb[0].mxu0
        %v4996 = vadd.f32 %v4327, %v4995
        %v4997 = vpop.f32.mrb[0].mxu0
        %v4998 = vpop.f32.mrb[0].mxu0
        %v4999 = vadd.f32 %v4327, %v4998
        %v5000 = vpop.f32.mrb[0].mxu0
        %5001 = vmatprep.mubr.bf16.mxu0 %v3942
        %5002 = vmatmul.mubr.bf16.gmra.mrb[0].mxu0 %v3431
        %v5003 = vpop.f32.mrb[0].mxu0
        %v5004 = vadd.f32 %v4327, %v5003
        %v5005 = vpop.f32.mrb[0].mxu0
        %v5006 = vpop.f32.mrb[0].mxu0
        %v5007 = vadd.f32 %v4327, %v5006
        %v5008 = vpop.f32.mrb[0].mxu0
        %5009 = vmatprep.mubr.bf16.mxu0 %v3950
        %5010 = vmatmul.mubr.bf16.gmra.mrb[0].mxu0 %v3432
        %v5011 = vpop.f32.mrb[0].mxu0
        %v5012 = vadd.f32 %v4327, %v5011
        %v5013 = vpop.f32.mrb[0].mxu0
        %v5014 = vpop.f32.mrb[0].mxu0
        %v5015 = vadd.f32 %v4327, %v5014
        %v5016 = vpop.f32.mrb[0].mxu0
        %5017 = vdwg.mxu0
        %5018 = vmatprep.subr.bf16.mxu0 0
        %5019 = vmatpush1.bf16.msra.mxu0 %v4441
        %5020 = vmatprep.subr.bf16.mxu0 0
        %5021 = vmatpush1.bf16.msra.mxu0 %v4442
        %5022 = vmatprep.subr.bf16.mxu0 0
        %5023 = vmatpush1.bf16.msra.mxu0 %v4443
        %5024 = vmatprep.subr.bf16.mxu0 0
        %5025 = vmatpush1.bf16.msra.mxu0 %v4444
        %5026 = vmatprep.subr.bf16.mxu0 0
        %5027 = vmatpush1.bf16.msra.mxu0 %v4445
        %5028 = vmatprep.subr.bf16.mxu0 0
        %5029 = vmatpush1.bf16.msra.mxu0 %v4446
        %5030 = vmatprep.subr.bf16.mxu0 0
        %5031 = vmatpush1.bf16.msra.mxu0 %v4447
        %5032 = vmatprep.subr.bf16.mxu0 0
        %5033 = vmatpush1.bf16.msra.mxu0 %v4448
        %5034 = vmatprep.subr.bf16.mxu0 0
        %5035 = vmatpush1.bf16.msra.mxu0 0
        %5036 = vmatprep.subr.bf16.mxu0 0
        %5037 = vmatpush1.bf16.msra.mxu0 0
        %5038 = vmatprep.subr.bf16.mxu0 0
        %5039 = vmatpush1.bf16.msra.mxu0 0
        %5040 = vmatprep.subr.bf16.mxu0 0
        %5041 = vmatpush1.bf16.msra.mxu0 0
        %5042 = vmatprep.subr.bf16.mxu0 0
        %5043 = vmatpush1.bf16.msra.mxu0 0
        %5044 = vmatprep.subr.bf16.mxu0 0
        %5045 = vmatpush1.bf16.msra.mxu0 0
        %5046 = vmatprep.subr.bf16.mxu0 0
        %5047 = vmatpush1.bf16.msra.mxu0 0
        %5048 = vmatprep.subr.bf16.mxu0 0
        %5049 = vmatpush1.bf16.msra.mxu0 0
        %5050 = vmatprep.mubr.bf16.mxu0 0
        %5051 = vmatmul.mubr.bf16.gmra.mrb[0].mxu0 %v4083
        %v5052 = vpop.f32.mrb[0].mxu0
        %v5053 = vadd.f32 %v4508, %v5052
        %v5054 = vpop.f32.mrb[0].mxu0
        %v5055 = vpop.f32.mrb[0].mxu0
        %v5056 = vadd.f32 %v4511, %v5055
        %v5057 = vpop.f32.mrb[0].mxu0
        %5058 = vmatprep.mubr.bf16.mxu0 0
        %5059 = vmatmul.mubr.bf16.gmra.mrb[0].mxu0 %v4085
        %v5060 = vpop.f32.mrb[0].mxu0
        %v5061 = vadd.f32 %v4516, %v5060
        %v5062 = vpop.f32.mrb[0].mxu0
        %v5063 = vpop.f32.mrb[0].mxu0
        %v5064 = vadd.f32 %v4519, %v5063
        %v5065 = vpop.f32.mrb[0].mxu0
        %5066 = vmatprep.mubr.bf16.mxu0 0
        %5067 = vmatmul.mubr.bf16.gmra.mrb[0].mxu0 %v4087
        %v5068 = vpop.f32.mrb[0].mxu0
        %v5069 = vadd.f32 %v4524, %v5068
        %v5070 = vpop.f32.mrb[0].mxu0
        %v5071 = vpop.f32.mrb[0].mxu0
        %v5072 = vadd.f32 %v4527, %v5071
        %v5073 = vpop.f32.mrb[0].mxu0
        %5074 = vmatprep.mubr.bf16.mxu0 0
        %5075 = vmatmul.mubr.bf16.gmra.mrb[0].mxu0 %v4089
        %v5076 = vpop.f32.mrb[0].mxu0
        %v5077 = vadd.f32 %v4532, %v5076
        %v5078 = vpop.f32.mrb[0].mxu0
        %v5079 = vpop.f32.mrb[0].mxu0
        %v5080 = vadd.f32 %v4535, %v5079
        %v5081 = vpop.f32.mrb[0].mxu0
        %5082 = vmatprep.mubr.bf16.mxu0 0
        %5083 = vmatmul.mubr.bf16.gmra.mrb[0].mxu0 %v4091
        %v5084 = vpop.f32.mrb[0].mxu0
        %v5085 = vadd.f32 %v4540, %v5084
        %v5086 = vpop.f32.mrb[0].mxu0
        %v5087 = vpop.f32.mrb[0].mxu0
        %v5088 = vadd.f32 %v4543, %v5087
        %v5089 = vpop.f32.mrb[0].mxu0
        %5090 = vmatprep.mubr.bf16.mxu0 0
        %5091 = vmatmul.mubr.bf16.gmra.mrb[0].mxu0 %v4093
        %v5092 = vpop.f32.mrb[0].mxu0
        %v5093 = vadd.f32 %v4548, %v5092
        %v5094 = vpop.f32.mrb[0].mxu0
        %v5095 = vpop.f32.mrb[0].mxu0
        %v5096 = vadd.f32 %v4551, %v5095
        %v5097 = vpop.f32.mrb[0].mxu0
        %5098 = vmatprep.mubr.bf16.mxu0 0
        %5099 = vmatmul.mubr.bf16.gmra.mrb[0].mxu0 %v4095
        %v5100 = vpop.f32.mrb[0].mxu0
        %v5101 = vadd.f32 %v4556, %v5100
        %v5102 = vpop.f32.mrb[0].mxu0
        %v5103 = vpop.f32.mrb[0].mxu0
        %v5104 = vadd.f32 %v4559, %v5103
        %v5105 = vpop.f32.mrb[0].mxu0
        %5106 = vmatprep.mubr.bf16.mxu0 0
        %5107 = vmatmul.mubr.bf16.gmra.mrb[0].mxu0 %v4097
        %v5108 = vpop.f32.mrb[0].mxu0
        %v5109 = vadd.f32 %v4564, %v5108
        %v5110 = vpop.f32.mrb[0].mxu0
        %v5111 = vpop.f32.mrb[0].mxu0
        %v5112 = vadd.f32 %v4567, %v5111
        %v5113 = vpop.f32.mrb[0].mxu0
        %5114 = vmatprep.mubr.bf16.mxu0 0
        %5115 = vmatmul.mubr.bf16.gmra.mrb[0].mxu0 %v4099
        %v5116 = vpop.f32.mrb[0].mxu0
        %v5117 = vadd.f32 %v4572, %v5116
        %v5118 = vpop.f32.mrb[0].mxu0
        %v5119 = vpop.f32.mrb[0].mxu0
        %v5120 = vadd.f32 %v4575, %v5119
        %v5121 = vpop.f32.mrb[0].mxu0
        %5122 = vmatprep.mubr.bf16.mxu0 0
        %5123 = vmatmul.mubr.bf16.gmra.mrb[0].mxu0 %v4101
        %v5124 = vpop.f32.mrb[0].mxu0
        %v5125 = vadd.f32 %v4580, %v5124
        %v5126 = vpop.f32.mrb[0].mxu0
        %v5127 = vpop.f32.mrb[0].mxu0
        %v5128 = vadd.f32 %v4583, %v5127
        %v5129 = vpop.f32.mrb[0].mxu0
        %5130 = vmatprep.mubr.bf16.mxu0 0
        %5131 = vmatmul.mubr.bf16.gmra.mrb[0].mxu0 %v4103
        %v5132 = vpop.f32.mrb[0].mxu0
        %v5133 = vadd.f32 %v4588, %v5132
        %v5134 = vpop.f32.mrb[0].mxu0
        %v5135 = vpop.f32.mrb[0].mxu0
        %v5136 = vadd.f32 %v4591, %v5135
        %v5137 = vpop.f32.mrb[0].mxu0
        %5138 = vmatprep.mubr.bf16.mxu0 0
        %5139 = vmatmul.mubr.bf16.gmra.mrb[0].mxu0 %v4105
        %v5140 = vpop.f32.mrb[0].mxu0
        %v5141 = vadd.f32 %v4596, %v5140
        %v5142 = vpop.f32.mrb[0].mxu0
        %v5143 = vpop.f32.mrb[0].mxu0
        %v5144 = vadd.f32 %v4599, %v5143
        %v5145 = vpop.f32.mrb[0].mxu0
        %5146 = vmatprep.mubr.bf16.mxu0 0
        %5147 = vmatmul.mubr.bf16.gmra.mrb[0].mxu0 %v4107
        %v5148 = vpop.f32.mrb[0].mxu0
        %v5149 = vadd.f32 %v4604, %v5148
        %v5150 = vpop.f32.mrb[0].mxu0
        %v5151 = vpop.f32.mrb[0].mxu0
        %v5152 = vadd.f32 %v4607, %v5151
        %v5153 = vpop.f32.mrb[0].mxu0
        %5154 = vmatprep.mubr.bf16.mxu0 0
        %5155 = vmatmul.mubr.bf16.gmra.mrb[0].mxu0 %v4109
        %v5156 = vpop.f32.mrb[0].mxu0
        %v5157 = vadd.f32 %v4612, %v5156
        %v5158 = vpop.f32.mrb[0].mxu0
        %v5159 = vpop.f32.mrb[0].mxu0
        %v5160 = vadd.f32 %v4615, %v5159
        %v5161 = vpop.f32.mrb[0].mxu0
        %5162 = vmatprep.mubr.bf16.mxu0 0
        %5163 = vmatmul.mubr.bf16.gmra.mrb[0].mxu0 %v4111
        %v5164 = vpop.f32.mrb[0].mxu0
        %v5165 = vadd.f32 %v4620, %v5164
        %v5166 = vpop.f32.mrb[0].mxu0
        %v5167 = vpop.f32.mrb[0].mxu0
        %v5168 = vadd.f32 %v4623, %v5167
        %v5169 = vpop.f32.mrb[0].mxu0
        %5170 = vmatprep.mubr.bf16.mxu0 0
        %5171 = vmatmul.mubr.bf16.gmra.mrb[0].mxu0 %v4113
        %v5172 = vpop.f32.mrb[0].mxu0
        %v5173 = vadd.f32 %v4628, %v5172
        %v5174 = vpop.f32.mrb[0].mxu0
        %v5175 = vpop.f32.mrb[0].mxu0
        %v5176 = vadd.f32 %v4631, %v5175
        %v5177 = vpop.f32.mrb[0].mxu0
        %5178 = vmatprep.mubr.bf16.mxu0 0
        %5179 = vmatmul.mubr.bf16.gmra.mrb[0].mxu0 %v4115
        %v5180 = vpop.f32.mrb[0].mxu0
        %v5181 = vadd.f32 %v4636, %v5180
        %v5182 = vpop.f32.mrb[0].mxu0
        %v5183 = vpop.f32.mrb[0].mxu0
        %v5184 = vadd.f32 %v4639, %v5183
        %v5185 = vpop.f32.mrb[0].mxu0
        %5186 = vmatprep.mubr.bf16.mxu0 0
        %5187 = vmatmul.mubr.bf16.gmra.mrb[0].mxu0 %v4117
        %v5188 = vpop.f32.mrb[0].mxu0
        %v5189 = vadd.f32 %v4644, %v5188
        %v5190 = vpop.f32.mrb[0].mxu0
        %v5191 = vpop.f32.mrb[0].mxu0
        %v5192 = vadd.f32 %v4647, %v5191
        %v5193 = vpop.f32.mrb[0].mxu0
        %5194 = vmatprep.mubr.bf16.mxu0 0
        %5195 = vmatmul.mubr.bf16.gmra.mrb[0].mxu0 %v4119
        %v5196 = vpop.f32.mrb[0].mxu0
        %v5197 = vadd.f32 %v4652, %v5196
        %v5198 = vpop.f32.mrb[0].mxu0
        %v5199 = vpop.f32.mrb[0].mxu0
        %v5200 = vadd.f32 %v4655, %v5199
        %v5201 = vpop.f32.mrb[0].mxu0
        %5202 = vmatprep.mubr.bf16.mxu0 0
        %5203 = vmatmul.mubr.bf16.gmra.mrb[0].mxu0 %v4121
        %v5204 = vpop.f32.mrb[0].mxu0
        %v5205 = vadd.f32 %v4660, %v5204
        %v5206 = vpop.f32.mrb[0].mxu0
        %v5207 = vpop.f32.mrb[0].mxu0
        %v5208 = vadd.f32 %v4663, %v5207
        %v5209 = vpop.f32.mrb[0].mxu0
        %5210 = vmatprep.mubr.bf16.mxu0 0
        %5211 = vmatmul.mubr.bf16.gmra.mrb[0].mxu0 %v4123
        %v5212 = vpop.f32.mrb[0].mxu0
        %v5213 = vadd.f32 %v4668, %v5212
        %v5214 = vpop.f32.mrb[0].mxu0
        %v5215 = vpop.f32.mrb[0].mxu0
        %v5216 = vadd.f32 %v4671, %v5215
        %v5217 = vpop.f32.mrb[0].mxu0
        %5218 = vmatprep.mubr.bf16.mxu0 0
        %5219 = vmatmul.mubr.bf16.gmra.mrb[0].mxu0 %v4125
        %v5220 = vpop.f32.mrb[0].mxu0
        %v5221 = vadd.f32 %v4676, %v5220
        %v5222 = vpop.f32.mrb[0].mxu0
        %v5223 = vpop.f32.mrb[0].mxu0
        %v5224 = vadd.f32 %v4679, %v5223
        %v5225 = vpop.f32.mrb[0].mxu0
        %5226 = vmatprep.mubr.bf16.mxu0 0
        %5227 = vmatmul.mubr.bf16.gmra.mrb[0].mxu0 %v4127
        %v5228 = vpop.f32.mrb[0].mxu0
        %v5229 = vadd.f32 %v4684, %v5228
        %v5230 = vpop.f32.mrb[0].mxu0
        %v5231 = vpop.f32.mrb[0].mxu0
        %v5232 = vadd.f32 %v4687, %v5231
        %v5233 = vpop.f32.mrb[0].mxu0
        %5234 = vmatprep.mubr.bf16.mxu0 0
        %5235 = vmatmul.mubr.bf16.gmra.mrb[0].mxu0 %v4129
        %v5236 = vpop.f32.mrb[0].mxu0
        %v5237 = vadd.f32 %v4692, %v5236
        %v5238 = vpop.f32.mrb[0].mxu0
        %v5239 = vpop.f32.mrb[0].mxu0
        %v5240 = vadd.f32 %v4695, %v5239
        %v5241 = vpop.f32.mrb[0].mxu0
        %5242 = vmatprep.mubr.bf16.mxu0 0
        %5243 = vmatmul.mubr.bf16.gmra.mrb[0].mxu0 %v4131
        %v5244 = vpop.f32.mrb[0].mxu0
        %v5245 = vadd.f32 %v4700, %v5244
        %v5246 = vpop.f32.mrb[0].mxu0
        %v5247 = vpop.f32.mrb[0].mxu0
        %v5248 = vadd.f32 %v4703, %v5247
        %v5249 = vpop.f32.mrb[0].mxu0
        %5250 = vmatprep.mubr.bf16.mxu0 0
        %5251 = vmatmul.mubr.bf16.gmra.mrb[0].mxu0 %v4133
        %v5252 = vpop.f32.mrb[0].mxu0
        %v5253 = vadd.f32 %v4708, %v5252
        %v5254 = vpop.f32.mrb[0].mxu0
        %v5255 = vpop.f32.mrb[0].mxu0
        %v5256 = vadd.f32 %v4711, %v5255
        %v5257 = vpop.f32.mrb[0].mxu0
        %5258 = vmatprep.mubr.bf16.mxu0 0
        %5259 = vmatmul.mubr.bf16.gmra.mrb[0].mxu0 %v4135
        %v5260 = vpop.f32.mrb[0].mxu0
        %v5261 = vadd.f32 %v4716, %v5260
        %v5262 = vpop.f32.mrb[0].mxu0
        %v5263 = vpop.f32.mrb[0].mxu0
        %v5264 = vadd.f32 %v4719, %v5263
        %v5265 = vpop.f32.mrb[0].mxu0
        %5266 = vmatprep.mubr.bf16.mxu0 0
        %5267 = vmatmul.mubr.bf16.gmra.mrb[0].mxu0 %v4137
        %v5268 = vpop.f32.mrb[0].mxu0
        %v5269 = vadd.f32 %v4724, %v5268
        %v5270 = vpop.f32.mrb[0].mxu0
        %v5271 = vpop.f32.mrb[0].mxu0
        %v5272 = vadd.f32 %v4727, %v5271
        %v5273 = vpop.f32.mrb[0].mxu0
        %5274 = vmatprep.mubr.bf16.mxu0 0
        %5275 = vmatmul.mubr.bf16.gmra.mrb[0].mxu0 %v4139
        %v5276 = vpop.f32.mrb[0].mxu0
        %v5277 = vadd.f32 %v4732, %v5276
        %v5278 = vpop.f32.mrb[0].mxu0
        %v5279 = vpop.f32.mrb[0].mxu0
        %v5280 = vadd.f32 %v4735, %v5279
        %v5281 = vpop.f32.mrb[0].mxu0
        %5282 = vmatprep.mubr.bf16.mxu0 0
        %5283 = vmatmul.mubr.bf16.gmra.mrb[0].mxu0 %v4141
        %v5284 = vpop.f32.mrb[0].mxu0
        %v5285 = vadd.f32 %v4740, %v5284
        %v5286 = vpop.f32.mrb[0].mxu0
        %v5287 = vpop.f32.mrb[0].mxu0
        %v5288 = vadd.f32 %v4743, %v5287
        %v5289 = vpop.f32.mrb[0].mxu0
        %5290 = vmatprep.mubr.bf16.mxu0 0
        %5291 = vmatmul.mubr.bf16.gmra.mrb[0].mxu0 %v4143
        %v5292 = vpop.f32.mrb[0].mxu0
        %v5293 = vadd.f32 %v4748, %v5292
        %v5294 = vpop.f32.mrb[0].mxu0
        %v5295 = vpop.f32.mrb[0].mxu0
        %v5296 = vadd.f32 %v4751, %v5295
        %v5297 = vpop.f32.mrb[0].mxu0
        %5298 = vmatprep.mubr.bf16.mxu0 0
        %5299 = vmatmul.mubr.bf16.gmra.mrb[0].mxu0 %v4145
        %v5300 = vpop.f32.mrb[0].mxu0
        %v5301 = vadd.f32 %v4756, %v5300
        %v5302 = vpop.f32.mrb[0].mxu0
        %v5303 = vpop.f32.mrb[0].mxu0
        %v5304 = vadd.f32 %v4759, %v5303
        %v5305 = vpop.f32.mrb[0].mxu0
        %5306 = vmatprep.mubr.bf16.mxu0 0
        %5307 = vmatmul.mubr.bf16.gmra.mrb[0].mxu0 %v4147
        %v5308 = vpop.f32.mrb[0].mxu0
        %v5309 = vadd.f32 %v4764, %v5308
        %v5310 = vpop.f32.mrb[0].mxu0
        %v5311 = vpop.f32.mrb[0].mxu0
        %v5312 = vadd.f32 %v4767, %v5311
        %v5313 = vpop.f32.mrb[0].mxu0
        %5314 = vmatprep.mubr.bf16.mxu0 0
        %5315 = vmatmul.mubr.bf16.gmra.mrb[0].mxu0 %v4149
        %v5316 = vpop.f32.mrb[0].mxu0
        %v5317 = vadd.f32 %v4772, %v5316
        %v5318 = vpop.f32.mrb[0].mxu0
        %v5319 = vpop.f32.mrb[0].mxu0
        %v5320 = vadd.f32 %v4775, %v5319
        %v5321 = vpop.f32.mrb[0].mxu0
        %5322 = vmatprep.mubr.bf16.mxu0 0
        %5323 = vmatmul.mubr.bf16.gmra.mrb[0].mxu0 %v4151
        %v5324 = vpop.f32.mrb[0].mxu0
        %v5325 = vadd.f32 %v4780, %v5324
        %v5326 = vpop.f32.mrb[0].mxu0
        %v5327 = vpop.f32.mrb[0].mxu0
        %v5328 = vadd.f32 %v4783, %v5327
        %v5329 = vpop.f32.mrb[0].mxu0
        %5330 = vmatprep.mubr.bf16.mxu0 0
        %5331 = vmatmul.mubr.bf16.gmra.mrb[0].mxu0 %v4153
        %v5332 = vpop.f32.mrb[0].mxu0
        %v5333 = vadd.f32 %v4788, %v5332
        %v5334 = vpop.f32.mrb[0].mxu0
        %v5335 = vpop.f32.mrb[0].mxu0
        %v5336 = vadd.f32 %v4791, %v5335
        %v5337 = vpop.f32.mrb[0].mxu0
        %5338 = vmatprep.mubr.bf16.mxu0 0
        %5339 = vmatmul.mubr.bf16.gmra.mrb[0].mxu0 %v4155
        %v5340 = vpop.f32.mrb[0].mxu0
        %v5341 = vadd.f32 %v4796, %v5340
        %v5342 = vpop.f32.mrb[0].mxu0
        %v5343 = vpop.f32.mrb[0].mxu0
        %v5344 = vadd.f32 %v4799, %v5343
        %v5345 = vpop.f32.mrb[0].mxu0
        %5346 = vmatprep.mubr.bf16.mxu0 0
        %5347 = vmatmul.mubr.bf16.gmra.mrb[0].mxu0 %v4157
        %v5348 = vpop.f32.mrb[0].mxu0
        %v5349 = vadd.f32 %v4804, %v5348
        %v5350 = vpop.f32.mrb[0].mxu0
        %v5351 = vpop.f32.mrb[0].mxu0
        %v5352 = vadd.f32 %v4807, %v5351
        %v5353 = vpop.f32.mrb[0].mxu0
        %5354 = vmatprep.mubr.bf16.mxu0 0
        %5355 = vmatmul.mubr.bf16.gmra.mrb[0].mxu0 %v4159
        %v5356 = vpop.f32.mrb[0].mxu0
        %v5357 = vadd.f32 %v4812, %v5356
        %v5358 = vpop.f32.mrb[0].mxu0
        %v5359 = vpop.f32.mrb[0].mxu0
        %v5360 = vadd.f32 %v4815, %v5359
        %v5361 = vpop.f32.mrb[0].mxu0
        %5362 = vmatprep.mubr.bf16.mxu0 0
        %5363 = vmatmul.mubr.bf16.gmra.mrb[0].mxu0 %v4161
        %v5364 = vpop.f32.mrb[0].mxu0
        %v5365 = vadd.f32 %v4820, %v5364
        %v5366 = vpop.f32.mrb[0].mxu0
        %v5367 = vpop.f32.mrb[0].mxu0
        %v5368 = vadd.f32 %v4823, %v5367
        %v5369 = vpop.f32.mrb[0].mxu0
        %5370 = vmatprep.mubr.bf16.mxu0 0
        %5371 = vmatmul.mubr.bf16.gmra.mrb[0].mxu0 %v4163
        %v5372 = vpop.f32.mrb[0].mxu0
        %v5373 = vadd.f32 %v4828, %v5372
        %v5374 = vpop.f32.mrb[0].mxu0
        %v5375 = vpop.f32.mrb[0].mxu0
        %v5376 = vadd.f32 %v4831, %v5375
        %v5377 = vpop.f32.mrb[0].mxu0
        %5378 = vmatprep.mubr.bf16.mxu0 0
        %5379 = vmatmul.mubr.bf16.gmra.mrb[0].mxu0 %v4165
        %v5380 = vpop.f32.mrb[0].mxu0
        %v5381 = vadd.f32 %v4836, %v5380
        %v5382 = vpop.f32.mrb[0].mxu0
        %v5383 = vpop.f32.mrb[0].mxu0
        %v5384 = vadd.f32 %v4839, %v5383
        %v5385 = vpop.f32.mrb[0].mxu0
        %5386 = vmatprep.mubr.bf16.mxu0 0
        %5387 = vmatmul.mubr.bf16.gmra.mrb[0].mxu0 %v4167
        %v5388 = vpop.f32.mrb[0].mxu0
        %v5389 = vadd.f32 %v4844, %v5388
        %v5390 = vpop.f32.mrb[0].mxu0
        %v5391 = vpop.f32.mrb[0].mxu0
        %v5392 = vadd.f32 %v4847, %v5391
        %v5393 = vpop.f32.mrb[0].mxu0
        %5394 = vmatprep.mubr.bf16.mxu0 0
        %5395 = vmatmul.mubr.bf16.gmra.mrb[0].mxu0 %v4169
        %v5396 = vpop.f32.mrb[0].mxu0
        %v5397 = vadd.f32 %v4852, %v5396
        %v5398 = vpop.f32.mrb[0].mxu0
        %v5399 = vpop.f32.mrb[0].mxu0
        %v5400 = vadd.f32 %v4855, %v5399
        %v5401 = vpop.f32.mrb[0].mxu0
        %5402 = vmatprep.mubr.bf16.mxu0 0
        %5403 = vmatmul.mubr.bf16.gmra.mrb[0].mxu0 %v4171
        %v5404 = vpop.f32.mrb[0].mxu0
        %v5405 = vadd.f32 %v4860, %v5404
        %v5406 = vpop.f32.mrb[0].mxu0
        %v5407 = vpop.f32.mrb[0].mxu0
        %v5408 = vadd.f32 %v4863, %v5407
        %v5409 = vpop.f32.mrb[0].mxu0
        %5410 = vmatprep.mubr.bf16.mxu0 0
        %5411 = vmatmul.mubr.bf16.gmra.mrb[0].mxu0 %v4173
        %v5412 = vpop.f32.mrb[0].mxu0
        %v5413 = vadd.f32 %v4868, %v5412
        %v5414 = vpop.f32.mrb[0].mxu0
        %v5415 = vpop.f32.mrb[0].mxu0
        %v5416 = vadd.f32 %v4871, %v5415
        %v5417 = vpop.f32.mrb[0].mxu0
        %5418 = vmatprep.mubr.bf16.mxu0 0
        %5419 = vmatmul.mubr.bf16.gmra.mrb[0].mxu0 %v4175
        %v5420 = vpop.f32.mrb[0].mxu0
        %v5421 = vadd.f32 %v4876, %v5420
        %v5422 = vpop.f32.mrb[0].mxu0
        %v5423 = vpop.f32.mrb[0].mxu0
        %v5424 = vadd.f32 %v4879, %v5423
        %v5425 = vpop.f32.mrb[0].mxu0
        %5426 = vmatprep.mubr.bf16.mxu0 0
        %5427 = vmatmul.mubr.bf16.gmra.mrb[0].mxu0 %v4177
        %v5428 = vpop.f32.mrb[0].mxu0
        %v5429 = vadd.f32 %v4884, %v5428
        %v5430 = vpop.f32.mrb[0].mxu0
        %v5431 = vpop.f32.mrb[0].mxu0
        %v5432 = vadd.f32 %v4887, %v5431
        %v5433 = vpop.f32.mrb[0].mxu0
        %5434 = vmatprep.mubr.bf16.mxu0 0
        %5435 = vmatmul.mubr.bf16.gmra.mrb[0].mxu0 %v4179
        %v5436 = vpop.f32.mrb[0].mxu0
        %v5437 = vadd.f32 %v4892, %v5436
        %v5438 = vpop.f32.mrb[0].mxu0
        %v5439 = vpop.f32.mrb[0].mxu0
        %v5440 = vadd.f32 %v4895, %v5439
        %v5441 = vpop.f32.mrb[0].mxu0
        %5442 = vmatprep.mubr.bf16.mxu0 0
        %5443 = vmatmul.mubr.bf16.gmra.mrb[0].mxu0 %v4181
        %v5444 = vpop.f32.mrb[0].mxu0
        %v5445 = vadd.f32 %v4900, %v5444
        %v5446 = vpop.f32.mrb[0].mxu0
        %v5447 = vpop.f32.mrb[0].mxu0
        %v5448 = vadd.f32 %v4903, %v5447
        %v5449 = vpop.f32.mrb[0].mxu0
        %5450 = vmatprep.mubr.bf16.mxu0 0
        %5451 = vmatmul.mubr.bf16.gmra.mrb[0].mxu0 %v4183
        %v5452 = vpop.f32.mrb[0].mxu0
        %v5453 = vadd.f32 %v4908, %v5452
        %v5454 = vpop.f32.mrb[0].mxu0
        %v5455 = vpop.f32.mrb[0].mxu0
        %v5456 = vadd.f32 %v4911, %v5455
        %v5457 = vpop.f32.mrb[0].mxu0
        %5458 = vmatprep.mubr.bf16.mxu0 0
        %5459 = vmatmul.mubr.bf16.gmra.mrb[0].mxu0 %v4185
        %v5460 = vpop.f32.mrb[0].mxu0
        %v5461 = vadd.f32 %v4916, %v5460
        %v5462 = vpop.f32.mrb[0].mxu0
        %v5463 = vpop.f32.mrb[0].mxu0
        %v5464 = vadd.f32 %v4919, %v5463
        %v5465 = vpop.f32.mrb[0].mxu0
        %5466 = vmatprep.mubr.bf16.mxu0 0
        %5467 = vmatmul.mubr.bf16.gmra.mrb[0].mxu0 %v4187
        %v5468 = vpop.f32.mrb[0].mxu0
        %v5469 = vadd.f32 %v4924, %v5468
        %v5470 = vpop.f32.mrb[0].mxu0
        %v5471 = vpop.f32.mrb[0].mxu0
        %v5472 = vadd.f32 %v4927, %v5471
        %v5473 = vpop.f32.mrb[0].mxu0
        %5474 = vmatprep.mubr.bf16.mxu0 0
        %5475 = vmatmul.mubr.bf16.gmra.mrb[0].mxu0 %v4189
        %v5476 = vpop.f32.mrb[0].mxu0
        %v5477 = vadd.f32 %v4932, %v5476
        %v5478 = vpop.f32.mrb[0].mxu0
        %v5479 = vpop.f32.mrb[0].mxu0
        %v5480 = vadd.f32 %v4935, %v5479
        %v5481 = vpop.f32.mrb[0].mxu0
        %5482 = vmatprep.mubr.bf16.mxu0 0
        %5483 = vmatmul.mubr.bf16.gmra.mrb[0].mxu0 %v4191
        %v5484 = vpop.f32.mrb[0].mxu0
        %v5485 = vadd.f32 %v4940, %v5484
        %v5486 = vpop.f32.mrb[0].mxu0
        %v5487 = vpop.f32.mrb[0].mxu0
        %v5488 = vadd.f32 %v4943, %v5487
        %v5489 = vpop.f32.mrb[0].mxu0
        %5490 = vmatprep.mubr.bf16.mxu0 0
        %5491 = vmatmul.mubr.bf16.gmra.mrb[0].mxu0 %v4193
        %v5492 = vpop.f32.mrb[0].mxu0
        %v5493 = vadd.f32 %v4948, %v5492
        %v5494 = vpop.f32.mrb[0].mxu0
        %v5495 = vpop.f32.mrb[0].mxu0
        %v5496 = vadd.f32 %v4951, %v5495
        %v5497 = vpop.f32.mrb[0].mxu0
        %5498 = vmatprep.mubr.bf16.mxu0 0
        %5499 = vmatmul.mubr.bf16.gmra.mrb[0].mxu0 %v4195
        %v5500 = vpop.f32.mrb[0].mxu0
        %v5501 = vadd.f32 %v4956, %v5500
        %v5502 = vpop.f32.mrb[0].mxu0
        %v5503 = vpop.f32.mrb[0].mxu0
        %v5504 = vadd.f32 %v4959, %v5503
        %v5505 = vpop.f32.mrb[0].mxu0
        %5506 = vmatprep.mubr.bf16.mxu0 0
        %5507 = vmatmul.mubr.bf16.gmra.mrb[0].mxu0 %v4197
        %v5508 = vpop.f32.mrb[0].mxu0
        %v5509 = vadd.f32 %v4964, %v5508
        %v5510 = vpop.f32.mrb[0].mxu0
        %v5511 = vpop.f32.mrb[0].mxu0
        %v5512 = vadd.f32 %v4967, %v5511
        %v5513 = vpop.f32.mrb[0].mxu0
        %5514 = vmatprep.mubr.bf16.mxu0 0
        %5515 = vmatmul.mubr.bf16.gmra.mrb[0].mxu0 %v4199
        %v5516 = vpop.f32.mrb[0].mxu0
        %v5517 = vadd.f32 %v4972, %v5516
        %v5518 = vpop.f32.mrb[0].mxu0
        %v5519 = vpop.f32.mrb[0].mxu0
        %v5520 = vadd.f32 %v4975, %v5519
        %v5521 = vpop.f32.mrb[0].mxu0
        %5522 = vmatprep.mubr.bf16.mxu0 0
        %5523 = vmatmul.mubr.bf16.gmra.mrb[0].mxu0 %v4201
        %v5524 = vpop.f32.mrb[0].mxu0
        %v5525 = vadd.f32 %v4980, %v5524
        %v5526 = vpop.f32.mrb[0].mxu0
        %v5527 = vpop.f32.mrb[0].mxu0
        %v5528 = vadd.f32 %v4983, %v5527
        %v5529 = vpop.f32.mrb[0].mxu0
        %5530 = vmatprep.mubr.bf16.mxu0 0
        %5531 = vmatmul.mubr.bf16.gmra.mrb[0].mxu0 %v4203
        %v5532 = vpop.f32.mrb[0].mxu0
        %v5533 = vadd.f32 %v4988, %v5532
        %v5534 = vpop.f32.mrb[0].mxu0
        %v5535 = vpop.f32.mrb[0].mxu0
        %v5536 = vadd.f32 %v4991, %v5535
        %v5537 = vpop.f32.mrb[0].mxu0
        %5538 = vmatprep.mubr.bf16.mxu0 0
        %5539 = vmatmul.mubr.bf16.gmra.mrb[0].mxu0 %v4205
        %v5540 = vpop.f32.mrb[0].mxu0
        %v5541 = vadd.f32 %v4996, %v5540
        %v5542 = vpop.f32.mrb[0].mxu0
        %v5543 = vpop.f32.mrb[0].mxu0
        %v5544 = vadd.f32 %v4999, %v5543
        %v5545 = vpop.f32.mrb[0].mxu0
        %5546 = vmatprep.mubr.bf16.mxu0 0
        %5547 = vmatmul.mubr.bf16.gmra.mrb[0].mxu0 %v4207
        %v5548 = vpop.f32.mrb[0].mxu0
        %v5549 = vadd.f32 %v5004, %v5548
        %v5550 = vpop.f32.mrb[0].mxu0
        %v5551 = vpop.f32.mrb[0].mxu0
        %v5552 = vadd.f32 %v5007, %v5551
        %v5553 = vpop.f32.mrb[0].mxu0
        %5554 = vmatprep.mubr.bf16.mxu0 0
        %5555 = vmatmul.mubr.bf16.gmra.mrb[0].mxu0 %v4209
        %v5556 = vpop.f32.mrb[0].mxu0
        %v5557 = vadd.f32 %v5012, %v5556
        %v5558 = vpop.f32.mrb[0].mxu0
        %v5559 = vpop.f32.mrb[0].mxu0
        %v5560 = vadd.f32 %v5015, %v5559
        %v5561 = vpop.f32.mrb[0].mxu0
        %5562 = vdwg.mxu0
        %v5563 = vld [vmem:[%s707] sm:$0xff]
        %v5564 = vld [vmem:[%s707 + $0x8] sm:$0xff]
        %v5565 = vld [vmem:[%s707 + $0x10] sm:$0xff]
        %v5566 = vld [vmem:[%s707 + $0x18] sm:$0xff]
        %v5567 = vld [vmem:[%s707 + $0x20] sm:$0xff]
        %v5568 = vld [vmem:[%s707 + $0x28] sm:$0xff]
        %v5569 = vld [vmem:[%s707 + $0x30] sm:$0xff]
        %v5570 = vld [vmem:[%s707 + $0x38] sm:$0xff]
        %v5571 = vld [vmem:[%s707 + $0x40] sm:$0xff]
        %v5572 = vld [vmem:[%s707 + $0x48] sm:$0xff]
        %v5573 = vld [vmem:[%s707 + $0x50] sm:$0xff]
        %v5574 = vld [vmem:[%s707 + $0x58] sm:$0xff]
        %v5575 = vld [vmem:[%s707 + $0x60] sm:$0xff]
        %v5576 = vld [vmem:[%s707 + $0x68] sm:$0xff]
        %v5577 = vld [vmem:[%s707 + $0x70] sm:$0xff]
        %v5578 = vld [vmem:[%s707 + $0x78] sm:$0xff]
        %v5579 = vld [vmem:[%s707 + $0x80] sm:$0xff]
        %v5580 = vld [vmem:[%s707 + $0x88] sm:$0xff]
        %v5581 = vld [vmem:[%s707 + $0x90] sm:$0xff]
        %v5582 = vld [vmem:[%s707 + $0x98] sm:$0xff]
        %v5583 = vld [vmem:[%s707 + $0xa0] sm:$0xff]
        %v5584 = vld [vmem:[%s707 + $0xa8] sm:$0xff]
        %v5585 = vld [vmem:[%s707 + $0xb0] sm:$0xff]
        %v5586 = vld [vmem:[%s707 + $0xb8] sm:$0xff]
        %v5587 = vld [vmem:[%s707 + $0xc0] sm:$0xff]
        %v5588 = vld [vmem:[%s707 + $0xc8] sm:$0xff]
        %v5589 = vld [vmem:[%s707 + $0xd0] sm:$0xff]
        %v5590 = vld [vmem:[%s707 + $0xd8] sm:$0xff]
        %v5591 = vld [vmem:[%s707 + $0xe0] sm:$0xff]
        %v5592 = vld [vmem:[%s707 + $0xe8] sm:$0xff]
        %v5593 = vld [vmem:[%s707 + $0xf0] sm:$0xff]
        %v5594 = vld [vmem:[%s707 + $0xf8] sm:$0xff]
        %v5595 = vld [vmem:[%s707 + $0x100] sm:$0xff]
        %v5596 = vld [vmem:[%s707 + $0x108] sm:$0xff]
        %v5597 = vld [vmem:[%s707 + $0x110] sm:$0xff]
        %v5598 = vld [vmem:[%s707 + $0x118] sm:$0xff]
        %v5599 = vld [vmem:[%s707 + $0x120] sm:$0xff]
        %v5600 = vld [vmem:[%s707 + $0x128] sm:$0xff]
        %v5601 = vld [vmem:[%s707 + $0x130] sm:$0xff]
        %v5602 = vld [vmem:[%s707 + $0x138] sm:$0xff]
        %v5603 = vld [vmem:[%s707 + $0x140] sm:$0xff]
        %v5604 = vld [vmem:[%s707 + $0x148] sm:$0xff]
        %v5605 = vld [vmem:[%s707 + $0x150] sm:$0xff]
        %v5606 = vld [vmem:[%s707 + $0x158] sm:$0xff]
        %v5607 = vld [vmem:[%s707 + $0x160] sm:$0xff]
        %v5608 = vld [vmem:[%s707 + $0x168] sm:$0xff]
        %v5609 = vld [vmem:[%s707 + $0x170] sm:$0xff]
        %v5610 = vld [vmem:[%s707 + $0x178] sm:$0xff]
        %v5611 = vld [vmem:[%s707 + $0x180] sm:$0xff]
        %v5612 = vld [vmem:[%s707 + $0x188] sm:$0xff]
        %v5613 = vld [vmem:[%s707 + $0x190] sm:$0xff]
        %v5614 = vld [vmem:[%s707 + $0x198] sm:$0xff]
        %v5615 = vld [vmem:[%s707 + $0x1a0] sm:$0xff]
        %v5616 = vld [vmem:[%s707 + $0x1a8] sm:$0xff]
        %v5617 = vld [vmem:[%s707 + $0x1b0] sm:$0xff]
        %v5618 = vld [vmem:[%s707 + $0x1b8] sm:$0xff]
        %v5619 = vld [vmem:[%s707 + $0x1c0] sm:$0xff]
        %v5620 = vld [vmem:[%s707 + $0x1c8] sm:$0xff]
        %v5621 = vld [vmem:[%s707 + $0x1d0] sm:$0xff]
        %v5622 = vld [vmem:[%s707 + $0x1d8] sm:$0xff]
        %v5623 = vld [vmem:[%s707 + $0x1e0] sm:$0xff]
        %v5624 = vld [vmem:[%s707 + $0x1e8] sm:$0xff]
        %v5625 = vld [vmem:[%s707 + $0x1f0] sm:$0xff]
        %v5626 = vld [vmem:[%s707 + $0x1f8] sm:$0xff]
        %v5627 = vld [vmem:[%s707 + $0x200] sm:$0xff]
        %v5628 = vld [vmem:[%s707 + $0x208] sm:$0xff]
        %v5629 = vld [vmem:[%s707 + $0x210] sm:$0xff]
        %v5630 = vld [vmem:[%s707 + $0x218] sm:$0xff]
        %v5631 = vld [vmem:[%s707 + $0x220] sm:$0xff]
        %v5632 = vld [vmem:[%s707 + $0x228] sm:$0xff]
        %v5633 = vld [vmem:[%s707 + $0x230] sm:$0xff]
        %v5634 = vld [vmem:[%s707 + $0x238] sm:$0xff]
        %v5635 = vld [vmem:[%s707 + $0x240] sm:$0xff]
        %v5636 = vld [vmem:[%s707 + $0x248] sm:$0xff]
        %v5637 = vld [vmem:[%s707 + $0x250] sm:$0xff]
        %v5638 = vld [vmem:[%s707 + $0x258] sm:$0xff]
        %v5639 = vld [vmem:[%s707 + $0x260] sm:$0xff]
        %v5640 = vld [vmem:[%s707 + $0x268] sm:$0xff]
        %v5641 = vld [vmem:[%s707 + $0x270] sm:$0xff]
        %v5642 = vld [vmem:[%s707 + $0x278] sm:$0xff]
        %v5643 = vld [vmem:[%s707 + $0x280] sm:$0xff]
        %v5644 = vld [vmem:[%s707 + $0x288] sm:$0xff]
        %v5645 = vld [vmem:[%s707 + $0x290] sm:$0xff]
        %v5646 = vld [vmem:[%s707 + $0x298] sm:$0xff]
        %v5647 = vld [vmem:[%s707 + $0x2a0] sm:$0xff]
        %v5648 = vld [vmem:[%s707 + $0x2a8] sm:$0xff]
        %v5649 = vld [vmem:[%s707 + $0x2b0] sm:$0xff]
        %v5650 = vld [vmem:[%s707 + $0x2b8] sm:$0xff]
        %v5651 = vld [vmem:[%s707 + $0x2c0] sm:$0xff]
        %v5652 = vld [vmem:[%s707 + $0x2c8] sm:$0xff]
        %v5653 = vld [vmem:[%s707 + $0x2d0] sm:$0xff]
        %v5654 = vld [vmem:[%s707 + $0x2d8] sm:$0xff]
        %v5655 = vld [vmem:[%s707 + $0x2e0] sm:$0xff]
        %v5656 = vld [vmem:[%s707 + $0x2e8] sm:$0xff]
        %v5657 = vld [vmem:[%s707 + $0x2f0] sm:$0xff]
        %v5658 = vld [vmem:[%s707 + $0x2f8] sm:$0xff]
        %v5659 = vld [vmem:[%s707 + $0x300] sm:$0xff]
        %v5660 = vld [vmem:[%s707 + $0x308] sm:$0xff]
        %v5661 = vld [vmem:[%s707 + $0x310] sm:$0xff]
        %v5662 = vld [vmem:[%s707 + $0x318] sm:$0xff]
        %v5663 = vld [vmem:[%s707 + $0x320] sm:$0xff]
        %v5664 = vld [vmem:[%s707 + $0x328] sm:$0xff]
        %v5665 = vld [vmem:[%s707 + $0x330] sm:$0xff]
        %v5666 = vld [vmem:[%s707 + $0x338] sm:$0xff]
        %v5667 = vld [vmem:[%s707 + $0x340] sm:$0xff]
        %v5668 = vld [vmem:[%s707 + $0x348] sm:$0xff]
        %v5669 = vld [vmem:[%s707 + $0x350] sm:$0xff]
        %v5670 = vld [vmem:[%s707 + $0x358] sm:$0xff]
        %v5671 = vld [vmem:[%s707 + $0x360] sm:$0xff]
        %v5672 = vld [vmem:[%s707 + $0x368] sm:$0xff]
        %v5673 = vld [vmem:[%s707 + $0x370] sm:$0xff]
        %v5674 = vld [vmem:[%s707 + $0x378] sm:$0xff]
        %v5675 = vld [vmem:[%s707 + $0x380] sm:$0xff]
        %v5676 = vld [vmem:[%s707 + $0x388] sm:$0xff]
        %v5677 = vld [vmem:[%s707 + $0x390] sm:$0xff]
        %v5678 = vld [vmem:[%s707 + $0x398] sm:$0xff]
        %v5679 = vld [vmem:[%s707 + $0x3a0] sm:$0xff]
        %v5680 = vld [vmem:[%s707 + $0x3a8] sm:$0xff]
        %v5681 = vld [vmem:[%s707 + $0x3b0] sm:$0xff]
        %v5682 = vld [vmem:[%s707 + $0x3b8] sm:$0xff]
        %v5683 = vld [vmem:[%s707 + $0x3c0] sm:$0xff]
        %v5684 = vld [vmem:[%s707 + $0x3c8] sm:$0xff]
        %v5685 = vld [vmem:[%s707 + $0x3d0] sm:$0xff]
        %v5686 = vld [vmem:[%s707 + $0x3d8] sm:$0xff]
        %v5687 = vld [vmem:[%s707 + $0x3e0] sm:$0xff]
        %v5688 = vld [vmem:[%s707 + $0x3e8] sm:$0xff]
        %v5689 = vld [vmem:[%s707 + $0x3f0] sm:$0xff]
        %v5690 = vld [vmem:[%s707 + $0x3f8] sm:$0xff]
        %v5691 = vadd.f32 %v5053, %v5563
        %v5692 = vadd.f32 %v5056, %v5564
        %v5693 = vadd.f32 %v5061, %v5565
        %v5694 = vadd.f32 %v5064, %v5566
        %v5695 = vadd.f32 %v5069, %v5567
        %v5696 = vadd.f32 %v5072, %v5568
        %v5697 = vadd.f32 %v5077, %v5569
        %v5698 = vadd.f32 %v5080, %v5570
        %v5699 = vadd.f32 %v5085, %v5571
        %v5700 = vadd.f32 %v5088, %v5572
        %v5701 = vadd.f32 %v5093, %v5573
        %v5702 = vadd.f32 %v5096, %v5574
        %v5703 = vadd.f32 %v5101, %v5575
        %v5704 = vadd.f32 %v5104, %v5576
        %v5705 = vadd.f32 %v5109, %v5577
        %v5706 = vadd.f32 %v5112, %v5578
        %v5707 = vadd.f32 %v5117, %v5579
        %v5708 = vadd.f32 %v5120, %v5580
        %v5709 = vadd.f32 %v5125, %v5581
        %v5710 = vadd.f32 %v5128, %v5582
        %v5711 = vadd.f32 %v5133, %v5583
        %v5712 = vadd.f32 %v5136, %v5584
        %v5713 = vadd.f32 %v5141, %v5585
        %v5714 = vadd.f32 %v5144, %v5586
        %v5715 = vadd.f32 %v5149, %v5587
        %v5716 = vadd.f32 %v5152, %v5588
        %v5717 = vadd.f32 %v5157, %v5589
        %v5718 = vadd.f32 %v5160, %v5590
        %v5719 = vadd.f32 %v5165, %v5591
        %v5720 = vadd.f32 %v5168, %v5592
        %v5721 = vadd.f32 %v5173, %v5593
        %v5722 = vadd.f32 %v5176, %v5594
        %v5723 = vadd.f32 %v5181, %v5595
        %v5724 = vadd.f32 %v5184, %v5596
        %v5725 = vadd.f32 %v5189, %v5597
        %v5726 = vadd.f32 %v5192, %v5598
        %v5727 = vadd.f32 %v5197, %v5599
        %v5728 = vadd.f32 %v5200, %v5600
        %v5729 = vadd.f32 %v5205, %v5601
        %v5730 = vadd.f32 %v5208, %v5602
        %v5731 = vadd.f32 %v5213, %v5603
        %v5732 = vadd.f32 %v5216, %v5604
        %v5733 = vadd.f32 %v5221, %v5605
        %v5734 = vadd.f32 %v5224, %v5606
        %v5735 = vadd.f32 %v5229, %v5607
        %v5736 = vadd.f32 %v5232, %v5608
        %v5737 = vadd.f32 %v5237, %v5609
        %v5738 = vadd.f32 %v5240, %v5610
        %v5739 = vadd.f32 %v5245, %v5611
        %v5740 = vadd.f32 %v5248, %v5612
        %v5741 = vadd.f32 %v5253, %v5613
        %v5742 = vadd.f32 %v5256, %v5614
        %v5743 = vadd.f32 %v5261, %v5615
        %v5744 = vadd.f32 %v5264, %v5616
        %v5745 = vadd.f32 %v5269, %v5617
        %v5746 = vadd.f32 %v5272, %v5618
        %v5747 = vadd.f32 %v5277, %v5619
        %v5748 = vadd.f32 %v5280, %v5620
        %v5749 = vadd.f32 %v5285, %v5621
        %v5750 = vadd.f32 %v5288, %v5622
        %v5751 = vadd.f32 %v5293, %v5623
        %v5752 = vadd.f32 %v5296, %v5624
        %v5753 = vadd.f32 %v5301, %v5625
        %v5754 = vadd.f32 %v5304, %v5626
        %v5755 = vadd.f32 %v5309, %v5627
        %v5756 = vadd.f32 %v5312, %v5628
        %v5757 = vadd.f32 %v5317, %v5629
        %v5758 = vadd.f32 %v5320, %v5630
        %v5759 = vadd.f32 %v5325, %v5631
        %v5760 = vadd.f32 %v5328, %v5632
        %v5761 = vadd.f32 %v5333, %v5633
        %v5762 = vadd.f32 %v5336, %v5634
        %v5763 = vadd.f32 %v5341, %v5635
        %v5764 = vadd.f32 %v5344, %v5636
        %v5765 = vadd.f32 %v5349, %v5637
        %v5766 = vadd.f32 %v5352, %v5638
        %v5767 = vadd.f32 %v5357, %v5639
        %v5768 = vadd.f32 %v5360, %v5640
        %v5769 = vadd.f32 %v5365, %v5641
        %v5770 = vadd.f32 %v5368, %v5642
        %v5771 = vadd.f32 %v5373, %v5643
        %v5772 = vadd.f32 %v5376, %v5644
        %v5773 = vadd.f32 %v5381, %v5645
        %v5774 = vadd.f32 %v5384, %v5646
        %v5775 = vadd.f32 %v5389, %v5647
        %v5776 = vadd.f32 %v5392, %v5648
        %v5777 = vadd.f32 %v5397, %v5649
        %v5778 = vadd.f32 %v5400, %v5650
        %v5779 = vadd.f32 %v5405, %v5651
        %v5780 = vadd.f32 %v5408, %v5652
        %v5781 = vadd.f32 %v5413, %v5653
        %v5782 = vadd.f32 %v5416, %v5654
        %v5783 = vadd.f32 %v5421, %v5655
        %v5784 = vadd.f32 %v5424, %v5656
        %v5785 = vadd.f32 %v5429, %v5657
        %v5786 = vadd.f32 %v5432, %v5658
        %v5787 = vadd.f32 %v5437, %v5659
        %v5788 = vadd.f32 %v5440, %v5660
        %v5789 = vadd.f32 %v5445, %v5661
        %v5790 = vadd.f32 %v5448, %v5662
        %v5791 = vadd.f32 %v5453, %v5663
        %v5792 = vadd.f32 %v5456, %v5664
        %v5793 = vadd.f32 %v5461, %v5665
        %v5794 = vadd.f32 %v5464, %v5666
        %v5795 = vadd.f32 %v5469, %v5667
        %v5796 = vadd.f32 %v5472, %v5668
        %v5797 = vadd.f32 %v5477, %v5669
        %v5798 = vadd.f32 %v5480, %v5670
        %v5799 = vadd.f32 %v5485, %v5671
        %v5800 = vadd.f32 %v5488, %v5672
        %v5801 = vadd.f32 %v5493, %v5673
        %v5802 = vadd.f32 %v5496, %v5674
        %v5803 = vadd.f32 %v5501, %v5675
        %v5804 = vadd.f32 %v5504, %v5676
        %v5805 = vadd.f32 %v5509, %v5677
        %v5806 = vadd.f32 %v5512, %v5678
        %v5807 = vadd.f32 %v5517, %v5679
        %v5808 = vadd.f32 %v5520, %v5680
        %v5809 = vadd.f32 %v5525, %v5681
        %v5810 = vadd.f32 %v5528, %v5682
        %v5811 = vadd.f32 %v5533, %v5683
        %v5812 = vadd.f32 %v5536, %v5684
        %v5813 = vadd.f32 %v5541, %v5685
        %v5814 = vadd.f32 %v5544, %v5686
        %v5815 = vadd.f32 %v5549, %v5687
        %v5816 = vadd.f32 %v5552, %v5688
        %v5817 = vadd.f32 %v5557, %v5689
        %v5818 = vadd.f32 %v5560, %v5690
        %v5819 = vmax.f32 %v5691, 0.0
        %v5820 = vmax.f32 %v5692, 0.0
        %v5821 = vmax.f32 %v5693, 0.0
        %v5822 = vmax.f32 %v5694, 0.0
        %v5823 = vmax.f32 %v5695, 0.0
        %v5824 = vmax.f32 %v5696, 0.0
        %v5825 = vmax.f32 %v5697, 0.0
        %v5826 = vmax.f32 %v5698, 0.0
        %v5827 = vmax.f32 %v5699, 0.0
        %v5828 = vmax.f32 %v5700, 0.0
        %v5829 = vmax.f32 %v5701, 0.0
        %v5830 = vmax.f32 %v5702, 0.0
        %v5831 = vmax.f32 %v5703, 0.0
        %v5832 = vmax.f32 %v5704, 0.0
        %v5833 = vmax.f32 %v5705, 0.0
        %v5834 = vmax.f32 %v5706, 0.0
        %v5835 = vmax.f32 %v5707, 0.0
        %v5836 = vmax.f32 %v5708, 0.0
        %v5837 = vmax.f32 %v5709, 0.0
        %v5838 = vmax.f32 %v5710, 0.0
        %v5839 = vmax.f32 %v5711, 0.0
        %v5840 = vmax.f32 %v5712, 0.0
        %v5841 = vmax.f32 %v5713, 0.0
        %v5842 = vmax.f32 %v5714, 0.0
        %v5843 = vmax.f32 %v5715, 0.0
        %v5844 = vmax.f32 %v5716, 0.0
        %v5845 = vmax.f32 %v5717, 0.0
        %v5846 = vmax.f32 %v5718, 0.0
        %v5847 = vmax.f32 %v5719, 0.0
        %v5848 = vmax.f32 %v5720, 0.0
        %v5849 = vmax.f32 %v5721, 0.0
        %v5850 = vmax.f32 %v5722, 0.0
        %v5851 = vmax.f32 %v5723, 0.0
        %v5852 = vmax.f32 %v5724, 0.0
        %v5853 = vmax.f32 %v5725, 0.0
        %v5854 = vmax.f32 %v5726, 0.0
        %v5855 = vmax.f32 %v5727, 0.0
        %v5856 = vmax.f32 %v5728, 0.0
        %v5857 = vmax.f32 %v5729, 0.0
        %v5858 = vmax.f32 %v5730, 0.0
        %v5859 = vmax.f32 %v5731, 0.0
        %v5860 = vmax.f32 %v5732, 0.0
        %v5861 = vmax.f32 %v5733, 0.0
        %v5862 = vmax.f32 %v5734, 0.0
        %v5863 = vmax.f32 %v5735, 0.0
        %v5864 = vmax.f32 %v5736, 0.0
        %v5865 = vmax.f32 %v5737, 0.0
        %v5866 = vmax.f32 %v5738, 0.0
        %v5867 = vmax.f32 %v5739, 0.0
        %v5868 = vmax.f32 %v5740, 0.0
        %v5869 = vmax.f32 %v5741, 0.0
        %v5870 = vmax.f32 %v5742, 0.0
        %v5871 = vmax.f32 %v5743, 0.0
        %v5872 = vmax.f32 %v5744, 0.0
        %v5873 = vmax.f32 %v5745, 0.0
        %v5874 = vmax.f32 %v5746, 0.0
        %v5875 = vmax.f32 %v5747, 0.0
        %v5876 = vmax.f32 %v5748, 0.0
        %v5877 = vmax.f32 %v5749, 0.0
        %v5878 = vmax.f32 %v5750, 0.0
        %v5879 = vmax.f32 %v5751, 0.0
        %v5880 = vmax.f32 %v5752, 0.0
        %v5881 = vmax.f32 %v5753, 0.0
        %v5882 = vmax.f32 %v5754, 0.0
        %v5883 = vmax.f32 %v5755, 0.0
        %v5884 = vmax.f32 %v5756, 0.0
        %v5885 = vmax.f32 %v5757, 0.0
        %v5886 = vmax.f32 %v5758, 0.0
        %v5887 = vmax.f32 %v5759, 0.0
        %v5888 = vmax.f32 %v5760, 0.0
        %v5889 = vmax.f32 %v5761, 0.0
        %v5890 = vmax.f32 %v5762, 0.0
        %v5891 = vmax.f32 %v5763, 0.0
        %v5892 = vmax.f32 %v5764, 0.0
        %v5893 = vmax.f32 %v5765, 0.0
        %v5894 = vmax.f32 %v5766, 0.0
        %v5895 = vmax.f32 %v5767, 0.0
        %v5896 = vmax.f32 %v5768, 0.0
        %v5897 = vmax.f32 %v5769, 0.0
        %v5898 = vmax.f32 %v5770, 0.0
        %v5899 = vmax.f32 %v5771, 0.0
        %v5900 = vmax.f32 %v5772, 0.0
        %v5901 = vmax.f32 %v5773, 0.0
        %v5902 = vmax.f32 %v5774, 0.0
        %v5903 = vmax.f32 %v5775, 0.0
        %v5904 = vmax.f32 %v5776, 0.0
        %v5905 = vmax.f32 %v5777, 0.0
        %v5906 = vmax.f32 %v5778, 0.0
        %v5907 = vmax.f32 %v5779, 0.0
        %v5908 = vmax.f32 %v5780, 0.0
        %v5909 = vmax.f32 %v5781, 0.0
        %v5910 = vmax.f32 %v5782, 0.0
        %v5911 = vmax.f32 %v5783, 0.0
        %v5912 = vmax.f32 %v5784, 0.0
        %v5913 = vmax.f32 %v5785, 0.0
        %v5914 = vmax.f32 %v5786, 0.0
        %v5915 = vmax.f32 %v5787, 0.0
        %v5916 = vmax.f32 %v5788, 0.0
        %v5917 = vmax.f32 %v5789, 0.0
        %v5918 = vmax.f32 %v5790, 0.0
        %v5919 = vmax.f32 %v5791, 0.0
        %v5920 = vmax.f32 %v5792, 0.0
        %v5921 = vmax.f32 %v5793, 0.0
        %v5922 = vmax.f32 %v5794, 0.0
        %v5923 = vmax.f32 %v5795, 0.0
        %v5924 = vmax.f32 %v5796, 0.0
        %v5925 = vmax.f32 %v5797, 0.0
        %v5926 = vmax.f32 %v5798, 0.0
        %v5927 = vmax.f32 %v5799, 0.0
        %v5928 = vmax.f32 %v5800, 0.0
        %v5929 = vmax.f32 %v5801, 0.0
        %v5930 = vmax.f32 %v5802, 0.0
        %v5931 = vmax.f32 %v5803, 0.0
        %v5932 = vmax.f32 %v5804, 0.0
        %v5933 = vmax.f32 %v5805, 0.0
        %v5934 = vmax.f32 %v5806, 0.0
        %v5935 = vmax.f32 %v5807, 0.0
        %v5936 = vmax.f32 %v5808, 0.0
        %v5937 = vmax.f32 %v5809, 0.0
        %v5938 = vmax.f32 %v5810, 0.0
        %v5939 = vmax.f32 %v5811, 0.0
        %v5940 = vmax.f32 %v5812, 0.0
        %v5941 = vmax.f32 %v5813, 0.0
        %v5942 = vmax.f32 %v5814, 0.0
        %v5943 = vmax.f32 %v5815, 0.0
        %v5944 = vmax.f32 %v5816, 0.0
        %v5945 = vmax.f32 %v5817, 0.0
        %v5946 = vmax.f32 %v5818, 0.0
        %5947 = vst [vmem:[%s310] sm:$0xff] %v5819
        %5948 = vst [vmem:[%s310 + $0x8] sm:$0xff] %v5820
        %5949 = vst [vmem:[%s310 + $0x10] sm:$0xff] %v5821
        %5950 = vst [vmem:[%s310 + $0x18] sm:$0xff] %v5822
        %5951 = vst [vmem:[%s310 + $0x20] sm:$0xff] %v5823
        %5952 = vst [vmem:[%s310 + $0x28] sm:$0xff] %v5824
        %5953 = vst [vmem:[%s310 + $0x30] sm:$0xff] %v5825
        %5954 = vst [vmem:[%s310 + $0x38] sm:$0xff] %v5826
        %5955 = vst [vmem:[%s310 + $0x40] sm:$0xff] %v5827
        %5956 = vst [vmem:[%s310 + $0x48] sm:$0xff] %v5828
        %5957 = vst [vmem:[%s310 + $0x50] sm:$0xff] %v5829
        %5958 = vst [vmem:[%s310 + $0x58] sm:$0xff] %v5830
        %5959 = vst [vmem:[%s310 + $0x60] sm:$0xff] %v5831
        %5960 = vst [vmem:[%s310 + $0x68] sm:$0xff] %v5832
        %5961 = vst [vmem:[%s310 + $0x70] sm:$0xff] %v5833
        %5962 = vst [vmem:[%s310 + $0x78] sm:$0xff] %v5834
        %5963 = vst [vmem:[%s310 + $0x80] sm:$0xff] %v5835
        %5964 = vst [vmem:[%s310 + $0x88] sm:$0xff] %v5836
        %5965 = vst [vmem:[%s310 + $0x90] sm:$0xff] %v5837
        %5966 = vst [vmem:[%s310 + $0x98] sm:$0xff] %v5838
        %5967 = vst [vmem:[%s310 + $0xa0] sm:$0xff] %v5839
        %5968 = vst [vmem:[%s310 + $0xa8] sm:$0xff] %v5840
        %5969 = vst [vmem:[%s310 + $0xb0] sm:$0xff] %v5841
        %5970 = vst [vmem:[%s310 + $0xb8] sm:$0xff] %v5842
        %5971 = vst [vmem:[%s310 + $0xc0] sm:$0xff] %v5843
        %5972 = vst [vmem:[%s310 + $0xc8] sm:$0xff] %v5844
        %5973 = vst [vmem:[%s310 + $0xd0] sm:$0xff] %v5845
        %5974 = vst [vmem:[%s310 + $0xd8] sm:$0xff] %v5846
        %5975 = vst [vmem:[%s310 + $0xe0] sm:$0xff] %v5847
        %5976 = vst [vmem:[%s310 + $0xe8] sm:$0xff] %v5848
        %5977 = vst [vmem:[%s310 + $0xf0] sm:$0xff] %v5849
        %5978 = vst [vmem:[%s310 + $0xf8] sm:$0xff] %v5850
        %5979 = vst [vmem:[%s310 + $0x100] sm:$0xff] %v5851
        %5980 = vst [vmem:[%s310 + $0x108] sm:$0xff] %v5852
        %5981 = vst [vmem:[%s310 + $0x110] sm:$0xff] %v5853
        %5982 = vst [vmem:[%s310 + $0x118] sm:$0xff] %v5854
        %5983 = vst [vmem:[%s310 + $0x120] sm:$0xff] %v5855
        %5984 = vst [vmem:[%s310 + $0x128] sm:$0xff] %v5856
        %5985 = vst [vmem:[%s310 + $0x130] sm:$0xff] %v5857
        %5986 = vst [vmem:[%s310 + $0x138] sm:$0xff] %v5858
        %5987 = vst [vmem:[%s310 + $0x140] sm:$0xff] %v5859
        %5988 = vst [vmem:[%s310 + $0x148] sm:$0xff] %v5860
        %5989 = vst [vmem:[%s310 + $0x150] sm:$0xff] %v5861
        %5990 = vst [vmem:[%s310 + $0x158] sm:$0xff] %v5862
        %5991 = vst [vmem:[%s310 + $0x160] sm:$0xff] %v5863
        %5992 = vst [vmem:[%s310 + $0x168] sm:$0xff] %v5864
        %5993 = vst [vmem:[%s310 + $0x170] sm:$0xff] %v5865
        %5994 = vst [vmem:[%s310 + $0x178] sm:$0xff] %v5866
        %5995 = vst [vmem:[%s310 + $0x180] sm:$0xff] %v5867
        %5996 = vst [vmem:[%s310 + $0x188] sm:$0xff] %v5868
        %5997 = vst [vmem:[%s310 + $0x190] sm:$0xff] %v5869
        %5998 = vst [vmem:[%s310 + $0x198] sm:$0xff] %v5870
        %5999 = vst [vmem:[%s310 + $0x1a0] sm:$0xff] %v5871
        %6000 = vst [vmem:[%s310 + $0x1a8] sm:$0xff] %v5872
        %6001 = vst [vmem:[%s310 + $0x1b0] sm:$0xff] %v5873
        %6002 = vst [vmem:[%s310 + $0x1b8] sm:$0xff] %v5874
        %6003 = vst [vmem:[%s310 + $0x1c0] sm:$0xff] %v5875
        %6004 = vst [vmem:[%s310 + $0x1c8] sm:$0xff] %v5876
        %6005 = vst [vmem:[%s310 + $0x1d0] sm:$0xff] %v5877
        %6006 = vst [vmem:[%s310 + $0x1d8] sm:$0xff] %v5878
        %6007 = vst [vmem:[%s310 + $0x1e0] sm:$0xff] %v5879
        %6008 = vst [vmem:[%s310 + $0x1e8] sm:$0xff] %v5880
        %6009 = vst [vmem:[%s310 + $0x1f0] sm:$0xff] %v5881
        %6010 = vst [vmem:[%s310 + $0x1f8] sm:$0xff] %v5882
        %6011 = vst [vmem:[%s310 + $0x200] sm:$0xff] %v5883
        %6012 = vst [vmem:[%s310 + $0x208] sm:$0xff] %v5884
        %6013 = vst [vmem:[%s310 + $0x210] sm:$0xff] %v5885
        %6014 = vst [vmem:[%s310 + $0x218] sm:$0xff] %v5886
        %6015 = vst [vmem:[%s310 + $0x220] sm:$0xff] %v5887
        %6016 = vst [vmem:[%s310 + $0x228] sm:$0xff] %v5888
        %6017 = vst [vmem:[%s310 + $0x230] sm:$0xff] %v5889
        %6018 = vst [vmem:[%s310 + $0x238] sm:$0xff] %v5890
        %6019 = vst [vmem:[%s310 + $0x240] sm:$0xff] %v5891
        %6020 = vst [vmem:[%s310 + $0x248] sm:$0xff] %v5892
        %6021 = vst [vmem:[%s310 + $0x250] sm:$0xff] %v5893
        %6022 = vst [vmem:[%s310 + $0x258] sm:$0xff] %v5894
        %6023 = vst [vmem:[%s310 + $0x260] sm:$0xff] %v5895
        %6024 = vst [vmem:[%s310 + $0x268] sm:$0xff] %v5896
        %6025 = vst [vmem:[%s310 + $0x270] sm:$0xff] %v5897
        %6026 = vst [vmem:[%s310 + $0x278] sm:$0xff] %v5898
        %6027 = vst [vmem:[%s310 + $0x280] sm:$0xff] %v5899
        %6028 = vst [vmem:[%s310 + $0x288] sm:$0xff] %v5900
        %6029 = vst [vmem:[%s310 + $0x290] sm:$0xff] %v5901
        %6030 = vst [vmem:[%s310 + $0x298] sm:$0xff] %v5902
        %6031 = vst [vmem:[%s310 + $0x2a0] sm:$0xff] %v5903
        %6032 = vst [vmem:[%s310 + $0x2a8] sm:$0xff] %v5904
        %6033 = vst [vmem:[%s310 + $0x2b0] sm:$0xff] %v5905
        %6034 = vst [vmem:[%s310 + $0x2b8] sm:$0xff] %v5906
        %6035 = vst [vmem:[%s310 + $0x2c0] sm:$0xff] %v5907
        %6036 = vst [vmem:[%s310 + $0x2c8] sm:$0xff] %v5908
        %6037 = vst [vmem:[%s310 + $0x2d0] sm:$0xff] %v5909
        %6038 = vst [vmem:[%s310 + $0x2d8] sm:$0xff] %v5910
        %6039 = vst [vmem:[%s310 + $0x2e0] sm:$0xff] %v5911
        %6040 = vst [vmem:[%s310 + $0x2e8] sm:$0xff] %v5912
        %6041 = vst [vmem:[%s310 + $0x2f0] sm:$0xff] %v5913
        %6042 = vst [vmem:[%s310 + $0x2f8] sm:$0xff] %v5914
        %6043 = vst [vmem:[%s310 + $0x300] sm:$0xff] %v5915
        %6044 = vst [vmem:[%s310 + $0x308] sm:$0xff] %v5916
        %6045 = vst [vmem:[%s310 + $0x310] sm:$0xff] %v5917
        %6046 = vst [vmem:[%s310 + $0x318] sm:$0xff] %v5918
        %6047 = vst [vmem:[%s310 + $0x320] sm:$0xff] %v5919
        %6048 = vst [vmem:[%s310 + $0x328] sm:$0xff] %v5920
        %6049 = vst [vmem:[%s310 + $0x330] sm:$0xff] %v5921
        %6050 = vst [vmem:[%s310 + $0x338] sm:$0xff] %v5922
        %6051 = vst [vmem:[%s310 + $0x340] sm:$0xff] %v5923
        %6052 = vst [vmem:[%s310 + $0x348] sm:$0xff] %v5924
        %6053 = vst [vmem:[%s310 + $0x350] sm:$0xff] %v5925
        %6054 = vst [vmem:[%s310 + $0x358] sm:$0xff] %v5926
        %6055 = vst [vmem:[%s310 + $0x360] sm:$0xff] %v5927
        %6056 = vst [vmem:[%s310 + $0x368] sm:$0xff] %v5928
        %6057 = vst [vmem:[%s310 + $0x370] sm:$0xff] %v5929
        %6058 = vst [vmem:[%s310 + $0x378] sm:$0xff] %v5930
        %6059 = vst [vmem:[%s310 + $0x380] sm:$0xff] %v5931
        %6060 = vst [vmem:[%s310 + $0x388] sm:$0xff] %v5932
        %6061 = vst [vmem:[%s310 + $0x390] sm:$0xff] %v5933
        %6062 = vst [vmem:[%s310 + $0x398] sm:$0xff] %v5934
        %6063 = vst [vmem:[%s310 + $0x3a0] sm:$0xff] %v5935
        %6064 = vst [vmem:[%s310 + $0x3a8] sm:$0xff] %v5936
        %6065 = vst [vmem:[%s310 + $0x3b0] sm:$0xff] %v5937
        %6066 = vst [vmem:[%s310 + $0x3b8] sm:$0xff] %v5938
        %6067 = vst [vmem:[%s310 + $0x3c0] sm:$0xff] %v5939
        %6068 = vst [vmem:[%s310 + $0x3c8] sm:$0xff] %v5940
        %6069 = vst [vmem:[%s310 + $0x3d0] sm:$0xff] %v5941
        %6070 = vst [vmem:[%s310 + $0x3d8] sm:$0xff] %v5942
        %6071 = vst [vmem:[%s310 + $0x3e0] sm:$0xff] %v5943
        %6072 = vst [vmem:[%s310 + $0x3e8] sm:$0xff] %v5944
        %6073 = vst [vmem:[%s310 + $0x3f0] sm:$0xff] %v5945
        %6074 = vst [vmem:[%s310 + $0x3f8] sm:$0xff] %v5946
        %s6075 = sand.u32 %s156, 1
        %s6076 = scalar_lea.sflag [#allocation4], %s6075
        %s6077 = sand.u32 %s156, 1
        %s6078 = smul.addr %s6077, 1024
        %s6079 = scalar_lea.vmem [#allocation11], %s6078
        // Predicated region
        $region61: #{tpu_custom_call.1} parent=39 // pred_check
          %p6080 = pneg %p166
        $region62: #{tpu_custom_call.1} parent=39 // pred_check_branch
          %6082 = sbr.rel (%p6080) target = $region64
        $region63: #{tpu_custom_call.1} parent=39 // pred_region
          %s6083 = smul.u32 128, %s29
          %s6085 = ssub.s32 16384, 16384
          %6086 = vsyncadd %s6076, %s6085
          %s6087 = smul.addr %s28, 384
          %s6088 = sadd.s32 %s6083, %s6087
          %s6089 = smul.addr %s6088, 128
          %s6090 = scalar_lea.hbm %s5, %s6089
          %s6091 = sshll.u32 %s6079, 4
          %s6092 = int_to_ptr.vmem [resolvable:$true] %s6091
          %6097 = dma.vmem_to_hbm [thread:$0]  %s6092, 16384, %s6090, %s6076, 128, 128, 8
        $region64: #{tpu_custom_call.1} parent=39 // pred_fallthru
          _
      $region40: #{tpu_custom_call.1} parent=5 // pred_fallthru
        _
      %p6098 = scmp.le.s32.totalorder 2, %s19
      // Predicated region
      $region65: #{tpu_custom_call.1} parent=5 // pred_check
        %p6099 = pneg %p6098
      $region66: #{tpu_custom_call.1} parent=5 // pred_check_branch
        %6101 = sbr.rel (%p6099) target = $region68
      $region67: #{tpu_custom_call.1} parent=5 // pred_region
        %s6102 = ssub.s32 %s19, 2
        // Predicated region
        $region69: #{tpu_custom_call.1} parent=67 // pred_check
          %p6103 = pneg %p172
        $region70: #{tpu_custom_call.1} parent=67 // pred_check_branch
          %6105 = sbr.rel (%p6103) target = $region72
        $region71: #{tpu_custom_call.1} parent=67 // pred_region
          %s6106 = sand.u32 %s157, 1
          %s6107 = scalar_lea.sflag [#allocation4], %s6106
          %s6108 = sand.u32 %s157, 1
          %s6109 = smul.addr %s6108, 1024
          %s6110 = scalar_lea.vmem [#allocation11], %s6109
          %6111 = dma.done %s6107, 16384
        $region72: #{tpu_custom_call.1} parent=67 // pred_fallthru
          _
      $region68: #{tpu_custom_call.1} parent=5 // pred_fallthru
        _
    $region6: #{tpu_custom_call.1} parent=1 // loop_footer
      %s23 = sadd.s32 1, %s19
    $region7: #{tpu_custom_call.1} parent=1 // loop_footer_branch
      %18 = sbr.rel target = $region3
    $region8: #{tpu_custom_call.1} parent=1 // loop_exit
      _
    %6112 = vsyncpa [#allocation3], 1
    %s6113 = scalar_lea.sflag [#allocation3], 1
    %6114 = vsyncpa %s6113, 1
    %6115 = vsyncpa [#allocation6], 1
    %6116 = vsyncpa [#allocation9], 1
    %6117 = vsyncpa [#allocation4], 1
    %s6118 = scalar_lea.sflag [#allocation4], 1
    %6119 = vsyncpa %s6118, 1

</llo_original>
